<compile_context>
chip_gen: v6e
topology: v6e:2x2x1
jax: 0.10.0
libtpu: 0.0.40
codegen_flags: <defaults>
</compile_context>

<pallas_src>
import functools

import jax
import jax.numpy as jnp
from jax.experimental import pallas as pl
from jax.experimental.pallas import tpu as pltpu


def _conv_silu_pool_kernel(x_ref, wc_ref, bc_ref, pooled_ref, acc_ref, *, mxu_dtype):
    """Per (image, HW-tile): 1x1 conv (BN folded) + SiLU + lane-wise partial sums.

    x_ref:      (1, c1, tHW)  input tile, channels on sublanes, HW on lanes (f32)
    wc_ref:     (c_, c1)      BN-folded conv weight (mxu_dtype)
    bc_ref:     (c_, 1)       BN-folded conv bias (f32)
    pooled_ref: (1, c_, 1)    per-image spatial sum, written once at the last tile
    acc_ref:    (c_, 128)     VMEM scratch: lane-wise partial sums (f32)
    """
    t = pl.program_id(1)

    @pl.when(t == 0)
    def _init():
        acc_ref[...] = jnp.zeros_like(acc_ref)

    # 1x1 conv as a lane-dense MXU matmul: (c_, c1) @ (c1, tHW) -> (c_, tHW).
    # x is cast to the MXU dtype in-register (no extra HBM pass over x),
    # accumulation stays f32 via preferred_element_type.
    x = x_ref[0].astype(mxu_dtype)
    y = jnp.dot(wc_ref[...], x, preferred_element_type=jnp.float32)
    y = y + bc_ref[...]                              # folded BatchNorm bias (f32)
    # SiLU via a single EUP tanh:  x*sigmoid(x) == x*(0.5*tanh(x/2) + 0.5).
    y = y * (0.5 * jnp.tanh(0.5 * y) + 0.5)

    # Lane-wise partial sums on the VPU: static 128-lane slices are free vreg
    # selects; the XLU cross-lane reduce is deferred to the final tile.
    thw = y.shape[1]
    part = y[:, 0:128]
    for j in range(1, thw // 128):
        part = part + y[:, j * 128:(j + 1) * 128]
    acc_ref[...] += part

    @pl.when(t == pl.num_programs(1) - 1)
    def _finalize():
        # One cross-lane reduce + one small store per image (not per tile).
        pooled_ref[0] = jnp.sum(acc_ref[...], axis=1, keepdims=True)


def _linear_softmax_kernel(p_ref, wl_ref, bl_ref, o_ref):
    """Batched Linear + softmax for the whole batch in one matmul.

    p_ref:  (B, c_)    pooled spatial sums
    wl_ref: (c_, c2p)  Linear weight, pre-scaled by 1/HW, zero-padded to c2p
    bl_ref: (1, c2p)   Linear bias; pad columns hold a large negative value
    o_ref:  (B, c2p)   softmax probabilities (pad columns come out as exactly 0)
    """
    logits = jnp.dot(p_ref[...], wl_ref[...],
                     preferred_element_type=jnp.float32) + bl_ref[...]
    m = jnp.max(logits, axis=-1, keepdims=True)
    e = jnp.exp(logits - m)
    o_ref[...] = e / jnp.sum(e, axis=-1, keepdims=True)


def _pick_hw_tile(hw, c1, c_, x_bytes, w_bytes,
                  vmem_budget=10 * 1024 * 1024, max_tile=2048):
    """Largest 128-multiple HW tile whose kernel-1 working set fits a
    conservative VMEM budget (safe for v5e's 16 MiB default scoped limit and
    v7x's 64 MiB physical VMEM)."""
    fixed = 2 * c_ * c1 * w_bytes + c_ * 128 * 4 + 8 * c_ * 4   # wc (x2), scratch, bc/out
    per_col = 2 * c1 * x_bytes + 2 * c_ * 4                      # x (x2) + y intermediates
    t = (vmem_budget - fixed) // per_col
    t = max(128, min(max_tile, int(t)))
    t = (t // 128) * 128
    hw_ceil = ((hw + 127) // 128) * 128
    return min(t, hw_ceil)


def classify_forward(x_nchw, w_conv, bn_gamma, bn_beta, bn_mean, bn_var,
                     w_lin, b_lin, eps=1e-3, hw_tile=None,
                     conv_dot_dtype=jnp.bfloat16):
    """x_nchw: (B, c1, H, W) float32. Returns (B, c2) softmax probabilities.

    eps=1e-3 matches Ultralytics' Conv/BatchNorm2d(eps=0.001).
    conv_dot_dtype: dtype fed to the MXU for the 1x1 conv (bf16 by default,
    f32 accumulation; pass jnp.float32 for an exact-precision path).
    """
    B, c1, H, W = x_nchw.shape
    c_ = w_conv.shape[0]          # w_conv: (c_, c1, 1, 1)
    c2 = w_lin.shape[0]           # w_lin:  (c2, c_)
    HW = H * W

    # ---- parameter folding (tiny one-off ops on weights only) -----------------
    scale = bn_gamma / jnp.sqrt(bn_var + eps)                              # (c_,)
    wc = (w_conv[:, :, 0, 0] * scale[:, None]).astype(conv_dot_dtype)      # (c_, c1)
    bc = (bn_beta - bn_mean * scale).astype(jnp.float32)[:, None]          # (c_, 1)

    # ---- HW tiling + lane padding ---------------------------------------------
    if hw_tile is None:
        hw_tile = _pick_hw_tile(HW, c1, c_, x_nchw.dtype.itemsize,
                                jnp.dtype(conv_dot_dtype).itemsize)
    assert hw_tile > 0 and hw_tile % 128 == 0, "hw_tile must be a multiple of 128"
    n_t = pl.cdiv(HW, hw_tile)
    hw_pad = n_t * hw_tile
    n_pad = hw_pad - HW

    # NCHW -> (B, c1, HW) is a pure reshape; pad HW with zero columns up to the
    # tile boundary.  A zero column still yields SiLU(bc) after conv+BN+SiLU;
    # that contribution is removed exactly via the Linear-bias correction below.
    x = x_nchw.reshape(B, c1, HW)
    if n_pad:
        x = jnp.pad(x, ((0, 0), (0, 0), (0, n_pad)))

    # Linear weight transposed for right-multiplication, pre-scaled by the 1/HW
    # mean-pool factor, zero-padded to a lane-dense class count c2p.
    c2p = ((c2 + 127) // 128) * 128
    w_lin32 = w_lin.astype(jnp.float32)
    wl = jnp.zeros((c_, c2p), jnp.float32).at[:, :c2].set(w_lin32.T / float(HW))
    bc1d = bc[:, 0]
    silu_bc = bc1d * (0.5 * jnp.tanh(0.5 * bc1d) + 0.5)                    # (c_,)
    bias_corr = (float(n_pad) / float(HW)) * (w_lin32 @ silu_bc)           # (c2,)
    bl = jnp.full((1, c2p), -1e30, jnp.float32).at[0, :c2].set(
        b_lin.astype(jnp.float32) - bias_corr)

    # ---- kernel 1: conv + BN + SiLU + spatial sum -------------------------------
    kern1 = functools.partial(_conv_silu_pool_kernel, mxu_dtype=conv_dot_dtype)
    pooled = pl.pallas_call(
        kern1,
        out_shape=jax.ShapeDtypeStruct((B, c_, 1), jnp.float32),
        grid_spec=pltpu.PrefetchScalarGridSpec(
            num_scalar_prefetch=0,
            grid=(B, n_t),
            in_specs=[
                pl.BlockSpec((1, c1, hw_tile), lambda b, t: (b, 0, t)),
                pl.BlockSpec((c_, c1), lambda b, t: (0, 0)),
                pl.BlockSpec((c_, 1), lambda b, t: (0, 0)),
            ],
            out_specs=pl.BlockSpec((1, c_, 1), lambda b, t: (b, 0, 0)),
            scratch_shapes=[pltpu.VMEM((c_, 128), jnp.float32)],
        ),
        compiler_params=pltpu.CompilerParams(
            dimension_semantics=("parallel", "arbitrary")),
    )(x, wc, bc)

    # (B, c_, 1) and (B, c_) share the same HBM layout -> free reshape.
    pooled = pooled.reshape(B, c_)

    # ---- kernel 2: batched Linear + softmax (lane-dense padded output) ---------
    probs_padded = pl.pallas_call(
        _linear_softmax_kernel,
        out_shape=jax.ShapeDtypeStruct((B, c2p), jnp.float32),
        grid_spec=pltpu.PrefetchScalarGridSpec(
            num_scalar_prefetch=0,
            grid=(1,),
            in_specs=[
                pl.BlockSpec((B, c_), lambda i: (0, 0)),
                pl.BlockSpec((c_, c2p), lambda i: (0, 0)),
                pl.BlockSpec((1, c2p), lambda i: (0, 0)),
            ],
            out_specs=pl.BlockSpec((B, c2p), lambda i: (0, 0)),
        ),
        compiler_params=pltpu.CompilerParams(
            dimension_semantics=("arbitrary",)),
    )(pooled, wl, bl)

    return probs_padded[:, :c2]


def _reference(x_nchw, w_conv, bn_gamma, bn_beta, bn_mean, bn_var,
               w_lin, b_lin, eps=1e-3):
    # Pure-JAX reference of the same forward pass (for sanity checks).
    scale = bn_gamma / jnp.sqrt(bn_var + eps)
    y = jnp.einsum("bchw,oc->bohw", x_nchw, w_conv[:, :, 0, 0])
    y = y * scale[None, :, None, None] + (bn_beta - bn_mean * scale)[None, :, None, None]
    y = y * jax.nn.sigmoid(y)
    pooled = jnp.mean(y, axis=(2, 3))                       # (B, c_)
    logits = pooled @ w_lin.T + b_lin
    return jax.nn.softmax(logits, axis=1)


if __name__ == "__main__":
    # Small, module-consistent shapes: x (B=2, c1=4, H=16, W=16), c2=8 classes.
    B, c1, c2 = 2, 4, 8
    c_hidden = 1280

    key = jax.random.PRNGKey(0)
    k = jax.random.split(key, 7)

    # Deterministic synthetic parameters (shapes from the module's __init__).
    w_conv = 0.1 * jax.random.normal(k[1], (c_hidden, c1, 1, 1), jnp.float32)
    bn_gamma = 1.0 + 0.1 * jax.random.normal(k[2], (c_hidden,), jnp.float32)
    bn_beta = 0.1 * jax.random.normal(k[3], (c_hidden,), jnp.float32)
    bn_mean = 0.05 * jax.random.normal(k[4], (c_hidden,), jnp.float32)
    bn_var = jnp.abs(1.0 + 0.1 * jax.random.normal(k[5], (c_hidden,), jnp.float32))
    w_lin = 0.05 * jax.random.normal(k[6], (c2, c_hidden), jnp.float32)
    b_lin = jnp.linspace(-0.1, 0.1, c2, dtype=jnp.float32)
    params = (w_conv, bn_gamma, bn_beta, bn_mean, bn_var, w_lin, b_lin)

    # --- Test 1: default bf16 MXU path, single HW tile (HW=256) -----------------
    x = jax.random.normal(k[0], (B, c1, 16, 16), jnp.float32)
    ref = _reference(x, *params)
    out = jax.block_until_ready(classify_forward(x, *params))
    assert out.shape == (B, c2)
    assert jnp.allclose(out, ref, atol=5e-3), "bf16 path mismatch vs JAX reference"
    assert jnp.allclose(jnp.sum(out, axis=1), 1.0, atol=1e-4)

    # --- Test 2: exact f32 MXU path, 2 HW tiles of 128 (exercises accumulator) --
    out_f32 = jax.block_until_ready(
        classify_forward(x, *params, hw_tile=128, conv_dot_dtype=jnp.float32))
    assert jnp.allclose(out_f32, ref, atol=1e-5, rtol=1e-5), "f32 tiled path mismatch"
    assert jnp.allclose(jnp.sum(out_f32, axis=1), 1.0, atol=1e-5)

    # --- Test 3: HW not a multiple of 128 (HW=100 padded to 128, exact bias fix) -
    x2 = jax.random.normal(k[0], (B, c1, 10, 10), jnp.float32)
    ref2 = _reference(x2, *params)
    out2 = jax.block_until_ready(classify_forward(x2, *params))
    assert jnp.allclose(out2, ref2, atol=5e-3), "padded-HW path mismatch"

    print("KERNEL_OK")
</pallas_src>

<mosaic_0001>
module attributes {stable_mosaic.version = 11 : i64} {
  func.func @_conv_silu_pool_kernel(%arg0: i32, %arg1: i32, %arg2: memref<1x4x256xf32, #tpu.memory_space<vmem>>, %arg3: memref<1280x4xbf16, #tpu.memory_space<vmem>>, %arg4: memref<1280x1xf32, #tpu.memory_space<vmem>>, %arg5: memref<1x1280x1xf32, #tpu.memory_space<vmem>>, %arg6: memref<1280x128xf32, #tpu.memory_space<vmem>>) attributes {dimension_semantics = [#tpu.dimension_semantics<parallel>, #tpu.dimension_semantics<arbitrary>], iteration_bounds = array<i64: 2, 1>, scalar_prefetch = 0 : i64, scratch_operands = 1 : i64, tpu.core_type = #tpu.core_type<tc>, window_params = [{transform_indices = @transform_0, window_bounds = array<i64: 1, 4, 256>}, {pipeline_mode = #tpu.pipeline_mode<synchronous>, transform_indices = @transform_1, window_bounds = array<i64: 1280, 4>}, {pipeline_mode = #tpu.pipeline_mode<synchronous>, transform_indices = @transform_2, window_bounds = array<i64: 1280, 1>}, {transform_indices = @transform_3, window_bounds = array<i64: 1, 1280, 1>}]} {
    %c0_i32 = arith.constant 0 : i32
    %0 = arith.cmpi eq, %arg1, %c0_i32 : i32
    %1 = arith.extui %0 : i1 to i32
    %c0_i32_0 = arith.constant 0 : i32
    %2 = arith.cmpi ne, %1, %c0_i32_0 : i32
    scf.if %2 {
      %cst_16 = arith.constant 0.000000e+00 : f32
      %28 = vector.broadcast %cst_16 : f32 to vector<1280x128xf32>
      %c0_17 = arith.constant 0 : index
      %c0_18 = arith.constant 0 : index
      %29 = vector.load %arg6[%c0_17, %c0_18] : memref<1280x128xf32, #tpu.memory_space<vmem>>, vector<1280x128xf32>
      tpu.vector_store %arg6[%c0_17, %c0_18], %28 {strides = array<i32>} : memref<1280x128xf32, #tpu.memory_space<vmem>>, vector<1280x128xf32>,
    } else {
    }
    %c0 = arith.constant 0 : index
    %c0_1 = arith.constant 0 : index
    %c0_2 = arith.constant 0 : index
    %3 = vector.load %arg2[%c0, %c0_1, %c0_2] : memref<1x4x256xf32, #tpu.memory_space<vmem>>, vector<1x4x256xf32>
    %4 = vector.shape_cast %3 : vector<1x4x256xf32> to vector<4x256xf32>
    %5 = arith.truncf %4 : vector<4x256xf32> to vector<4x256xbf16>
    %c0_3 = arith.constant 0 : index
    %c0_4 = arith.constant 0 : index
    %6 = vector.load %arg3[%c0_3, %c0_4] : memref<1280x4xbf16, #tpu.memory_space<vmem>>, vector<1280x4xbf16>
    %cst = arith.constant dense<0.000000e+00> : vector<1280x256xf32>
    %7 = tpu.matmul %6, %5, %cst {dimension_numbers = #tpu.dot_dimension_numbers<[1], [0], [0], [1], [0, 0, 1, 1], [], []>} : vector<1280x4xbf16>, vector<4x256xbf16>, vector<1280x256xf32> -> vector<1280x256xf32>
    %c0_5 = arith.constant 0 : index
    %c0_6 = arith.constant 0 : index
    %8 = vector.load %arg4[%c0_5, %c0_6] : memref<1280x1xf32, #tpu.memory_space<vmem>>, vector<1280x1xf32>
    %9 = vector.broadcast %8 : vector<1280x1xf32> to vector<1280x256xf32>
    %10 = arith.addf %7, %9 : vector<1280x256xf32>
    %cst_7 = arith.constant 5.000000e-01 : f32
    %11 = vector.broadcast %cst_7 : f32 to vector<1280x256xf32>
    %12 = arith.mulf %11, %10 : vector<1280x256xf32>
    %13 = math.tanh %12 : vector<1280x256xf32>
    %cst_8 = arith.constant 5.000000e-01 : f32
    %14 = vector.broadcast %cst_8 : f32 to vector<1280x256xf32>
    %15 = arith.mulf %14, %13 : vector<1280x256xf32>
    %cst_9 = arith.constant 5.000000e-01 : f32
    %16 = vector.broadcast %cst_9 : f32 to vector<1280x256xf32>
    %17 = arith.addf %15, %16 : vector<1280x256xf32>
    %18 = arith.mulf %10, %17 : vector<1280x256xf32>
    %19 = vector.extract_strided_slice %18 {offsets = [0, 0], sizes = [1280, 128], strides = [1, 1]} : vector<1280x256xf32> to vector<1280x128xf32>
    %20 = vector.extract_strided_slice %18 {offsets = [0, 128], sizes = [1280, 128], strides = [1, 1]} : vector<1280x256xf32> to vector<1280x128xf32>
    %21 = arith.addf %19, %20 : vector<1280x128xf32>
    %c0_10 = arith.constant 0 : index
    %c0_11 = arith.constant 0 : index
    %22 = vector.load %arg6[%c0_10, %c0_11] : memref<1280x128xf32, #tpu.memory_space<vmem>>, vector<1280x128xf32>
    %23 = arith.addf %22, %21 : vector<1280x128xf32>
    %c0_12 = arith.constant 0 : index
    %c0_13 = arith.constant 0 : index
    %24 = vector.load %arg6[%c0_12, %c0_13] : memref<1280x128xf32, #tpu.memory_space<vmem>>, vector<1280x128xf32>
    tpu.vector_store %arg6[%c0_12, %c0_13], %23 {strides = array<i32>} : memref<1280x128xf32, #tpu.memory_space<vmem>>, vector<1280x128xf32>,
    %c0_i32_14 = arith.constant 0 : i32
    %25 = arith.cmpi eq, %arg1, %c0_i32_14 : i32
    %26 = arith.extui %25 : i1 to i32
    %c0_i32_15 = arith.constant 0 : i32
    %27 = arith.cmpi ne, %26, %c0_i32_15 : i32
    scf.if %27 {
      %c0_16 = arith.constant 0 : index
      %c0_17 = arith.constant 0 : index
      %28 = vector.load %arg6[%c0_16, %c0_17] : memref<1280x128xf32, #tpu.memory_space<vmem>>, vector<1280x128xf32>
      %cst_18 = arith.constant dense<0.000000e+00> : vector<1280xf32>
      %29 = vector.multi_reduction <add>, %28, %cst_18 [1] : vector<1280x128xf32> to vector<1280xf32>
      %30 = vector.shape_cast %29 : vector<1280xf32> to vector<1280x1xf32>
      %c0_19 = arith.constant 0 : index
      %c0_20 = arith.constant 0 : index
      %c0_21 = arith.constant 0 : index
      %31 = vector.load %arg5[%c0_19, %c0_20, %c0_21] : memref<1x1280x1xf32, #tpu.memory_space<vmem>>, vector<1x1280x1xf32>
      %32 = vector.shape_cast %31 : vector<1x1280x1xf32> to vector<1280x1xf32>
      %33 = vector.shape_cast %30 : vector<1280x1xf32> to vector<1x1280x1xf32>
      tpu.vector_store %arg5[%c0_19, %c0_20, %c0_21], %33 {strides = array<i32>} : memref<1x1280x1xf32, #tpu.memory_space<vmem>>, vector<1x1280x1xf32>,
    } else {
    }
    return
  }
  func.func @transform_0(%arg0: i32, %arg1: i32) -> (i32, i32, i32) {
    %c0_i32 = arith.constant 0 : i32
    %c0_i32_0 = arith.constant 0 : i32
    return %arg0, %c0_i32, %arg1 : i32, i32, i32
  }
  func.func @transform_1(%arg0: i32, %arg1: i32) -> (i32, i32) {
    %c0_i32 = arith.constant 0 : i32
    %c0_i32_0 = arith.constant 0 : i32
    %c0_i32_1 = arith.constant 0 : i32
    return %c0_i32, %c0_i32_0 : i32, i32
  }
  func.func @transform_2(%arg0: i32, %arg1: i32) -> (i32, i32) {
    %c0_i32 = arith.constant 0 : i32
    %c0_i32_0 = arith.constant 0 : i32
    %c0_i32_1 = arith.constant 0 : i32
    return %c0_i32, %c0_i32_0 : i32, i32
  }
  func.func @transform_3(%arg0: i32, %arg1: i32) -> (i32, i32, i32) {
    %c0_i32 = arith.constant 0 : i32
    %c0_i32_0 = arith.constant 0 : i32
    %c0_i32_1 = arith.constant 0 : i32
    return %arg0, %c0_i32, %c0_i32_0 : i32, i32, i32
  }
}

</mosaic_0001>

<llo_original>
// kernel: tpu_custom_call.1
$region0: #{tpu_custom_call.1}
  #allocation0 [shape = 'u32[]', space=smem, size = 0x4, offset = 0x4, fixed_abs, tag = 'smem constant byte address 0x4 - core index']
  #allocation1 [shape = 'u32[144,128]{1,0:T(1,128)}', space=vmem, size = 0x12000, scoped, tag = 'internal scratch']
  #allocation2 [shape = 'f32[1280,128]{1,0:T(8,128)}', space=vmem, size = 0xa0000, scoped, tag = 'scratch operand']
  %s0 = inlined_call_operand.hbm [shape: f32[2,4,256], index: 0, kind: input, shape index: {}]
  %s1 = inlined_call_operand.vmem [shape: bf16[1280,4], index: 1, kind: input, shape index: {}]
  %s2 = inlined_call_operand.vmem [shape: f32[1280,1], index: 2, kind: input, shape index: {}]
  %s3 = inlined_call_operand.vmem [shape: f32[2,1280,1], index: 3, kind: output, shape index: {}]
  %s4 = sld [smem:[#allocation0]]
  $region57: #{tpu_custom_call.1} parent=0
    _
  %s6 = ssub.s32 1, %s4
  %s7 = scalar_select 0, %s6, %s4
  $region1: #{tpu_custom_call.1} parent=0
    #allocation3 [shape = 'u8[8192]{0}', space=vmem, size = 0x2000, scoped, tag = 'input window, operand 0']
    #allocation4 [shape = 's32[2]{0}', space=sflag, size = 0x8, scoped, tag = 'scoped memory for tpu_custom_call.1']
    %8 = vsyncpa [#allocation4], 0
    %s9 = scalar_lea.sflag [#allocation4], 1
    %10 = vsyncpa %s9, 0
    loop: start=0, step=1, limit=4
    $region2: #{tpu_custom_call.1} parent=1 // loop_pre_header
      _
    $region3: #{tpu_custom_call.1} parent=1 // loop_header
      %s12 = sphi 0, %s16
      %p13 = scmp.ge.s32.totalorder %s12, 4
      %s19 = sphi 0, %s31
      %s20 = sphi 0, %s27
      %s21 = sphi 0, %s19
      %s22 = sphi 0, %s20
      %s23 = sphi 0, %s21
      %s24 = sphi 0, %s22
      %s36 = sphi 0, %s38
      %s39 = sphi 0, %s36
      %s40 = sphi 0, %s39
      %s56 = sphi 0, %s40
      %s60 = sphi 0, %s60
      %s62 = sphi 0, %s60
      %s63 = sphi 0, %s62
      %s77 = sphi 0, %s63
      %s81 = sphi 0, %s81
      %s83 = sphi 0, %s81
      %s84 = sphi 0, %s83
      %s98 = sphi 0, %s84
      %s104 = sphi 0, %s106
      %s107 = sphi 0, %s104
      %s108 = sphi 0, %s107
      %s124 = sphi 0, %s108
    $region4: #{tpu_custom_call.1} parent=1 // loop_header_branch
      %15 = sbr.rel (%p13) target = $region8
    $region5: #{tpu_custom_call.1} parent=1 // loop_body
      %s17 = ssub.s32 %s12, 1
      %s18 = ssub.s32 %s12, 2
      %s25 = sadd.s32 1, %s20
      %p26 = scmp.ge.s32.totalorder %s25, 1
      %s27 = scalar_select %p26, 0, %s25
      %s28 = sadd.s32 1, %s19
      %s29 = scalar_select %p26, %s28, %s19
      %p30 = scmp.ge.s32.totalorder %s29, 2
      %s31 = scalar_select %p30, 0, %s29
      %s32 = ssub.s32 %s19, %s31
      %s33 = ssub.s32 %s20, %s27
      %s34 = sor.u32 %s32, %s33
      %p35 = scmp.eq.s32.totalorder %s34, 0
      %s37 = sadd.s32 %s36, 1
      %s38 = scalar_select %p35, %s36, %s37
      %p41 = pneg %p35
      %p42 = scmp.eq.s32.totalorder %s12, 1
      %p43 = por %p41, %p42
      %p44 = scmp.ne.s32.totalorder %s36, %s39
      %p45 = scmp.eq.s32.totalorder %s12, 0
      %p46 = por %p44, %p45
      %p47 = scmp.ne.s32.totalorder %s36, %s39
      %p48 = scmp.eq.s32.totalorder %s17, 1
      %p49 = por %p47, %p48
      %p50 = scmp.ne.s32.totalorder %s39, %s40
      %p51 = scmp.eq.s32.totalorder %s17, 0
      %p52 = por %p50, %p51
      %p53 = scmp.ne.s32.totalorder %s39, %s40
      %p54 = scmp.eq.s32.totalorder %s18, 1
      %p55 = por %p53, %p54
      %p57 = scmp.ne.s32.totalorder %s40, %s56
      %p58 = scmp.eq.s32.totalorder %s18, 0
      %p59 = por %p57, %p58
      %s61 = sadd.s32 %s60, 1
      %p64 = scmp.eq.s32.totalorder %s12, 1
      %p65 = scmp.ne.s32.totalorder %s60, %s62
      %p66 = scmp.eq.s32.totalorder %s12, 0
      %p67 = por %p65, %p66
      %p68 = scmp.ne.s32.totalorder %s60, %s62
      %p69 = scmp.eq.s32.totalorder %s17, 1
      %p70 = por %p68, %p69
      %p71 = scmp.ne.s32.totalorder %s62, %s63
      %p72 = scmp.eq.s32.totalorder %s17, 0
      %p73 = por %p71, %p72
      %p74 = scmp.ne.s32.totalorder %s62, %s63
      %p75 = scmp.eq.s32.totalorder %s18, 1
      %p76 = por %p74, %p75
      %p78 = scmp.ne.s32.totalorder %s63, %s77
      %p79 = scmp.eq.s32.totalorder %s18, 0
      %p80 = por %p78, %p79
      %s82 = sadd.s32 %s81, 1
      %p85 = scmp.eq.s32.totalorder %s12, 1
      %p86 = scmp.ne.s32.totalorder %s81, %s83
      %p87 = scmp.eq.s32.totalorder %s12, 0
      %p88 = por %p86, %p87
      %p89 = scmp.ne.s32.totalorder %s81, %s83
      %p90 = scmp.eq.s32.totalorder %s17, 1
      %p91 = por %p89, %p90
      %p92 = scmp.ne.s32.totalorder %s83, %s84
      %p93 = scmp.eq.s32.totalorder %s17, 0
      %p94 = por %p92, %p93
      %p95 = scmp.ne.s32.totalorder %s83, %s84
      %p96 = scmp.eq.s32.totalorder %s18, 1
      %p97 = por %p95, %p96
      %p99 = scmp.ne.s32.totalorder %s84, %s98
      %p100 = scmp.eq.s32.totalorder %s18, 0
      %p101 = por %p99, %p100
      %s102 = ssub.s32 %s19, %s31
      %p103 = scmp.eq.s32.totalorder %s102, 0
      %s105 = sadd.s32 %s104, 1
      %s106 = scalar_select %p103, %s104, %s105
      %p109 = pneg %p103
      %p110 = scmp.eq.s32.totalorder %s12, 1
      %p111 = por %p109, %p110
      %p112 = scmp.ne.s32.totalorder %s104, %s107
      %p113 = scmp.eq.s32.totalorder %s12, 0
      %p114 = por %p112, %p113
      %p115 = scmp.ne.s32.totalorder %s104, %s107
      %p116 = scmp.eq.s32.totalorder %s17, 1
      %p117 = por %p115, %p116
      %p118 = scmp.ne.s32.totalorder %s107, %s108
      %p119 = scmp.eq.s32.totalorder %s17, 0
      %p120 = por %p118, %p119
      %p121 = scmp.ne.s32.totalorder %s107, %s108
      %p122 = scmp.eq.s32.totalorder %s18, 1
      %p123 = por %p121, %p122
      %p125 = scmp.ne.s32.totalorder %s108, %s124
      %p126 = scmp.eq.s32.totalorder %s18, 0
      %p127 = por %p125, %p126
      %p128 = scmp.le.s32.totalorder 1, %s12
      %p129 = scmp.lt.s32.totalorder %s12, 3
      %p130 = pnand %p128, %p129
      %p131 = pneg %p130
      // Predicated region
      $region9: #{tpu_custom_call.1} parent=5 // pred_check
        _
      $region10: #{tpu_custom_call.1} parent=5 // pred_check_branch
        %133 = sbr.rel (%p130) target = $region12
      $region11: #{tpu_custom_call.1} parent=5 // pred_region
        %s134 = ssub.s32 %s12, 1
        // Predicated region
        $region13: #{tpu_custom_call.1} parent=11 // pred_check
          %p135 = pneg %p73
        $region14: #{tpu_custom_call.1} parent=11 // pred_check_branch
          %137 = sbr.rel (%p135) target = $region16
        $region15: #{tpu_custom_call.1} parent=11 // pred_region
          _
        $region16: #{tpu_custom_call.1} parent=11 // pred_fallthru
          _
        // Predicated region
        $region17: #{tpu_custom_call.1} parent=11 // pred_check
          %p138 = pneg %p94
        $region18: #{tpu_custom_call.1} parent=11 // pred_check_branch
          %140 = sbr.rel (%p138) target = $region20
        $region19: #{tpu_custom_call.1} parent=11 // pred_region
          _
        $region20: #{tpu_custom_call.1} parent=11 // pred_fallthru
          _
      $region12: #{tpu_custom_call.1} parent=5 // pred_fallthru
        _
      %p141 = scmp.lt.s32.totalorder %s12, 2
      // Predicated region
      $region21: #{tpu_custom_call.1} parent=5 // pred_check
        %p142 = pneg %p141
      $region22: #{tpu_custom_call.1} parent=5 // pred_check_branch
        %144 = sbr.rel (%p142) target = $region24
      $region23: #{tpu_custom_call.1} parent=5 // pred_region
        // Predicated region
        $region25: #{tpu_custom_call.1} parent=23 // pred_check
          %p145 = pneg %p46
        $region26: #{tpu_custom_call.1} parent=23 // pred_check_branch
          %147 = sbr.rel (%p145) target = $region28
        $region27: #{tpu_custom_call.1} parent=23 // pred_region
          %s148 = sand.u32 %s36, 1
          %s149 = scalar_lea.sflag [#allocation4], %s148
          %s150 = sand.u32 %s36, 1
          %s151 = smul.addr %s150, 8
          %s152 = scalar_lea.vmem [#allocation3], %s151
          %s153 = smul.u32 2, %s20
          %s155 = ssub.s32 128, 128
          %156 = vsyncadd %s149, %s155
          %s157 = smul.addr %s19, 2
          %s158 = sadd.s32 %s153, %s157
          %s159 = smul.addr %s158, 64
          %s160 = scalar_lea.hbm %s0, %s159
          %s162 = sshll.u32 %s152, 4
          %s163 = int_to_ptr.vmem [resolvable:$true] %s162
          %165 = dma.hbm_to_vmem [thread:$0]  %s160, 128, %s163, %s149
        $region28: #{tpu_custom_call.1} parent=23 // pred_fallthru
          _
      $region24: #{tpu_custom_call.1} parent=5 // pred_fallthru
        _
      %p166 = scmp.le.s32.totalorder 1, %s12
      %p167 = scmp.lt.s32.totalorder %s12, 3
      %p168 = pnand %p166, %p167
      %p169 = pneg %p168
      // Predicated region
      $region29: #{tpu_custom_call.1} parent=5 // pred_check
        _
      $region30: #{tpu_custom_call.1} parent=5 // pred_check_branch
        %171 = sbr.rel (%p168) target = $region32
      $region31: #{tpu_custom_call.1} parent=5 // pred_region
        %s172 = ssub.s32 %s12, 1
        %s173 = sand.u32 %s39, 1
        %s174 = scalar_lea.sflag [#allocation4], %s173
        %s175 = sand.u32 %s39, 1
        %s176 = smul.addr %s175, 8
        %s177 = scalar_lea.vmem [#allocation3], %s176
        // Predicated region
        $region33: #{tpu_custom_call.1} parent=31 // pred_check
          %p178 = pneg %p52
        $region34: #{tpu_custom_call.1} parent=31 // pred_check_branch
          %180 = sbr.rel (%p178) target = $region36
        $region35: #{tpu_custom_call.1} parent=31 // pred_region
          %181 = dma.done %s174, 128
        $region36: #{tpu_custom_call.1} parent=31 // pred_fallthru
          _
        %s182 = sand.u32 %s39, 1
        %s183 = scalar_lea.sflag [#allocation4], %s182
        %s184 = sand.u32 %s39, 1
        %s185 = smul.addr %s184, 8
        %s186 = scalar_lea.vmem [#allocation3], %s185
        %p187 = pneg %p52
        %p188 = pneg %p49
        %p189 = pneg %p73
        %p190 = pneg %p70
        %p191 = pneg %p94
        %p192 = pneg %p91
        %p193 = pneg %p120
        %p194 = pneg %p117
        %p195 = scmp.lt.s32.totalorder %s21, 1
        %s196 = scalar_select %p195, %s21, 1
        %s197 = smul.addr %s196, 160
        %s198 = smul.addr %s197, 8
        %s199 = scalar_lea.vmem %s3, %s198
        %s200 = smul.u32 2, %s22
        %p201 = scmp.lt.s32.totalorder %s21, 1
        %s202 = scalar_select %p201, %s21, 1
        %s203 = smul.addr %s202, 160
        %s204 = smul.addr %s203, 8
        %s205 = scalar_lea.vmem %s3, %s204
        %p207 = scmp.eq.s32.totalorder %s22, 0
        // Predicated region
        $region37: #{tpu_custom_call.1} parent=31 // pred_check
          %p208 = pneg %p207
        $region38: #{tpu_custom_call.1} parent=31 // pred_check_branch
          %210 = sbr.rel (%p208) target = $region40
        $region39: #{tpu_custom_call.1} parent=31 // pred_region
          %211 = vst [vmem:[#allocation2] sm:$0xff] 0.0
          %212 = vst [vmem:[#allocation2 + $0x8] sm:$0xff] 0.0
          %213 = vst [vmem:[#allocation2 + $0x10] sm:$0xff] 0.0
          %214 = vst [vmem:[#allocation2 + $0x18] sm:$0xff] 0.0
          %215 = vst [vmem:[#allocation2 + $0x20] sm:$0xff] 0.0
          %216 = vst [vmem:[#allocation2 + $0x28] sm:$0xff] 0.0
          %217 = vst [vmem:[#allocation2 + $0x30] sm:$0xff] 0.0
          %218 = vst [vmem:[#allocation2 + $0x38] sm:$0xff] 0.0
          %219 = vst [vmem:[#allocation2 + $0x40] sm:$0xff] 0.0
          %220 = vst [vmem:[#allocation2 + $0x48] sm:$0xff] 0.0
          %221 = vst [vmem:[#allocation2 + $0x50] sm:$0xff] 0.0
          %222 = vst [vmem:[#allocation2 + $0x58] sm:$0xff] 0.0
          %223 = vst [vmem:[#allocation2 + $0x60] sm:$0xff] 0.0
          %224 = vst [vmem:[#allocation2 + $0x68] sm:$0xff] 0.0
          %225 = vst [vmem:[#allocation2 + $0x70] sm:$0xff] 0.0
          %226 = vst [vmem:[#allocation2 + $0x78] sm:$0xff] 0.0
          %227 = vst [vmem:[#allocation2 + $0x80] sm:$0xff] 0.0
          %228 = vst [vmem:[#allocation2 + $0x88] sm:$0xff] 0.0
          %229 = vst [vmem:[#allocation2 + $0x90] sm:$0xff] 0.0
          %230 = vst [vmem:[#allocation2 + $0x98] sm:$0xff] 0.0
          %231 = vst [vmem:[#allocation2 + $0xa0] sm:$0xff] 0.0
          %232 = vst [vmem:[#allocation2 + $0xa8] sm:$0xff] 0.0
          %233 = vst [vmem:[#allocation2 + $0xb0] sm:$0xff] 0.0
          %234 = vst [vmem:[#allocation2 + $0xb8] sm:$0xff] 0.0
          %235 = vst [vmem:[#allocation2 + $0xc0] sm:$0xff] 0.0
          %236 = vst [vmem:[#allocation2 + $0xc8] sm:$0xff] 0.0
          %237 = vst [vmem:[#allocation2 + $0xd0] sm:$0xff] 0.0
          %238 = vst [vmem:[#allocation2 + $0xd8] sm:$0xff] 0.0
          %239 = vst [vmem:[#allocation2 + $0xe0] sm:$0xff] 0.0
          %240 = vst [vmem:[#allocation2 + $0xe8] sm:$0xff] 0.0
          %241 = vst [vmem:[#allocation2 + $0xf0] sm:$0xff] 0.0
          %242 = vst [vmem:[#allocation2 + $0xf8] sm:$0xff] 0.0
          %243 = vst [vmem:[#allocation2 + $0x100] sm:$0xff] 0.0
          %244 = vst [vmem:[#allocation2 + $0x108] sm:$0xff] 0.0
          %245 = vst [vmem:[#allocation2 + $0x110] sm:$0xff] 0.0
          %246 = vst [vmem:[#allocation2 + $0x118] sm:$0xff] 0.0
          %247 = vst [vmem:[#allocation2 + $0x120] sm:$0xff] 0.0
          %248 = vst [vmem:[#allocation2 + $0x128] sm:$0xff] 0.0
          %249 = vst [vmem:[#allocation2 + $0x130] sm:$0xff] 0.0
          %250 = vst [vmem:[#allocation2 + $0x138] sm:$0xff] 0.0
          %251 = vst [vmem:[#allocation2 + $0x140] sm:$0xff] 0.0
          %252 = vst [vmem:[#allocation2 + $0x148] sm:$0xff] 0.0
          %253 = vst [vmem:[#allocation2 + $0x150] sm:$0xff] 0.0
          %254 = vst [vmem:[#allocation2 + $0x158] sm:$0xff] 0.0
          %255 = vst [vmem:[#allocation2 + $0x160] sm:$0xff] 0.0
          %256 = vst [vmem:[#allocation2 + $0x168] sm:$0xff] 0.0
          %257 = vst [vmem:[#allocation2 + $0x170] sm:$0xff] 0.0
          %258 = vst [vmem:[#allocation2 + $0x178] sm:$0xff] 0.0
          %259 = vst [vmem:[#allocation2 + $0x180] sm:$0xff] 0.0
          %260 = vst [vmem:[#allocation2 + $0x188] sm:$0xff] 0.0
          %261 = vst [vmem:[#allocation2 + $0x190] sm:$0xff] 0.0
          %262 = vst [vmem:[#allocation2 + $0x198] sm:$0xff] 0.0
          %263 = vst [vmem:[#allocation2 + $0x1a0] sm:$0xff] 0.0
          %264 = vst [vmem:[#allocation2 + $0x1a8] sm:$0xff] 0.0
          %265 = vst [vmem:[#allocation2 + $0x1b0] sm:$0xff] 0.0
          %266 = vst [vmem:[#allocation2 + $0x1b8] sm:$0xff] 0.0
          %267 = vst [vmem:[#allocation2 + $0x1c0] sm:$0xff] 0.0
          %268 = vst [vmem:[#allocation2 + $0x1c8] sm:$0xff] 0.0
          %269 = vst [vmem:[#allocation2 + $0x1d0] sm:$0xff] 0.0
          %270 = vst [vmem:[#allocation2 + $0x1d8] sm:$0xff] 0.0
          %271 = vst [vmem:[#allocation2 + $0x1e0] sm:$0xff] 0.0
          %272 = vst [vmem:[#allocation2 + $0x1e8] sm:$0xff] 0.0
          %273 = vst [vmem:[#allocation2 + $0x1f0] sm:$0xff] 0.0
          %274 = vst [vmem:[#allocation2 + $0x1f8] sm:$0xff] 0.0
          %275 = vst [vmem:[#allocation2 + $0x200] sm:$0xff] 0.0
          %276 = vst [vmem:[#allocation2 + $0x208] sm:$0xff] 0.0
          %277 = vst [vmem:[#allocation2 + $0x210] sm:$0xff] 0.0
          %278 = vst [vmem:[#allocation2 + $0x218] sm:$0xff] 0.0
          %279 = vst [vmem:[#allocation2 + $0x220] sm:$0xff] 0.0
          %280 = vst [vmem:[#allocation2 + $0x228] sm:$0xff] 0.0
          %281 = vst [vmem:[#allocation2 + $0x230] sm:$0xff] 0.0
          %282 = vst [vmem:[#allocation2 + $0x238] sm:$0xff] 0.0
          %283 = vst [vmem:[#allocation2 + $0x240] sm:$0xff] 0.0
          %284 = vst [vmem:[#allocation2 + $0x248] sm:$0xff] 0.0
          %285 = vst [vmem:[#allocation2 + $0x250] sm:$0xff] 0.0
          %286 = vst [vmem:[#allocation2 + $0x258] sm:$0xff] 0.0
          %287 = vst [vmem:[#allocation2 + $0x260] sm:$0xff] 0.0
          %288 = vst [vmem:[#allocation2 + $0x268] sm:$0xff] 0.0
          %289 = vst [vmem:[#allocation2 + $0x270] sm:$0xff] 0.0
          %290 = vst [vmem:[#allocation2 + $0x278] sm:$0xff] 0.0
          %291 = vst [vmem:[#allocation2 + $0x280] sm:$0xff] 0.0
          %292 = vst [vmem:[#allocation2 + $0x288] sm:$0xff] 0.0
          %293 = vst [vmem:[#allocation2 + $0x290] sm:$0xff] 0.0
          %294 = vst [vmem:[#allocation2 + $0x298] sm:$0xff] 0.0
          %295 = vst [vmem:[#allocation2 + $0x2a0] sm:$0xff] 0.0
          %296 = vst [vmem:[#allocation2 + $0x2a8] sm:$0xff] 0.0
          %297 = vst [vmem:[#allocation2 + $0x2b0] sm:$0xff] 0.0
          %298 = vst [vmem:[#allocation2 + $0x2b8] sm:$0xff] 0.0
          %299 = vst [vmem:[#allocation2 + $0x2c0] sm:$0xff] 0.0
          %300 = vst [vmem:[#allocation2 + $0x2c8] sm:$0xff] 0.0
          %301 = vst [vmem:[#allocation2 + $0x2d0] sm:$0xff] 0.0
          %302 = vst [vmem:[#allocation2 + $0x2d8] sm:$0xff] 0.0
          %303 = vst [vmem:[#allocation2 + $0x2e0] sm:$0xff] 0.0
          %304 = vst [vmem:[#allocation2 + $0x2e8] sm:$0xff] 0.0
          %305 = vst [vmem:[#allocation2 + $0x2f0] sm:$0xff] 0.0
          %306 = vst [vmem:[#allocation2 + $0x2f8] sm:$0xff] 0.0
          %307 = vst [vmem:[#allocation2 + $0x300] sm:$0xff] 0.0
          %308 = vst [vmem:[#allocation2 + $0x308] sm:$0xff] 0.0
          %309 = vst [vmem:[#allocation2 + $0x310] sm:$0xff] 0.0
          %310 = vst [vmem:[#allocation2 + $0x318] sm:$0xff] 0.0
          %311 = vst [vmem:[#allocation2 + $0x320] sm:$0xff] 0.0
          %312 = vst [vmem:[#allocation2 + $0x328] sm:$0xff] 0.0
          %313 = vst [vmem:[#allocation2 + $0x330] sm:$0xff] 0.0
          %314 = vst [vmem:[#allocation2 + $0x338] sm:$0xff] 0.0
          %315 = vst [vmem:[#allocation2 + $0x340] sm:$0xff] 0.0
          %316 = vst [vmem:[#allocation2 + $0x348] sm:$0xff] 0.0
          %317 = vst [vmem:[#allocation2 + $0x350] sm:$0xff] 0.0
          %318 = vst [vmem:[#allocation2 + $0x358] sm:$0xff] 0.0
          %319 = vst [vmem:[#allocation2 + $0x360] sm:$0xff] 0.0
          %320 = vst [vmem:[#allocation2 + $0x368] sm:$0xff] 0.0
          %321 = vst [vmem:[#allocation2 + $0x370] sm:$0xff] 0.0
          %322 = vst [vmem:[#allocation2 + $0x378] sm:$0xff] 0.0
          %323 = vst [vmem:[#allocation2 + $0x380] sm:$0xff] 0.0
          %324 = vst [vmem:[#allocation2 + $0x388] sm:$0xff] 0.0
          %325 = vst [vmem:[#allocation2 + $0x390] sm:$0xff] 0.0
          %326 = vst [vmem:[#allocation2 + $0x398] sm:$0xff] 0.0
          %327 = vst [vmem:[#allocation2 + $0x3a0] sm:$0xff] 0.0
          %328 = vst [vmem:[#allocation2 + $0x3a8] sm:$0xff] 0.0
          %329 = vst [vmem:[#allocation2 + $0x3b0] sm:$0xff] 0.0
          %330 = vst [vmem:[#allocation2 + $0x3b8] sm:$0xff] 0.0
          %331 = vst [vmem:[#allocation2 + $0x3c0] sm:$0xff] 0.0
          %332 = vst [vmem:[#allocation2 + $0x3c8] sm:$0xff] 0.0
          %333 = vst [vmem:[#allocation2 + $0x3d0] sm:$0xff] 0.0
          %334 = vst [vmem:[#allocation2 + $0x3d8] sm:$0xff] 0.0
          %335 = vst [vmem:[#allocation2 + $0x3e0] sm:$0xff] 0.0
          %336 = vst [vmem:[#allocation2 + $0x3e8] sm:$0xff] 0.0
          %337 = vst [vmem:[#allocation2 + $0x3f0] sm:$0xff] 0.0
          %338 = vst [vmem:[#allocation2 + $0x3f8] sm:$0xff] 0.0
          %339 = vst [vmem:[#allocation2 + $0x400] sm:$0xff] 0.0
          %340 = vst [vmem:[#allocation2 + $0x408] sm:$0xff] 0.0
          %341 = vst [vmem:[#allocation2 + $0x410] sm:$0xff] 0.0
          %342 = vst [vmem:[#allocation2 + $0x418] sm:$0xff] 0.0
          %343 = vst [vmem:[#allocation2 + $0x420] sm:$0xff] 0.0
          %344 = vst [vmem:[#allocation2 + $0x428] sm:$0xff] 0.0
          %345 = vst [vmem:[#allocation2 + $0x430] sm:$0xff] 0.0
          %346 = vst [vmem:[#allocation2 + $0x438] sm:$0xff] 0.0
          %347 = vst [vmem:[#allocation2 + $0x440] sm:$0xff] 0.0
          %348 = vst [vmem:[#allocation2 + $0x448] sm:$0xff] 0.0
          %349 = vst [vmem:[#allocation2 + $0x450] sm:$0xff] 0.0
          %350 = vst [vmem:[#allocation2 + $0x458] sm:$0xff] 0.0
          %351 = vst [vmem:[#allocation2 + $0x460] sm:$0xff] 0.0
          %352 = vst [vmem:[#allocation2 + $0x468] sm:$0xff] 0.0
          %353 = vst [vmem:[#allocation2 + $0x470] sm:$0xff] 0.0
          %354 = vst [vmem:[#allocation2 + $0x478] sm:$0xff] 0.0
          %355 = vst [vmem:[#allocation2 + $0x480] sm:$0xff] 0.0
          %356 = vst [vmem:[#allocation2 + $0x488] sm:$0xff] 0.0
          %357 = vst [vmem:[#allocation2 + $0x490] sm:$0xff] 0.0
          %358 = vst [vmem:[#allocation2 + $0x498] sm:$0xff] 0.0
          %359 = vst [vmem:[#allocation2 + $0x4a0] sm:$0xff] 0.0
          %360 = vst [vmem:[#allocation2 + $0x4a8] sm:$0xff] 0.0
          %361 = vst [vmem:[#allocation2 + $0x4b0] sm:$0xff] 0.0
          %362 = vst [vmem:[#allocation2 + $0x4b8] sm:$0xff] 0.0
          %363 = vst [vmem:[#allocation2 + $0x4c0] sm:$0xff] 0.0
          %364 = vst [vmem:[#allocation2 + $0x4c8] sm:$0xff] 0.0
          %365 = vst [vmem:[#allocation2 + $0x4d0] sm:$0xff] 0.0
          %366 = vst [vmem:[#allocation2 + $0x4d8] sm:$0xff] 0.0
          %367 = vst [vmem:[#allocation2 + $0x4e0] sm:$0xff] 0.0
          %368 = vst [vmem:[#allocation2 + $0x4e8] sm:$0xff] 0.0
          %369 = vst [vmem:[#allocation2 + $0x4f0] sm:$0xff] 0.0
          %370 = vst [vmem:[#allocation2 + $0x4f8] sm:$0xff] 0.0
        $region40: #{tpu_custom_call.1} parent=31 // pred_fallthru
          _
        %v371 = vld [vmem:[%s177] sm:$0xff]
        %v373 = vcombine.high %v371, %v371
        %v375 = vpack.c.bf16 %v371, %v371
        %v376 = vpack.c.bf16 %v373, %v373
        %v377 = vld [vmem:[%s1] sm:$0xf]
        %v378 = vld [vmem:[%s1 + $0x4] sm:$0xf]
        %v379 = vld [vmem:[%s1 + $0x8] sm:$0xf]
        %v380 = vld [vmem:[%s1 + $0xc] sm:$0xf]
        %v381 = vld [vmem:[%s1 + $0x10] sm:$0xf]
        %v382 = vld [vmem:[%s1 + $0x14] sm:$0xf]
        %v383 = vld [vmem:[%s1 + $0x18] sm:$0xf]
        %v384 = vld [vmem:[%s1 + $0x1c] sm:$0xf]
        %v385 = vld [vmem:[%s1 + $0x20] sm:$0xf]
        %v386 = vld [vmem:[%s1 + $0x24] sm:$0xf]
        %v387 = vld [vmem:[%s1 + $0x28] sm:$0xf]
        %v388 = vld [vmem:[%s1 + $0x2c] sm:$0xf]
        %v389 = vld [vmem:[%s1 + $0x30] sm:$0xf]
        %v390 = vld [vmem:[%s1 + $0x34] sm:$0xf]
        %v391 = vld [vmem:[%s1 + $0x38] sm:$0xf]
        %v392 = vld [vmem:[%s1 + $0x3c] sm:$0xf]
        %v393 = vld [vmem:[%s1 + $0x40] sm:$0xf]
        %v394 = vld [vmem:[%s1 + $0x44] sm:$0xf]
        %v395 = vld [vmem:[%s1 + $0x48] sm:$0xf]
        %v396 = vld [vmem:[%s1 + $0x4c] sm:$0xf]
        %v397 = vld [vmem:[%s1 + $0x50] sm:$0xf]
        %v398 = vld [vmem:[%s1 + $0x54] sm:$0xf]
        %v399 = vld [vmem:[%s1 + $0x58] sm:$0xf]
        %v400 = vld [vmem:[%s1 + $0x5c] sm:$0xf]
        %v401 = vld [vmem:[%s1 + $0x60] sm:$0xf]
        %v402 = vld [vmem:[%s1 + $0x64] sm:$0xf]
        %v403 = vld [vmem:[%s1 + $0x68] sm:$0xf]
        %v404 = vld [vmem:[%s1 + $0x6c] sm:$0xf]
        %v405 = vld [vmem:[%s1 + $0x70] sm:$0xf]
        %v406 = vld [vmem:[%s1 + $0x74] sm:$0xf]
        %v407 = vld [vmem:[%s1 + $0x78] sm:$0xf]
        %v408 = vld [vmem:[%s1 + $0x7c] sm:$0xf]
        %v409 = vld [vmem:[%s1 + $0x80] sm:$0xf]
        %v410 = vld [vmem:[%s1 + $0x84] sm:$0xf]
        %v411 = vld [vmem:[%s1 + $0x88] sm:$0xf]
        %v412 = vld [vmem:[%s1 + $0x8c] sm:$0xf]
        %v413 = vld [vmem:[%s1 + $0x90] sm:$0xf]
        %v414 = vld [vmem:[%s1 + $0x94] sm:$0xf]
        %v415 = vld [vmem:[%s1 + $0x98] sm:$0xf]
        %v416 = vld [vmem:[%s1 + $0x9c] sm:$0xf]
        %v417 = vld [vmem:[%s1 + $0xa0] sm:$0xf]
        %v418 = vld [vmem:[%s1 + $0xa4] sm:$0xf]
        %v419 = vld [vmem:[%s1 + $0xa8] sm:$0xf]
        %v420 = vld [vmem:[%s1 + $0xac] sm:$0xf]
        %v421 = vld [vmem:[%s1 + $0xb0] sm:$0xf]
        %v422 = vld [vmem:[%s1 + $0xb4] sm:$0xf]
        %v423 = vld [vmem:[%s1 + $0xb8] sm:$0xf]
        %v424 = vld [vmem:[%s1 + $0xbc] sm:$0xf]
        %v425 = vld [vmem:[%s1 + $0xc0] sm:$0xf]
        %v426 = vld [vmem:[%s1 + $0xc4] sm:$0xf]
        %v427 = vld [vmem:[%s1 + $0xc8] sm:$0xf]
        %v428 = vld [vmem:[%s1 + $0xcc] sm:$0xf]
        %v429 = vld [vmem:[%s1 + $0xd0] sm:$0xf]
        %v430 = vld [vmem:[%s1 + $0xd4] sm:$0xf]
        %v431 = vld [vmem:[%s1 + $0xd8] sm:$0xf]
        %v432 = vld [vmem:[%s1 + $0xdc] sm:$0xf]
        %v433 = vld [vmem:[%s1 + $0xe0] sm:$0xf]
        %v434 = vld [vmem:[%s1 + $0xe4] sm:$0xf]
        %v435 = vld [vmem:[%s1 + $0xe8] sm:$0xf]
        %v436 = vld [vmem:[%s1 + $0xec] sm:$0xf]
        %v437 = vld [vmem:[%s1 + $0xf0] sm:$0xf]
        %v438 = vld [vmem:[%s1 + $0xf4] sm:$0xf]
        %v439 = vld [vmem:[%s1 + $0xf8] sm:$0xf]
        %v440 = vld [vmem:[%s1 + $0xfc] sm:$0xf]
        %v441 = vld [vmem:[%s1 + $0x100] sm:$0xf]
        %v442 = vld [vmem:[%s1 + $0x104] sm:$0xf]
        %v443 = vld [vmem:[%s1 + $0x108] sm:$0xf]
        %v444 = vld [vmem:[%s1 + $0x10c] sm:$0xf]
        %v445 = vld [vmem:[%s1 + $0x110] sm:$0xf]
        %v446 = vld [vmem:[%s1 + $0x114] sm:$0xf]
        %v447 = vld [vmem:[%s1 + $0x118] sm:$0xf]
        %v448 = vld [vmem:[%s1 + $0x11c] sm:$0xf]
        %v449 = vld [vmem:[%s1 + $0x120] sm:$0xf]
        %v450 = vld [vmem:[%s1 + $0x124] sm:$0xf]
        %v451 = vld [vmem:[%s1 + $0x128] sm:$0xf]
        %v452 = vld [vmem:[%s1 + $0x12c] sm:$0xf]
        %v453 = vld [vmem:[%s1 + $0x130] sm:$0xf]
        %v454 = vld [vmem:[%s1 + $0x134] sm:$0xf]
        %v455 = vld [vmem:[%s1 + $0x138] sm:$0xf]
        %v456 = vld [vmem:[%s1 + $0x13c] sm:$0xf]
        %v457 = vld [vmem:[%s1 + $0x140] sm:$0xf]
        %v458 = vld [vmem:[%s1 + $0x144] sm:$0xf]
        %v459 = vld [vmem:[%s1 + $0x148] sm:$0xf]
        %v460 = vld [vmem:[%s1 + $0x14c] sm:$0xf]
        %v461 = vld [vmem:[%s1 + $0x150] sm:$0xf]
        %v462 = vld [vmem:[%s1 + $0x154] sm:$0xf]
        %v463 = vld [vmem:[%s1 + $0x158] sm:$0xf]
        %v464 = vld [vmem:[%s1 + $0x15c] sm:$0xf]
        %v465 = vld [vmem:[%s1 + $0x160] sm:$0xf]
        %v466 = vld [vmem:[%s1 + $0x164] sm:$0xf]
        %v467 = vld [vmem:[%s1 + $0x168] sm:$0xf]
        %v468 = vld [vmem:[%s1 + $0x16c] sm:$0xf]
        %v469 = vld [vmem:[%s1 + $0x170] sm:$0xf]
        %v470 = vld [vmem:[%s1 + $0x174] sm:$0xf]
        %v471 = vld [vmem:[%s1 + $0x178] sm:$0xf]
        %v472 = vld [vmem:[%s1 + $0x17c] sm:$0xf]
        %v473 = vld [vmem:[%s1 + $0x180] sm:$0xf]
        %v474 = vld [vmem:[%s1 + $0x184] sm:$0xf]
        %v475 = vld [vmem:[%s1 + $0x188] sm:$0xf]
        %v476 = vld [vmem:[%s1 + $0x18c] sm:$0xf]
        %v477 = vld [vmem:[%s1 + $0x190] sm:$0xf]
        %v478 = vld [vmem:[%s1 + $0x194] sm:$0xf]
        %v479 = vld [vmem:[%s1 + $0x198] sm:$0xf]
        %v480 = vld [vmem:[%s1 + $0x19c] sm:$0xf]
        %v481 = vld [vmem:[%s1 + $0x1a0] sm:$0xf]
        %v482 = vld [vmem:[%s1 + $0x1a4] sm:$0xf]
        %v483 = vld [vmem:[%s1 + $0x1a8] sm:$0xf]
        %v484 = vld [vmem:[%s1 + $0x1ac] sm:$0xf]
        %v485 = vld [vmem:[%s1 + $0x1b0] sm:$0xf]
        %v486 = vld [vmem:[%s1 + $0x1b4] sm:$0xf]
        %v487 = vld [vmem:[%s1 + $0x1b8] sm:$0xf]
        %v488 = vld [vmem:[%s1 + $0x1bc] sm:$0xf]
        %v489 = vld [vmem:[%s1 + $0x1c0] sm:$0xf]
        %v490 = vld [vmem:[%s1 + $0x1c4] sm:$0xf]
        %v491 = vld [vmem:[%s1 + $0x1c8] sm:$0xf]
        %v492 = vld [vmem:[%s1 + $0x1cc] sm:$0xf]
        %v493 = vld [vmem:[%s1 + $0x1d0] sm:$0xf]
        %v494 = vld [vmem:[%s1 + $0x1d4] sm:$0xf]
        %v495 = vld [vmem:[%s1 + $0x1d8] sm:$0xf]
        %v496 = vld [vmem:[%s1 + $0x1dc] sm:$0xf]
        %v497 = vld [vmem:[%s1 + $0x1e0] sm:$0xf]
        %v498 = vld [vmem:[%s1 + $0x1e4] sm:$0xf]
        %v499 = vld [vmem:[%s1 + $0x1e8] sm:$0xf]
        %v500 = vld [vmem:[%s1 + $0x1ec] sm:$0xf]
        %v501 = vld [vmem:[%s1 + $0x1f0] sm:$0xf]
        %v502 = vld [vmem:[%s1 + $0x1f4] sm:$0xf]
        %v503 = vld [vmem:[%s1 + $0x1f8] sm:$0xf]
        %v504 = vld [vmem:[%s1 + $0x1fc] sm:$0xf]
        %v505 = vld [vmem:[%s1 + $0x200] sm:$0xf]
        %v506 = vld [vmem:[%s1 + $0x204] sm:$0xf]
        %v507 = vld [vmem:[%s1 + $0x208] sm:$0xf]
        %v508 = vld [vmem:[%s1 + $0x20c] sm:$0xf]
        %v509 = vld [vmem:[%s1 + $0x210] sm:$0xf]
        %v510 = vld [vmem:[%s1 + $0x214] sm:$0xf]
        %v511 = vld [vmem:[%s1 + $0x218] sm:$0xf]
        %v512 = vld [vmem:[%s1 + $0x21c] sm:$0xf]
        %v513 = vld [vmem:[%s1 + $0x220] sm:$0xf]
        %v514 = vld [vmem:[%s1 + $0x224] sm:$0xf]
        %v515 = vld [vmem:[%s1 + $0x228] sm:$0xf]
        %v516 = vld [vmem:[%s1 + $0x22c] sm:$0xf]
        %v517 = vld [vmem:[%s1 + $0x230] sm:$0xf]
        %v518 = vld [vmem:[%s1 + $0x234] sm:$0xf]
        %v519 = vld [vmem:[%s1 + $0x238] sm:$0xf]
        %v520 = vld [vmem:[%s1 + $0x23c] sm:$0xf]
        %v521 = vld [vmem:[%s1 + $0x240] sm:$0xf]
        %v522 = vld [vmem:[%s1 + $0x244] sm:$0xf]
        %v523 = vld [vmem:[%s1 + $0x248] sm:$0xf]
        %v524 = vld [vmem:[%s1 + $0x24c] sm:$0xf]
        %v525 = vld [vmem:[%s1 + $0x250] sm:$0xf]
        %v526 = vld [vmem:[%s1 + $0x254] sm:$0xf]
        %v527 = vld [vmem:[%s1 + $0x258] sm:$0xf]
        %v528 = vld [vmem:[%s1 + $0x25c] sm:$0xf]
        %v529 = vld [vmem:[%s1 + $0x260] sm:$0xf]
        %v530 = vld [vmem:[%s1 + $0x264] sm:$0xf]
        %v531 = vld [vmem:[%s1 + $0x268] sm:$0xf]
        %v532 = vld [vmem:[%s1 + $0x26c] sm:$0xf]
        %v533 = vld [vmem:[%s1 + $0x270] sm:$0xf]
        %v534 = vld [vmem:[%s1 + $0x274] sm:$0xf]
        %v535 = vld [vmem:[%s1 + $0x278] sm:$0xf]
        %v536 = vld [vmem:[%s1 + $0x27c] sm:$0xf]
        %v537 = vld [vmem:[%s2] sm:$0xff]
        %v538 = vld [vmem:[%s2 + $0x8] sm:$0xff]
        %v539 = vld [vmem:[%s2 + $0x10] sm:$0xff]
        %v540 = vld [vmem:[%s2 + $0x18] sm:$0xff]
        %v541 = vld [vmem:[%s2 + $0x20] sm:$0xff]
        %v542 = vld [vmem:[%s2 + $0x28] sm:$0xff]
        %v543 = vld [vmem:[%s2 + $0x30] sm:$0xff]
        %v544 = vld [vmem:[%s2 + $0x38] sm:$0xff]
        %v545 = vld [vmem:[%s2 + $0x40] sm:$0xff]
        %v546 = vld [vmem:[%s2 + $0x48] sm:$0xff]
        %v547 = vld [vmem:[%s2 + $0x50] sm:$0xff]
        %v548 = vld [vmem:[%s2 + $0x58] sm:$0xff]
        %v549 = vld [vmem:[%s2 + $0x60] sm:$0xff]
        %v550 = vld [vmem:[%s2 + $0x68] sm:$0xff]
        %v551 = vld [vmem:[%s2 + $0x70] sm:$0xff]
        %v552 = vld [vmem:[%s2 + $0x78] sm:$0xff]
        %v553 = vld [vmem:[%s2 + $0x80] sm:$0xff]
        %v554 = vld [vmem:[%s2 + $0x88] sm:$0xff]
        %v555 = vld [vmem:[%s2 + $0x90] sm:$0xff]
        %v556 = vld [vmem:[%s2 + $0x98] sm:$0xff]
        %v557 = vld [vmem:[%s2 + $0xa0] sm:$0xff]
        %v558 = vld [vmem:[%s2 + $0xa8] sm:$0xff]
        %v559 = vld [vmem:[%s2 + $0xb0] sm:$0xff]
        %v560 = vld [vmem:[%s2 + $0xb8] sm:$0xff]
        %v561 = vld [vmem:[%s2 + $0xc0] sm:$0xff]
        %v562 = vld [vmem:[%s2 + $0xc8] sm:$0xff]
        %v563 = vld [vmem:[%s2 + $0xd0] sm:$0xff]
        %v564 = vld [vmem:[%s2 + $0xd8] sm:$0xff]
        %v565 = vld [vmem:[%s2 + $0xe0] sm:$0xff]
        %v566 = vld [vmem:[%s2 + $0xe8] sm:$0xff]
        %v567 = vld [vmem:[%s2 + $0xf0] sm:$0xff]
        %v568 = vld [vmem:[%s2 + $0xf8] sm:$0xff]
        %v569 = vld [vmem:[%s2 + $0x100] sm:$0xff]
        %v570 = vld [vmem:[%s2 + $0x108] sm:$0xff]
        %v571 = vld [vmem:[%s2 + $0x110] sm:$0xff]
        %v572 = vld [vmem:[%s2 + $0x118] sm:$0xff]
        %v573 = vld [vmem:[%s2 + $0x120] sm:$0xff]
        %v574 = vld [vmem:[%s2 + $0x128] sm:$0xff]
        %v575 = vld [vmem:[%s2 + $0x130] sm:$0xff]
        %v576 = vld [vmem:[%s2 + $0x138] sm:$0xff]
        %v577 = vld [vmem:[%s2 + $0x140] sm:$0xff]
        %v578 = vld [vmem:[%s2 + $0x148] sm:$0xff]
        %v579 = vld [vmem:[%s2 + $0x150] sm:$0xff]
        %v580 = vld [vmem:[%s2 + $0x158] sm:$0xff]
        %v581 = vld [vmem:[%s2 + $0x160] sm:$0xff]
        %v582 = vld [vmem:[%s2 + $0x168] sm:$0xff]
        %v583 = vld [vmem:[%s2 + $0x170] sm:$0xff]
        %v584 = vld [vmem:[%s2 + $0x178] sm:$0xff]
        %v585 = vld [vmem:[%s2 + $0x180] sm:$0xff]
        %v586 = vld [vmem:[%s2 + $0x188] sm:$0xff]
        %v587 = vld [vmem:[%s2 + $0x190] sm:$0xff]
        %v588 = vld [vmem:[%s2 + $0x198] sm:$0xff]
        %v589 = vld [vmem:[%s2 + $0x1a0] sm:$0xff]
        %v590 = vld [vmem:[%s2 + $0x1a8] sm:$0xff]
        %v591 = vld [vmem:[%s2 + $0x1b0] sm:$0xff]
        %v592 = vld [vmem:[%s2 + $0x1b8] sm:$0xff]
        %v593 = vld [vmem:[%s2 + $0x1c0] sm:$0xff]
        %v594 = vld [vmem:[%s2 + $0x1c8] sm:$0xff]
        %v595 = vld [vmem:[%s2 + $0x1d0] sm:$0xff]
        %v596 = vld [vmem:[%s2 + $0x1d8] sm:$0xff]
        %v597 = vld [vmem:[%s2 + $0x1e0] sm:$0xff]
        %v598 = vld [vmem:[%s2 + $0x1e8] sm:$0xff]
        %v599 = vld [vmem:[%s2 + $0x1f0] sm:$0xff]
        %v600 = vld [vmem:[%s2 + $0x1f8] sm:$0xff]
        %v601 = vld [vmem:[%s2 + $0x200] sm:$0xff]
        %v602 = vld [vmem:[%s2 + $0x208] sm:$0xff]
        %v603 = vld [vmem:[%s2 + $0x210] sm:$0xff]
        %v604 = vld [vmem:[%s2 + $0x218] sm:$0xff]
        %v605 = vld [vmem:[%s2 + $0x220] sm:$0xff]
        %v606 = vld [vmem:[%s2 + $0x228] sm:$0xff]
        %v607 = vld [vmem:[%s2 + $0x230] sm:$0xff]
        %v608 = vld [vmem:[%s2 + $0x238] sm:$0xff]
        %v609 = vld [vmem:[%s2 + $0x240] sm:$0xff]
        %v610 = vld [vmem:[%s2 + $0x248] sm:$0xff]
        %v611 = vld [vmem:[%s2 + $0x250] sm:$0xff]
        %v612 = vld [vmem:[%s2 + $0x258] sm:$0xff]
        %v613 = vld [vmem:[%s2 + $0x260] sm:$0xff]
        %v614 = vld [vmem:[%s2 + $0x268] sm:$0xff]
        %v615 = vld [vmem:[%s2 + $0x270] sm:$0xff]
        %v616 = vld [vmem:[%s2 + $0x278] sm:$0xff]
        %v617 = vld [vmem:[%s2 + $0x280] sm:$0xff]
        %v618 = vld [vmem:[%s2 + $0x288] sm:$0xff]
        %v619 = vld [vmem:[%s2 + $0x290] sm:$0xff]
        %v620 = vld [vmem:[%s2 + $0x298] sm:$0xff]
        %v621 = vld [vmem:[%s2 + $0x2a0] sm:$0xff]
        %v622 = vld [vmem:[%s2 + $0x2a8] sm:$0xff]
        %v623 = vld [vmem:[%s2 + $0x2b0] sm:$0xff]
        %v624 = vld [vmem:[%s2 + $0x2b8] sm:$0xff]
        %v625 = vld [vmem:[%s2 + $0x2c0] sm:$0xff]
        %v626 = vld [vmem:[%s2 + $0x2c8] sm:$0xff]
        %v627 = vld [vmem:[%s2 + $0x2d0] sm:$0xff]
        %v628 = vld [vmem:[%s2 + $0x2d8] sm:$0xff]
        %v629 = vld [vmem:[%s2 + $0x2e0] sm:$0xff]
        %v630 = vld [vmem:[%s2 + $0x2e8] sm:$0xff]
        %v631 = vld [vmem:[%s2 + $0x2f0] sm:$0xff]
        %v632 = vld [vmem:[%s2 + $0x2f8] sm:$0xff]
        %v633 = vld [vmem:[%s2 + $0x300] sm:$0xff]
        %v634 = vld [vmem:[%s2 + $0x308] sm:$0xff]
        %v635 = vld [vmem:[%s2 + $0x310] sm:$0xff]
        %v636 = vld [vmem:[%s2 + $0x318] sm:$0xff]
        %v637 = vld [vmem:[%s2 + $0x320] sm:$0xff]
        %v638 = vld [vmem:[%s2 + $0x328] sm:$0xff]
        %v639 = vld [vmem:[%s2 + $0x330] sm:$0xff]
        %v640 = vld [vmem:[%s2 + $0x338] sm:$0xff]
        %v641 = vld [vmem:[%s2 + $0x340] sm:$0xff]
        %v642 = vld [vmem:[%s2 + $0x348] sm:$0xff]
        %v643 = vld [vmem:[%s2 + $0x350] sm:$0xff]
        %v644 = vld [vmem:[%s2 + $0x358] sm:$0xff]
        %v645 = vld [vmem:[%s2 + $0x360] sm:$0xff]
        %v646 = vld [vmem:[%s2 + $0x368] sm:$0xff]
        %v647 = vld [vmem:[%s2 + $0x370] sm:$0xff]
        %v648 = vld [vmem:[%s2 + $0x378] sm:$0xff]
        %v649 = vld [vmem:[%s2 + $0x380] sm:$0xff]
        %v650 = vld [vmem:[%s2 + $0x388] sm:$0xff]
        %v651 = vld [vmem:[%s2 + $0x390] sm:$0xff]
        %v652 = vld [vmem:[%s2 + $0x398] sm:$0xff]
        %v653 = vld [vmem:[%s2 + $0x3a0] sm:$0xff]
        %v654 = vld [vmem:[%s2 + $0x3a8] sm:$0xff]
        %v655 = vld [vmem:[%s2 + $0x3b0] sm:$0xff]
        %v656 = vld [vmem:[%s2 + $0x3b8] sm:$0xff]
        %v657 = vld [vmem:[%s2 + $0x3c0] sm:$0xff]
        %v658 = vld [vmem:[%s2 + $0x3c8] sm:$0xff]
        %v659 = vld [vmem:[%s2 + $0x3d0] sm:$0xff]
        %v660 = vld [vmem:[%s2 + $0x3d8] sm:$0xff]
        %v661 = vld [vmem:[%s2 + $0x3e0] sm:$0xff]
        %v662 = vld [vmem:[%s2 + $0x3e8] sm:$0xff]
        %v663 = vld [vmem:[%s2 + $0x3f0] sm:$0xff]
        %v664 = vld [vmem:[%s2 + $0x3f8] sm:$0xff]
        %v665 = vld [vmem:[%s2 + $0x400] sm:$0xff]
        %v666 = vld [vmem:[%s2 + $0x408] sm:$0xff]
        %v667 = vld [vmem:[%s2 + $0x410] sm:$0xff]
        %v668 = vld [vmem:[%s2 + $0x418] sm:$0xff]
        %v669 = vld [vmem:[%s2 + $0x420] sm:$0xff]
        %v670 = vld [vmem:[%s2 + $0x428] sm:$0xff]
        %v671 = vld [vmem:[%s2 + $0x430] sm:$0xff]
        %v672 = vld [vmem:[%s2 + $0x438] sm:$0xff]
        %v673 = vld [vmem:[%s2 + $0x440] sm:$0xff]
        %v674 = vld [vmem:[%s2 + $0x448] sm:$0xff]
        %v675 = vld [vmem:[%s2 + $0x450] sm:$0xff]
        %v676 = vld [vmem:[%s2 + $0x458] sm:$0xff]
        %v677 = vld [vmem:[%s2 + $0x460] sm:$0xff]
        %v678 = vld [vmem:[%s2 + $0x468] sm:$0xff]
        %v679 = vld [vmem:[%s2 + $0x470] sm:$0xff]
        %v680 = vld [vmem:[%s2 + $0x478] sm:$0xff]
        %v681 = vld [vmem:[%s2 + $0x480] sm:$0xff]
        %v682 = vld [vmem:[%s2 + $0x488] sm:$0xff]
        %v683 = vld [vmem:[%s2 + $0x490] sm:$0xff]
        %v684 = vld [vmem:[%s2 + $0x498] sm:$0xff]
        %v685 = vld [vmem:[%s2 + $0x4a0] sm:$0xff]
        %v686 = vld [vmem:[%s2 + $0x4a8] sm:$0xff]
        %v687 = vld [vmem:[%s2 + $0x4b0] sm:$0xff]
        %v688 = vld [vmem:[%s2 + $0x4b8] sm:$0xff]
        %v689 = vld [vmem:[%s2 + $0x4c0] sm:$0xff]
        %v690 = vld [vmem:[%s2 + $0x4c8] sm:$0xff]
        %v691 = vld [vmem:[%s2 + $0x4d0] sm:$0xff]
        %v692 = vld [vmem:[%s2 + $0x4d8] sm:$0xff]
        %v693 = vld [vmem:[%s2 + $0x4e0] sm:$0xff]
        %v694 = vld [vmem:[%s2 + $0x4e8] sm:$0xff]
        %v695 = vld [vmem:[%s2 + $0x4f0] sm:$0xff]
        %v696 = vld [vmem:[%s2 + $0x4f8] sm:$0xff]
        %698 = vset.pattern.permute.xlu0 0
        %699 = vperm.xlu0 %698, %v537
        %v700 = vpop.permute.xlu0 %699
        %703 = vset.pattern.permute.xlu0 0
        %704 = vperm.xlu0 %703, %v538
        %v705 = vpop.permute.xlu0 %704
        %708 = vset.pattern.permute.xlu0 0
        %709 = vperm.xlu0 %708, %v539
        %v710 = vpop.permute.xlu0 %709
        %713 = vset.pattern.permute.xlu0 0
        %714 = vperm.xlu0 %713, %v540
        %v715 = vpop.permute.xlu0 %714
        %718 = vset.pattern.permute.xlu0 0
        %719 = vperm.xlu0 %718, %v541
        %v720 = vpop.permute.xlu0 %719
        %723 = vset.pattern.permute.xlu0 0
        %724 = vperm.xlu0 %723, %v542
        %v725 = vpop.permute.xlu0 %724
        %728 = vset.pattern.permute.xlu0 0
        %729 = vperm.xlu0 %728, %v543
        %v730 = vpop.permute.xlu0 %729
        %733 = vset.pattern.permute.xlu0 0
        %734 = vperm.xlu0 %733, %v544
        %v735 = vpop.permute.xlu0 %734
        %738 = vset.pattern.permute.xlu0 0
        %739 = vperm.xlu0 %738, %v545
        %v740 = vpop.permute.xlu0 %739
        %743 = vset.pattern.permute.xlu0 0
        %744 = vperm.xlu0 %743, %v546
        %v745 = vpop.permute.xlu0 %744
        %748 = vset.pattern.permute.xlu0 0
        %749 = vperm.xlu0 %748, %v547
        %v750 = vpop.permute.xlu0 %749
        %753 = vset.pattern.permute.xlu0 0
        %754 = vperm.xlu0 %753, %v548
        %v755 = vpop.permute.xlu0 %754
        %758 = vset.pattern.permute.xlu0 0
        %759 = vperm.xlu0 %758, %v549
        %v760 = vpop.permute.xlu0 %759
        %763 = vset.pattern.permute.xlu0 0
        %764 = vperm.xlu0 %763, %v550
        %v765 = vpop.permute.xlu0 %764
        %768 = vset.pattern.permute.xlu0 0
        %769 = vperm.xlu0 %768, %v551
        %v770 = vpop.permute.xlu0 %769
        %773 = vset.pattern.permute.xlu0 0
        %774 = vperm.xlu0 %773, %v552
        %v775 = vpop.permute.xlu0 %774
        %778 = vset.pattern.permute.xlu0 0
        %779 = vperm.xlu0 %778, %v553
        %v780 = vpop.permute.xlu0 %779
        %783 = vset.pattern.permute.xlu0 0
        %784 = vperm.xlu0 %783, %v554
        %v785 = vpop.permute.xlu0 %784
        %788 = vset.pattern.permute.xlu0 0
        %789 = vperm.xlu0 %788, %v555
        %v790 = vpop.permute.xlu0 %789
        %793 = vset.pattern.permute.xlu0 0
        %794 = vperm.xlu0 %793, %v556
        %v795 = vpop.permute.xlu0 %794
        %798 = vset.pattern.permute.xlu0 0
        %799 = vperm.xlu0 %798, %v557
        %v800 = vpop.permute.xlu0 %799
        %803 = vset.pattern.permute.xlu0 0
        %804 = vperm.xlu0 %803, %v558
        %v805 = vpop.permute.xlu0 %804
        %808 = vset.pattern.permute.xlu0 0
        %809 = vperm.xlu0 %808, %v559
        %v810 = vpop.permute.xlu0 %809
        %813 = vset.pattern.permute.xlu0 0
        %814 = vperm.xlu0 %813, %v560
        %v815 = vpop.permute.xlu0 %814
        %818 = vset.pattern.permute.xlu0 0
        %819 = vperm.xlu0 %818, %v561
        %v820 = vpop.permute.xlu0 %819
        %823 = vset.pattern.permute.xlu0 0
        %824 = vperm.xlu0 %823, %v562
        %v825 = vpop.permute.xlu0 %824
        %828 = vset.pattern.permute.xlu0 0
        %829 = vperm.xlu0 %828, %v563
        %v830 = vpop.permute.xlu0 %829
        %833 = vset.pattern.permute.xlu0 0
        %834 = vperm.xlu0 %833, %v564
        %v835 = vpop.permute.xlu0 %834
        %838 = vset.pattern.permute.xlu0 0
        %839 = vperm.xlu0 %838, %v565
        %v840 = vpop.permute.xlu0 %839
        %843 = vset.pattern.permute.xlu0 0
        %844 = vperm.xlu0 %843, %v566
        %v845 = vpop.permute.xlu0 %844
        %848 = vset.pattern.permute.xlu0 0
        %849 = vperm.xlu0 %848, %v567
        %v850 = vpop.permute.xlu0 %849
        %853 = vset.pattern.permute.xlu0 0
        %854 = vperm.xlu0 %853, %v568
        %v855 = vpop.permute.xlu0 %854
        %858 = vset.pattern.permute.xlu0 0
        %859 = vperm.xlu0 %858, %v569
        %v860 = vpop.permute.xlu0 %859
        %863 = vset.pattern.permute.xlu0 0
        %864 = vperm.xlu0 %863, %v570
        %v865 = vpop.permute.xlu0 %864
        %868 = vset.pattern.permute.xlu0 0
        %869 = vperm.xlu0 %868, %v571
        %v870 = vpop.permute.xlu0 %869
        %873 = vset.pattern.permute.xlu0 0
        %874 = vperm.xlu0 %873, %v572
        %v875 = vpop.permute.xlu0 %874
        %878 = vset.pattern.permute.xlu0 0
        %879 = vperm.xlu0 %878, %v573
        %v880 = vpop.permute.xlu0 %879
        %883 = vset.pattern.permute.xlu0 0
        %884 = vperm.xlu0 %883, %v574
        %v885 = vpop.permute.xlu0 %884
        %888 = vset.pattern.permute.xlu0 0
        %889 = vperm.xlu0 %888, %v575
        %v890 = vpop.permute.xlu0 %889
        %893 = vset.pattern.permute.xlu0 0
        %894 = vperm.xlu0 %893, %v576
        %v895 = vpop.permute.xlu0 %894
        %898 = vset.pattern.permute.xlu0 0
        %899 = vperm.xlu0 %898, %v577
        %v900 = vpop.permute.xlu0 %899
        %903 = vset.pattern.permute.xlu0 0
        %904 = vperm.xlu0 %903, %v578
        %v905 = vpop.permute.xlu0 %904
        %908 = vset.pattern.permute.xlu0 0
        %909 = vperm.xlu0 %908, %v579
        %v910 = vpop.permute.xlu0 %909
        %913 = vset.pattern.permute.xlu0 0
        %914 = vperm.xlu0 %913, %v580
        %v915 = vpop.permute.xlu0 %914
        %918 = vset.pattern.permute.xlu0 0
        %919 = vperm.xlu0 %918, %v581
        %v920 = vpop.permute.xlu0 %919
        %923 = vset.pattern.permute.xlu0 0
        %924 = vperm.xlu0 %923, %v582
        %v925 = vpop.permute.xlu0 %924
        %928 = vset.pattern.permute.xlu0 0
        %929 = vperm.xlu0 %928, %v583
        %v930 = vpop.permute.xlu0 %929
        %933 = vset.pattern.permute.xlu0 0
        %934 = vperm.xlu0 %933, %v584
        %v935 = vpop.permute.xlu0 %934
        %938 = vset.pattern.permute.xlu0 0
        %939 = vperm.xlu0 %938, %v585
        %v940 = vpop.permute.xlu0 %939
        %943 = vset.pattern.permute.xlu0 0
        %944 = vperm.xlu0 %943, %v586
        %v945 = vpop.permute.xlu0 %944
        %948 = vset.pattern.permute.xlu0 0
        %949 = vperm.xlu0 %948, %v587
        %v950 = vpop.permute.xlu0 %949
        %953 = vset.pattern.permute.xlu0 0
        %954 = vperm.xlu0 %953, %v588
        %v955 = vpop.permute.xlu0 %954
        %958 = vset.pattern.permute.xlu0 0
        %959 = vperm.xlu0 %958, %v589
        %v960 = vpop.permute.xlu0 %959
        %963 = vset.pattern.permute.xlu0 0
        %964 = vperm.xlu0 %963, %v590
        %v965 = vpop.permute.xlu0 %964
        %968 = vset.pattern.permute.xlu0 0
        %969 = vperm.xlu0 %968, %v591
        %v970 = vpop.permute.xlu0 %969
        %973 = vset.pattern.permute.xlu0 0
        %974 = vperm.xlu0 %973, %v592
        %v975 = vpop.permute.xlu0 %974
        %978 = vset.pattern.permute.xlu0 0
        %979 = vperm.xlu0 %978, %v593
        %v980 = vpop.permute.xlu0 %979
        %983 = vset.pattern.permute.xlu0 0
        %984 = vperm.xlu0 %983, %v594
        %v985 = vpop.permute.xlu0 %984
        %988 = vset.pattern.permute.xlu0 0
        %989 = vperm.xlu0 %988, %v595
        %v990 = vpop.permute.xlu0 %989
        %993 = vset.pattern.permute.xlu0 0
        %994 = vperm.xlu0 %993, %v596
        %v995 = vpop.permute.xlu0 %994
        %998 = vset.pattern.permute.xlu0 0
        %999 = vperm.xlu0 %998, %v597
        %v1000 = vpop.permute.xlu0 %999
        %1003 = vset.pattern.permute.xlu0 0
        %1004 = vperm.xlu0 %1003, %v598
        %v1005 = vpop.permute.xlu0 %1004
        %1008 = vset.pattern.permute.xlu0 0
        %1009 = vperm.xlu0 %1008, %v599
        %v1010 = vpop.permute.xlu0 %1009
        %1013 = vset.pattern.permute.xlu0 0
        %1014 = vperm.xlu0 %1013, %v600
        %v1015 = vpop.permute.xlu0 %1014
        %1018 = vset.pattern.permute.xlu0 0
        %1019 = vperm.xlu0 %1018, %v601
        %v1020 = vpop.permute.xlu0 %1019
        %1023 = vset.pattern.permute.xlu0 0
        %1024 = vperm.xlu0 %1023, %v602
        %v1025 = vpop.permute.xlu0 %1024
        %1028 = vset.pattern.permute.xlu0 0
        %1029 = vperm.xlu0 %1028, %v603
        %v1030 = vpop.permute.xlu0 %1029
        %1033 = vset.pattern.permute.xlu0 0
        %1034 = vperm.xlu0 %1033, %v604
        %v1035 = vpop.permute.xlu0 %1034
        %1038 = vset.pattern.permute.xlu0 0
        %1039 = vperm.xlu0 %1038, %v605
        %v1040 = vpop.permute.xlu0 %1039
        %1043 = vset.pattern.permute.xlu0 0
        %1044 = vperm.xlu0 %1043, %v606
        %v1045 = vpop.permute.xlu0 %1044
        %1048 = vset.pattern.permute.xlu0 0
        %1049 = vperm.xlu0 %1048, %v607
        %v1050 = vpop.permute.xlu0 %1049
        %1053 = vset.pattern.permute.xlu0 0
        %1054 = vperm.xlu0 %1053, %v608
        %v1055 = vpop.permute.xlu0 %1054
        %1058 = vset.pattern.permute.xlu0 0
        %1059 = vperm.xlu0 %1058, %v609
        %v1060 = vpop.permute.xlu0 %1059
        %1063 = vset.pattern.permute.xlu0 0
        %1064 = vperm.xlu0 %1063, %v610
        %v1065 = vpop.permute.xlu0 %1064
        %1068 = vset.pattern.permute.xlu0 0
        %1069 = vperm.xlu0 %1068, %v611
        %v1070 = vpop.permute.xlu0 %1069
        %1073 = vset.pattern.permute.xlu0 0
        %1074 = vperm.xlu0 %1073, %v612
        %v1075 = vpop.permute.xlu0 %1074
        %1078 = vset.pattern.permute.xlu0 0
        %1079 = vperm.xlu0 %1078, %v613
        %v1080 = vpop.permute.xlu0 %1079
        %1083 = vset.pattern.permute.xlu0 0
        %1084 = vperm.xlu0 %1083, %v614
        %v1085 = vpop.permute.xlu0 %1084
        %1088 = vset.pattern.permute.xlu0 0
        %1089 = vperm.xlu0 %1088, %v615
        %v1090 = vpop.permute.xlu0 %1089
        %1093 = vset.pattern.permute.xlu0 0
        %1094 = vperm.xlu0 %1093, %v616
        %v1095 = vpop.permute.xlu0 %1094
        %1098 = vset.pattern.permute.xlu0 0
        %1099 = vperm.xlu0 %1098, %v617
        %v1100 = vpop.permute.xlu0 %1099
        %1103 = vset.pattern.permute.xlu0 0
        %1104 = vperm.xlu0 %1103, %v618
        %v1105 = vpop.permute.xlu0 %1104
        %1108 = vset.pattern.permute.xlu0 0
        %1109 = vperm.xlu0 %1108, %v619
        %v1110 = vpop.permute.xlu0 %1109
        %1113 = vset.pattern.permute.xlu0 0
        %1114 = vperm.xlu0 %1113, %v620
        %v1115 = vpop.permute.xlu0 %1114
        %1118 = vset.pattern.permute.xlu0 0
        %1119 = vperm.xlu0 %1118, %v621
        %v1120 = vpop.permute.xlu0 %1119
        %1123 = vset.pattern.permute.xlu0 0
        %1124 = vperm.xlu0 %1123, %v622
        %v1125 = vpop.permute.xlu0 %1124
        %1128 = vset.pattern.permute.xlu0 0
        %1129 = vperm.xlu0 %1128, %v623
        %v1130 = vpop.permute.xlu0 %1129
        %1133 = vset.pattern.permute.xlu0 0
        %1134 = vperm.xlu0 %1133, %v624
        %v1135 = vpop.permute.xlu0 %1134
        %1138 = vset.pattern.permute.xlu0 0
        %1139 = vperm.xlu0 %1138, %v625
        %v1140 = vpop.permute.xlu0 %1139
        %1143 = vset.pattern.permute.xlu0 0
        %1144 = vperm.xlu0 %1143, %v626
        %v1145 = vpop.permute.xlu0 %1144
        %1148 = vset.pattern.permute.xlu0 0
        %1149 = vperm.xlu0 %1148, %v627
        %v1150 = vpop.permute.xlu0 %1149
        %1153 = vset.pattern.permute.xlu0 0
        %1154 = vperm.xlu0 %1153, %v628
        %v1155 = vpop.permute.xlu0 %1154
        %1158 = vset.pattern.permute.xlu0 0
        %1159 = vperm.xlu0 %1158, %v629
        %v1160 = vpop.permute.xlu0 %1159
        %1163 = vset.pattern.permute.xlu0 0
        %1164 = vperm.xlu0 %1163, %v630
        %v1165 = vpop.permute.xlu0 %1164
        %1168 = vset.pattern.permute.xlu0 0
        %1169 = vperm.xlu0 %1168, %v631
        %v1170 = vpop.permute.xlu0 %1169
        %1173 = vset.pattern.permute.xlu0 0
        %1174 = vperm.xlu0 %1173, %v632
        %v1175 = vpop.permute.xlu0 %1174
        %1178 = vset.pattern.permute.xlu0 0
        %1179 = vperm.xlu0 %1178, %v633
        %v1180 = vpop.permute.xlu0 %1179
        %1183 = vset.pattern.permute.xlu0 0
        %1184 = vperm.xlu0 %1183, %v634
        %v1185 = vpop.permute.xlu0 %1184
        %1188 = vset.pattern.permute.xlu0 0
        %1189 = vperm.xlu0 %1188, %v635
        %v1190 = vpop.permute.xlu0 %1189
        %1193 = vset.pattern.permute.xlu0 0
        %1194 = vperm.xlu0 %1193, %v636
        %v1195 = vpop.permute.xlu0 %1194
        %1198 = vset.pattern.permute.xlu0 0
        %1199 = vperm.xlu0 %1198, %v637
        %v1200 = vpop.permute.xlu0 %1199
        %1203 = vset.pattern.permute.xlu0 0
        %1204 = vperm.xlu0 %1203, %v638
        %v1205 = vpop.permute.xlu0 %1204
        %1208 = vset.pattern.permute.xlu0 0
        %1209 = vperm.xlu0 %1208, %v639
        %v1210 = vpop.permute.xlu0 %1209
        %1213 = vset.pattern.permute.xlu0 0
        %1214 = vperm.xlu0 %1213, %v640
        %v1215 = vpop.permute.xlu0 %1214
        %1218 = vset.pattern.permute.xlu0 0
        %1219 = vperm.xlu0 %1218, %v641
        %v1220 = vpop.permute.xlu0 %1219
        %1223 = vset.pattern.permute.xlu0 0
        %1224 = vperm.xlu0 %1223, %v642
        %v1225 = vpop.permute.xlu0 %1224
        %1228 = vset.pattern.permute.xlu0 0
        %1229 = vperm.xlu0 %1228, %v643
        %v1230 = vpop.permute.xlu0 %1229
        %1233 = vset.pattern.permute.xlu0 0
        %1234 = vperm.xlu0 %1233, %v644
        %v1235 = vpop.permute.xlu0 %1234
        %1238 = vset.pattern.permute.xlu0 0
        %1239 = vperm.xlu0 %1238, %v645
        %v1240 = vpop.permute.xlu0 %1239
        %1243 = vset.pattern.permute.xlu0 0
        %1244 = vperm.xlu0 %1243, %v646
        %v1245 = vpop.permute.xlu0 %1244
        %1248 = vset.pattern.permute.xlu0 0
        %1249 = vperm.xlu0 %1248, %v647
        %v1250 = vpop.permute.xlu0 %1249
        %1253 = vset.pattern.permute.xlu0 0
        %1254 = vperm.xlu0 %1253, %v648
        %v1255 = vpop.permute.xlu0 %1254
        %1258 = vset.pattern.permute.xlu0 0
        %1259 = vperm.xlu0 %1258, %v649
        %v1260 = vpop.permute.xlu0 %1259
        %1263 = vset.pattern.permute.xlu0 0
        %1264 = vperm.xlu0 %1263, %v650
        %v1265 = vpop.permute.xlu0 %1264
        %1268 = vset.pattern.permute.xlu0 0
        %1269 = vperm.xlu0 %1268, %v651
        %v1270 = vpop.permute.xlu0 %1269
        %1273 = vset.pattern.permute.xlu0 0
        %1274 = vperm.xlu0 %1273, %v652
        %v1275 = vpop.permute.xlu0 %1274
        %1278 = vset.pattern.permute.xlu0 0
        %1279 = vperm.xlu0 %1278, %v653
        %v1280 = vpop.permute.xlu0 %1279
        %1283 = vset.pattern.permute.xlu0 0
        %1284 = vperm.xlu0 %1283, %v654
        %v1285 = vpop.permute.xlu0 %1284
        %1288 = vset.pattern.permute.xlu0 0
        %1289 = vperm.xlu0 %1288, %v655
        %v1290 = vpop.permute.xlu0 %1289
        %1293 = vset.pattern.permute.xlu0 0
        %1294 = vperm.xlu0 %1293, %v656
        %v1295 = vpop.permute.xlu0 %1294
        %1298 = vset.pattern.permute.xlu0 0
        %1299 = vperm.xlu0 %1298, %v657
        %v1300 = vpop.permute.xlu0 %1299
        %1303 = vset.pattern.permute.xlu0 0
        %1304 = vperm.xlu0 %1303, %v658
        %v1305 = vpop.permute.xlu0 %1304
        %1308 = vset.pattern.permute.xlu0 0
        %1309 = vperm.xlu0 %1308, %v659
        %v1310 = vpop.permute.xlu0 %1309
        %1313 = vset.pattern.permute.xlu0 0
        %1314 = vperm.xlu0 %1313, %v660
        %v1315 = vpop.permute.xlu0 %1314
        %1318 = vset.pattern.permute.xlu0 0
        %1319 = vperm.xlu0 %1318, %v661
        %v1320 = vpop.permute.xlu0 %1319
        %1323 = vset.pattern.permute.xlu0 0
        %1324 = vperm.xlu0 %1323, %v662
        %v1325 = vpop.permute.xlu0 %1324
        %1328 = vset.pattern.permute.xlu0 0
        %1329 = vperm.xlu0 %1328, %v663
        %v1330 = vpop.permute.xlu0 %1329
        %1333 = vset.pattern.permute.xlu0 0
        %1334 = vperm.xlu0 %1333, %v664
        %v1335 = vpop.permute.xlu0 %1334
        %1338 = vset.pattern.permute.xlu0 0
        %1339 = vperm.xlu0 %1338, %v665
        %v1340 = vpop.permute.xlu0 %1339
        %1343 = vset.pattern.permute.xlu0 0
        %1344 = vperm.xlu0 %1343, %v666
        %v1345 = vpop.permute.xlu0 %1344
        %1348 = vset.pattern.permute.xlu0 0
        %1349 = vperm.xlu0 %1348, %v667
        %v1350 = vpop.permute.xlu0 %1349
        %1353 = vset.pattern.permute.xlu0 0
        %1354 = vperm.xlu0 %1353, %v668
        %v1355 = vpop.permute.xlu0 %1354
        %1358 = vset.pattern.permute.xlu0 0
        %1359 = vperm.xlu0 %1358, %v669
        %v1360 = vpop.permute.xlu0 %1359
        %1363 = vset.pattern.permute.xlu0 0
        %1364 = vperm.xlu0 %1363, %v670
        %v1365 = vpop.permute.xlu0 %1364
        %1368 = vset.pattern.permute.xlu0 0
        %1369 = vperm.xlu0 %1368, %v671
        %v1370 = vpop.permute.xlu0 %1369
        %1373 = vset.pattern.permute.xlu0 0
        %1374 = vperm.xlu0 %1373, %v672
        %v1375 = vpop.permute.xlu0 %1374
        %1378 = vset.pattern.permute.xlu0 0
        %1379 = vperm.xlu0 %1378, %v673
        %v1380 = vpop.permute.xlu0 %1379
        %1383 = vset.pattern.permute.xlu0 0
        %1384 = vperm.xlu0 %1383, %v674
        %v1385 = vpop.permute.xlu0 %1384
        %1388 = vset.pattern.permute.xlu0 0
        %1389 = vperm.xlu0 %1388, %v675
        %v1390 = vpop.permute.xlu0 %1389
        %1393 = vset.pattern.permute.xlu0 0
        %1394 = vperm.xlu0 %1393, %v676
        %v1395 = vpop.permute.xlu0 %1394
        %1398 = vset.pattern.permute.xlu0 0
        %1399 = vperm.xlu0 %1398, %v677
        %v1400 = vpop.permute.xlu0 %1399
        %1403 = vset.pattern.permute.xlu0 0
        %1404 = vperm.xlu0 %1403, %v678
        %v1405 = vpop.permute.xlu0 %1404
        %1408 = vset.pattern.permute.xlu0 0
        %1409 = vperm.xlu0 %1408, %v679
        %v1410 = vpop.permute.xlu0 %1409
        %1413 = vset.pattern.permute.xlu0 0
        %1414 = vperm.xlu0 %1413, %v680
        %v1415 = vpop.permute.xlu0 %1414
        %1418 = vset.pattern.permute.xlu0 0
        %1419 = vperm.xlu0 %1418, %v681
        %v1420 = vpop.permute.xlu0 %1419
        %1423 = vset.pattern.permute.xlu0 0
        %1424 = vperm.xlu0 %1423, %v682
        %v1425 = vpop.permute.xlu0 %1424
        %1428 = vset.pattern.permute.xlu0 0
        %1429 = vperm.xlu0 %1428, %v683
        %v1430 = vpop.permute.xlu0 %1429
        %1433 = vset.pattern.permute.xlu0 0
        %1434 = vperm.xlu0 %1433, %v684
        %v1435 = vpop.permute.xlu0 %1434
        %1438 = vset.pattern.permute.xlu0 0
        %1439 = vperm.xlu0 %1438, %v685
        %v1440 = vpop.permute.xlu0 %1439
        %1443 = vset.pattern.permute.xlu0 0
        %1444 = vperm.xlu0 %1443, %v686
        %v1445 = vpop.permute.xlu0 %1444
        %1448 = vset.pattern.permute.xlu0 0
        %1449 = vperm.xlu0 %1448, %v687
        %v1450 = vpop.permute.xlu0 %1449
        %1453 = vset.pattern.permute.xlu0 0
        %1454 = vperm.xlu0 %1453, %v688
        %v1455 = vpop.permute.xlu0 %1454
        %1458 = vset.pattern.permute.xlu0 0
        %1459 = vperm.xlu0 %1458, %v689
        %v1460 = vpop.permute.xlu0 %1459
        %1463 = vset.pattern.permute.xlu0 0
        %1464 = vperm.xlu0 %1463, %v690
        %v1465 = vpop.permute.xlu0 %1464
        %1468 = vset.pattern.permute.xlu0 0
        %1469 = vperm.xlu0 %1468, %v691
        %v1470 = vpop.permute.xlu0 %1469
        %1473 = vset.pattern.permute.xlu0 0
        %1474 = vperm.xlu0 %1473, %v692
        %v1475 = vpop.permute.xlu0 %1474
        %1478 = vset.pattern.permute.xlu0 0
        %1479 = vperm.xlu0 %1478, %v693
        %v1480 = vpop.permute.xlu0 %1479
        %1483 = vset.pattern.permute.xlu0 0
        %1484 = vperm.xlu0 %1483, %v694
        %v1485 = vpop.permute.xlu0 %1484
        %1488 = vset.pattern.permute.xlu0 0
        %1489 = vperm.xlu0 %1488, %v695
        %v1490 = vpop.permute.xlu0 %1489
        %1493 = vset.pattern.permute.xlu0 0
        %1494 = vperm.xlu0 %1493, %v696
        %v1495 = vpop.permute.xlu0 %1494
        %v1657 = vunpack.c.l.b16 %v377
        %v1658 = vunpack.c.l.b16 %v378
        %v1659 = vunpack.c.l.b16 %v379
        %v1660 = vunpack.c.l.b16 %v380
        %v1661 = vunpack.c.l.b16 %v381
        %v1662 = vunpack.c.l.b16 %v382
        %v1663 = vunpack.c.l.b16 %v383
        %v1664 = vunpack.c.l.b16 %v384
        %v1665 = vunpack.c.l.b16 %v385
        %v1666 = vunpack.c.l.b16 %v386
        %v1667 = vunpack.c.l.b16 %v387
        %v1668 = vunpack.c.l.b16 %v388
        %v1669 = vunpack.c.l.b16 %v389
        %v1670 = vunpack.c.l.b16 %v390
        %v1671 = vunpack.c.l.b16 %v391
        %v1672 = vunpack.c.l.b16 %v392
        %v1673 = vunpack.c.l.b16 %v393
        %v1674 = vunpack.c.l.b16 %v394
        %v1675 = vunpack.c.l.b16 %v395
        %v1676 = vunpack.c.l.b16 %v396
        %v1677 = vunpack.c.l.b16 %v397
        %v1678 = vunpack.c.l.b16 %v398
        %v1679 = vunpack.c.l.b16 %v399
        %v1680 = vunpack.c.l.b16 %v400
        %v1681 = vunpack.c.l.b16 %v401
        %v1682 = vunpack.c.l.b16 %v402
        %v1683 = vunpack.c.l.b16 %v403
        %v1684 = vunpack.c.l.b16 %v404
        %v1685 = vunpack.c.l.b16 %v405
        %v1686 = vunpack.c.l.b16 %v406
        %v1687 = vunpack.c.l.b16 %v407
        %v1688 = vunpack.c.l.b16 %v408
        %v1689 = vunpack.c.l.b16 %v409
        %v1690 = vunpack.c.l.b16 %v410
        %v1691 = vunpack.c.l.b16 %v411
        %v1692 = vunpack.c.l.b16 %v412
        %v1693 = vunpack.c.l.b16 %v413
        %v1694 = vunpack.c.l.b16 %v414
        %v1695 = vunpack.c.l.b16 %v415
        %v1696 = vunpack.c.l.b16 %v416
        %v1697 = vunpack.c.l.b16 %v417
        %v1698 = vunpack.c.l.b16 %v418
        %v1699 = vunpack.c.l.b16 %v419
        %v1700 = vunpack.c.l.b16 %v420
        %v1701 = vunpack.c.l.b16 %v421
        %v1702 = vunpack.c.l.b16 %v422
        %v1703 = vunpack.c.l.b16 %v423
        %v1704 = vunpack.c.l.b16 %v424
        %v1705 = vunpack.c.l.b16 %v425
        %v1706 = vunpack.c.l.b16 %v426
        %v1707 = vunpack.c.l.b16 %v427
        %v1708 = vunpack.c.l.b16 %v428
        %v1709 = vunpack.c.l.b16 %v429
        %v1710 = vunpack.c.l.b16 %v430
        %v1711 = vunpack.c.l.b16 %v431
        %v1712 = vunpack.c.l.b16 %v432
        %v1713 = vunpack.c.l.b16 %v433
        %v1714 = vunpack.c.l.b16 %v434
        %v1715 = vunpack.c.l.b16 %v435
        %v1716 = vunpack.c.l.b16 %v436
        %v1717 = vunpack.c.l.b16 %v437
        %v1718 = vunpack.c.l.b16 %v438
        %v1719 = vunpack.c.l.b16 %v439
        %v1720 = vunpack.c.l.b16 %v440
        %v1721 = vunpack.c.l.b16 %v441
        %v1722 = vunpack.c.l.b16 %v442
        %v1723 = vunpack.c.l.b16 %v443
        %v1724 = vunpack.c.l.b16 %v444
        %v1725 = vunpack.c.l.b16 %v445
        %v1726 = vunpack.c.l.b16 %v446
        %v1727 = vunpack.c.l.b16 %v447
        %v1728 = vunpack.c.l.b16 %v448
        %v1729 = vunpack.c.l.b16 %v449
        %v1730 = vunpack.c.l.b16 %v450
        %v1731 = vunpack.c.l.b16 %v451
        %v1732 = vunpack.c.l.b16 %v452
        %v1733 = vunpack.c.l.b16 %v453
        %v1734 = vunpack.c.l.b16 %v454
        %v1735 = vunpack.c.l.b16 %v455
        %v1736 = vunpack.c.l.b16 %v456
        %v1737 = vunpack.c.l.b16 %v457
        %v1738 = vunpack.c.l.b16 %v458
        %v1739 = vunpack.c.l.b16 %v459
        %v1740 = vunpack.c.l.b16 %v460
        %v1741 = vunpack.c.l.b16 %v461
        %v1742 = vunpack.c.l.b16 %v462
        %v1743 = vunpack.c.l.b16 %v463
        %v1744 = vunpack.c.l.b16 %v464
        %v1745 = vunpack.c.l.b16 %v465
        %v1746 = vunpack.c.l.b16 %v466
        %v1747 = vunpack.c.l.b16 %v467
        %v1748 = vunpack.c.l.b16 %v468
        %v1749 = vunpack.c.l.b16 %v469
        %v1750 = vunpack.c.l.b16 %v470
        %v1751 = vunpack.c.l.b16 %v471
        %v1752 = vunpack.c.l.b16 %v472
        %v1753 = vunpack.c.l.b16 %v473
        %v1754 = vunpack.c.l.b16 %v474
        %v1755 = vunpack.c.l.b16 %v475
        %v1756 = vunpack.c.l.b16 %v476
        %v1757 = vunpack.c.l.b16 %v477
        %v1758 = vunpack.c.l.b16 %v478
        %v1759 = vunpack.c.l.b16 %v479
        %v1760 = vunpack.c.l.b16 %v480
        %v1761 = vunpack.c.l.b16 %v481
        %v1762 = vunpack.c.l.b16 %v482
        %v1763 = vunpack.c.l.b16 %v483
        %v1764 = vunpack.c.l.b16 %v484
        %v1765 = vunpack.c.l.b16 %v485
        %v1766 = vunpack.c.l.b16 %v486
        %v1767 = vunpack.c.l.b16 %v487
        %v1768 = vunpack.c.l.b16 %v488
        %v1769 = vunpack.c.l.b16 %v489
        %v1770 = vunpack.c.l.b16 %v490
        %v1771 = vunpack.c.l.b16 %v491
        %v1772 = vunpack.c.l.b16 %v492
        %v1773 = vunpack.c.l.b16 %v493
        %v1774 = vunpack.c.l.b16 %v494
        %v1775 = vunpack.c.l.b16 %v495
        %v1776 = vunpack.c.l.b16 %v496
        %v1777 = vunpack.c.l.b16 %v497
        %v1778 = vunpack.c.l.b16 %v498
        %v1779 = vunpack.c.l.b16 %v499
        %v1780 = vunpack.c.l.b16 %v500
        %v1781 = vunpack.c.l.b16 %v501
        %v1782 = vunpack.c.l.b16 %v502
        %v1783 = vunpack.c.l.b16 %v503
        %v1784 = vunpack.c.l.b16 %v504
        %v1785 = vunpack.c.l.b16 %v505
        %v1786 = vunpack.c.l.b16 %v506
        %v1787 = vunpack.c.l.b16 %v507
        %v1788 = vunpack.c.l.b16 %v508
        %v1789 = vunpack.c.l.b16 %v509
        %v1790 = vunpack.c.l.b16 %v510
        %v1791 = vunpack.c.l.b16 %v511
        %v1792 = vunpack.c.l.b16 %v512
        %v1793 = vunpack.c.l.b16 %v513
        %v1794 = vunpack.c.l.b16 %v514
        %v1795 = vunpack.c.l.b16 %v515
        %v1796 = vunpack.c.l.b16 %v516
        %v1797 = vunpack.c.l.b16 %v517
        %v1798 = vunpack.c.l.b16 %v518
        %v1799 = vunpack.c.l.b16 %v519
        %v1800 = vunpack.c.l.b16 %v520
        %v1801 = vunpack.c.l.b16 %v521
        %v1802 = vunpack.c.l.b16 %v522
        %v1803 = vunpack.c.l.b16 %v523
        %v1804 = vunpack.c.l.b16 %v524
        %v1805 = vunpack.c.l.b16 %v525
        %v1806 = vunpack.c.l.b16 %v526
        %v1807 = vunpack.c.l.b16 %v527
        %v1808 = vunpack.c.l.b16 %v528
        %v1809 = vunpack.c.l.b16 %v529
        %v1810 = vunpack.c.l.b16 %v530
        %v1811 = vunpack.c.l.b16 %v531
        %v1812 = vunpack.c.l.b16 %v532
        %v1813 = vunpack.c.l.b16 %v533
        %v1814 = vunpack.c.l.b16 %v534
        %v1815 = vunpack.c.l.b16 %v535
        %v1816 = vunpack.c.l.b16 %v536
        %v1817 = vpack.c.b16 %v1658, %v1657
        %v1818 = vpack.c.b16 %v1660, %v1659
        %v1819 = vpack.c.b16 %v1662, %v1661
        %v1820 = vpack.c.b16 %v1664, %v1663
        %v1821 = vpack.c.b16 %v1666, %v1665
        %v1822 = vpack.c.b16 %v1668, %v1667
        %v1823 = vpack.c.b16 %v1670, %v1669
        %v1824 = vpack.c.b16 %v1672, %v1671
        %v1825 = vpack.c.b16 %v1674, %v1673
        %v1826 = vpack.c.b16 %v1676, %v1675
        %v1827 = vpack.c.b16 %v1678, %v1677
        %v1828 = vpack.c.b16 %v1680, %v1679
        %v1829 = vpack.c.b16 %v1682, %v1681
        %v1830 = vpack.c.b16 %v1684, %v1683
        %v1831 = vpack.c.b16 %v1686, %v1685
        %v1832 = vpack.c.b16 %v1688, %v1687
        %v1833 = vpack.c.b16 %v1690, %v1689
        %v1834 = vpack.c.b16 %v1692, %v1691
        %v1835 = vpack.c.b16 %v1694, %v1693
        %v1836 = vpack.c.b16 %v1696, %v1695
        %v1837 = vpack.c.b16 %v1698, %v1697
        %v1838 = vpack.c.b16 %v1700, %v1699
        %v1839 = vpack.c.b16 %v1702, %v1701
        %v1840 = vpack.c.b16 %v1704, %v1703
        %v1841 = vpack.c.b16 %v1706, %v1705
        %v1842 = vpack.c.b16 %v1708, %v1707
        %v1843 = vpack.c.b16 %v1710, %v1709
        %v1844 = vpack.c.b16 %v1712, %v1711
        %v1845 = vpack.c.b16 %v1714, %v1713
        %v1846 = vpack.c.b16 %v1716, %v1715
        %v1847 = vpack.c.b16 %v1718, %v1717
        %v1848 = vpack.c.b16 %v1720, %v1719
        %v1849 = vpack.c.b16 %v1722, %v1721
        %v1850 = vpack.c.b16 %v1724, %v1723
        %v1851 = vpack.c.b16 %v1726, %v1725
        %v1852 = vpack.c.b16 %v1728, %v1727
        %v1853 = vpack.c.b16 %v1730, %v1729
        %v1854 = vpack.c.b16 %v1732, %v1731
        %v1855 = vpack.c.b16 %v1734, %v1733
        %v1856 = vpack.c.b16 %v1736, %v1735
        %v1857 = vpack.c.b16 %v1738, %v1737
        %v1858 = vpack.c.b16 %v1740, %v1739
        %v1859 = vpack.c.b16 %v1742, %v1741
        %v1860 = vpack.c.b16 %v1744, %v1743
        %v1861 = vpack.c.b16 %v1746, %v1745
        %v1862 = vpack.c.b16 %v1748, %v1747
        %v1863 = vpack.c.b16 %v1750, %v1749
        %v1864 = vpack.c.b16 %v1752, %v1751
        %v1865 = vpack.c.b16 %v1754, %v1753
        %v1866 = vpack.c.b16 %v1756, %v1755
        %v1867 = vpack.c.b16 %v1758, %v1757
        %v1868 = vpack.c.b16 %v1760, %v1759
        %v1869 = vpack.c.b16 %v1762, %v1761
        %v1870 = vpack.c.b16 %v1764, %v1763
        %v1871 = vpack.c.b16 %v1766, %v1765
        %v1872 = vpack.c.b16 %v1768, %v1767
        %v1873 = vpack.c.b16 %v1770, %v1769
        %v1874 = vpack.c.b16 %v1772, %v1771
        %v1875 = vpack.c.b16 %v1774, %v1773
        %v1876 = vpack.c.b16 %v1776, %v1775
        %v1877 = vpack.c.b16 %v1778, %v1777
        %v1878 = vpack.c.b16 %v1780, %v1779
        %v1879 = vpack.c.b16 %v1782, %v1781
        %v1880 = vpack.c.b16 %v1784, %v1783
        %v1881 = vpack.c.b16 %v1786, %v1785
        %v1882 = vpack.c.b16 %v1788, %v1787
        %v1883 = vpack.c.b16 %v1790, %v1789
        %v1884 = vpack.c.b16 %v1792, %v1791
        %v1885 = vpack.c.b16 %v1794, %v1793
        %v1886 = vpack.c.b16 %v1796, %v1795
        %v1887 = vpack.c.b16 %v1798, %v1797
        %v1888 = vpack.c.b16 %v1800, %v1799
        %v1889 = vpack.c.b16 %v1802, %v1801
        %v1890 = vpack.c.b16 %v1804, %v1803
        %v1891 = vpack.c.b16 %v1806, %v1805
        %v1892 = vpack.c.b16 %v1808, %v1807
        %v1893 = vpack.c.b16 %v1810, %v1809
        %v1894 = vpack.c.b16 %v1812, %v1811
        %v1895 = vpack.c.b16 %v1814, %v1813
        %v1896 = vpack.c.b16 %v1816, %v1815
        %vm1897 = vcmask 31744
        %v1899 = vsel %vm1897, %v1817, 0
        %v1902 = vsel %vm1897, %v1818, 0
        %v1905 = vsel %vm1897, %v1819, 0
        %v1908 = vsel %vm1897, %v1820, 0
        %v1911 = vsel %vm1897, %v1821, 0
        %v1914 = vsel %vm1897, %v1822, 0
        %v1917 = vsel %vm1897, %v1823, 0
        %v1920 = vsel %vm1897, %v1824, 0
        %v1923 = vsel %vm1897, %v1825, 0
        %v1926 = vsel %vm1897, %v1826, 0
        %v1929 = vsel %vm1897, %v1827, 0
        %v1932 = vsel %vm1897, %v1828, 0
        %v1935 = vsel %vm1897, %v1829, 0
        %v1938 = vsel %vm1897, %v1830, 0
        %v1941 = vsel %vm1897, %v1831, 0
        %v1944 = vsel %vm1897, %v1832, 0
        %v1947 = vsel %vm1897, %v1833, 0
        %v1950 = vsel %vm1897, %v1834, 0
        %v1953 = vsel %vm1897, %v1835, 0
        %v1956 = vsel %vm1897, %v1836, 0
        %v1959 = vsel %vm1897, %v1837, 0
        %v1962 = vsel %vm1897, %v1838, 0
        %v1965 = vsel %vm1897, %v1839, 0
        %v1968 = vsel %vm1897, %v1840, 0
        %v1971 = vsel %vm1897, %v1841, 0
        %v1974 = vsel %vm1897, %v1842, 0
        %v1977 = vsel %vm1897, %v1843, 0
        %v1980 = vsel %vm1897, %v1844, 0
        %v1983 = vsel %vm1897, %v1845, 0
        %v1986 = vsel %vm1897, %v1846, 0
        %v1989 = vsel %vm1897, %v1847, 0
        %v1992 = vsel %vm1897, %v1848, 0
        %v1995 = vsel %vm1897, %v1849, 0
        %v1998 = vsel %vm1897, %v1850, 0
        %v2001 = vsel %vm1897, %v1851, 0
        %v2004 = vsel %vm1897, %v1852, 0
        %v2007 = vsel %vm1897, %v1853, 0
        %v2010 = vsel %vm1897, %v1854, 0
        %v2013 = vsel %vm1897, %v1855, 0
        %v2016 = vsel %vm1897, %v1856, 0
        %v2019 = vsel %vm1897, %v1857, 0
        %v2022 = vsel %vm1897, %v1858, 0
        %v2025 = vsel %vm1897, %v1859, 0
        %v2028 = vsel %vm1897, %v1860, 0
        %v2031 = vsel %vm1897, %v1861, 0
        %v2034 = vsel %vm1897, %v1862, 0
        %v2037 = vsel %vm1897, %v1863, 0
        %v2040 = vsel %vm1897, %v1864, 0
        %v2043 = vsel %vm1897, %v1865, 0
        %v2046 = vsel %vm1897, %v1866, 0
        %v2049 = vsel %vm1897, %v1867, 0
        %v2052 = vsel %vm1897, %v1868, 0
        %v2055 = vsel %vm1897, %v1869, 0
        %v2058 = vsel %vm1897, %v1870, 0
        %v2061 = vsel %vm1897, %v1871, 0
        %v2064 = vsel %vm1897, %v1872, 0
        %v2067 = vsel %vm1897, %v1873, 0
        %v2070 = vsel %vm1897, %v1874, 0
        %v2073 = vsel %vm1897, %v1875, 0
        %v2076 = vsel %vm1897, %v1876, 0
        %v2079 = vsel %vm1897, %v1877, 0
        %v2082 = vsel %vm1897, %v1878, 0
        %v2085 = vsel %vm1897, %v1879, 0
        %v2088 = vsel %vm1897, %v1880, 0
        %v2091 = vsel %vm1897, %v1881, 0
        %v2094 = vsel %vm1897, %v1882, 0
        %v2097 = vsel %vm1897, %v1883, 0
        %v2100 = vsel %vm1897, %v1884, 0
        %v2103 = vsel %vm1897, %v1885, 0
        %v2106 = vsel %vm1897, %v1886, 0
        %v2109 = vsel %vm1897, %v1887, 0
        %v2112 = vsel %vm1897, %v1888, 0
        %v2115 = vsel %vm1897, %v1889, 0
        %v2118 = vsel %vm1897, %v1890, 0
        %v2121 = vsel %vm1897, %v1891, 0
        %v2124 = vsel %vm1897, %v1892, 0
        %v2127 = vsel %vm1897, %v1893, 0
        %v2130 = vsel %vm1897, %v1894, 0
        %v2133 = vsel %vm1897, %v1895, 0
        %v2136 = vsel %vm1897, %v1896, 0
        %vm2138 = vcmask 1041408
        %v2140 = vsel %vm2138, %v375, 0
        %v2143 = vsel %vm2138, %v376, 0
        %2145 = vmatprep.subr.bf16.mxu0 0
        %2146 = vmatpush1.bf16.msra.mxu0 0
        %2147 = vmatprep.subr.bf16.mxu0 0
        %2148 = vmatpush1.bf16.msra.mxu0 0
        %2149 = vmatprep.subr.bf16.mxu0 0
        %2150 = vmatpush1.bf16.msra.mxu0 0
        %2151 = vmatprep.subr.bf16.mxu0 0
        %2152 = vmatpush1.bf16.msra.mxu0 0
        %2153 = vmatprep.subr.bf16.mxu0 0
        %2154 = vmatpush1.bf16.msra.mxu0 0
        %2155 = vmatprep.subr.bf16.mxu0 0
        %2156 = vmatpush1.bf16.msra.mxu0 0
        %2157 = vmatprep.subr.bf16.mxu0 0
        %2158 = vmatpush1.bf16.msra.mxu0 0
        %2159 = vmatprep.subr.bf16.mxu0 %v2143
        %2160 = vmatpush1.bf16.msra.mxu0 %v2140
        %2161 = vmatprep.subr.bf16.mxu0 0
        %2162 = vmatpush2.bf16.msra.mxu0 0
        %2163 = vmatprep.subr.bf16.mxu0 0
        %2164 = vmatpush2.bf16.msra.mxu0 0
        %2165 = vmatprep.subr.bf16.mxu0 0
        %2166 = vmatpush2.bf16.msra.mxu0 0
        %2167 = vmatprep.subr.bf16.mxu0 0
        %2168 = vmatpush2.bf16.msra.mxu0 0
        %2169 = vmatprep.subr.bf16.mxu0 0
        %2170 = vmatpush2.bf16.msra.mxu0 0
        %2171 = vmatprep.subr.bf16.mxu0 0
        %2172 = vmatpush2.bf16.msra.mxu0 0
        %2173 = vmatprep.subr.bf16.mxu0 0
        %2174 = vmatpush2.bf16.msra.mxu0 0
        %2175 = vmatprep.subr.bf16.mxu0 0
        %2176 = vmatpush2.bf16.msra.mxu0 0
        %2177 = vmatprep.mubr.bf16.mxu0 0
        %2178 = vmatmul.mubr.bf16.gmra.mxu0 %v1899
        %v2179 = vpop.f32.mrf.mxu0
        %v2180 = vadd.f32 %v700, %v2179
        %v2181 = vpop.f32.mrf.mxu0
        %v2182 = vadd.f32 %v700, %v2181
        %v2183 = vpop.f32.mrf.mxu0
        %v2184 = vadd.f32 %v705, %v2183
        %v2185 = vpop.f32.mrf.mxu0
        %v2186 = vadd.f32 %v705, %v2185
        %2187 = vmatprep.mubr.bf16.mxu0 0
        %2188 = vmatmul.mubr.bf16.gmra.mxu0 %v1902
        %v2189 = vpop.f32.mrf.mxu0
        %v2190 = vadd.f32 %v710, %v2189
        %v2191 = vpop.f32.mrf.mxu0
        %v2192 = vadd.f32 %v710, %v2191
        %v2193 = vpop.f32.mrf.mxu0
        %v2194 = vadd.f32 %v715, %v2193
        %v2195 = vpop.f32.mrf.mxu0
        %v2196 = vadd.f32 %v715, %v2195
        %2197 = vmatprep.mubr.bf16.mxu0 0
        %2198 = vmatmul.mubr.bf16.gmra.mxu0 %v1905
        %v2199 = vpop.f32.mrf.mxu0
        %v2200 = vadd.f32 %v720, %v2199
        %v2201 = vpop.f32.mrf.mxu0
        %v2202 = vadd.f32 %v720, %v2201
        %v2203 = vpop.f32.mrf.mxu0
        %v2204 = vadd.f32 %v725, %v2203
        %v2205 = vpop.f32.mrf.mxu0
        %v2206 = vadd.f32 %v725, %v2205
        %2207 = vmatprep.mubr.bf16.mxu0 0
        %2208 = vmatmul.mubr.bf16.gmra.mxu0 %v1908
        %v2209 = vpop.f32.mrf.mxu0
        %v2210 = vadd.f32 %v730, %v2209
        %v2211 = vpop.f32.mrf.mxu0
        %v2212 = vadd.f32 %v730, %v2211
        %v2213 = vpop.f32.mrf.mxu0
        %v2214 = vadd.f32 %v735, %v2213
        %v2215 = vpop.f32.mrf.mxu0
        %v2216 = vadd.f32 %v735, %v2215
        %2217 = vmatprep.mubr.bf16.mxu0 0
        %2218 = vmatmul.mubr.bf16.gmra.mxu0 %v1911
        %v2219 = vpop.f32.mrf.mxu0
        %v2220 = vadd.f32 %v740, %v2219
        %v2221 = vpop.f32.mrf.mxu0
        %v2222 = vadd.f32 %v740, %v2221
        %v2223 = vpop.f32.mrf.mxu0
        %v2224 = vadd.f32 %v745, %v2223
        %v2225 = vpop.f32.mrf.mxu0
        %v2226 = vadd.f32 %v745, %v2225
        %2227 = vmatprep.mubr.bf16.mxu0 0
        %2228 = vmatmul.mubr.bf16.gmra.mxu0 %v1914
        %v2229 = vpop.f32.mrf.mxu0
        %v2230 = vadd.f32 %v750, %v2229
        %v2231 = vpop.f32.mrf.mxu0
        %v2232 = vadd.f32 %v750, %v2231
        %v2233 = vpop.f32.mrf.mxu0
        %v2234 = vadd.f32 %v755, %v2233
        %v2235 = vpop.f32.mrf.mxu0
        %v2236 = vadd.f32 %v755, %v2235
        %2237 = vmatprep.mubr.bf16.mxu0 0
        %2238 = vmatmul.mubr.bf16.gmra.mxu0 %v1917
        %v2239 = vpop.f32.mrf.mxu0
        %v2240 = vadd.f32 %v760, %v2239
        %v2241 = vpop.f32.mrf.mxu0
        %v2242 = vadd.f32 %v760, %v2241
        %v2243 = vpop.f32.mrf.mxu0
        %v2244 = vadd.f32 %v765, %v2243
        %v2245 = vpop.f32.mrf.mxu0
        %v2246 = vadd.f32 %v765, %v2245
        %2247 = vmatprep.mubr.bf16.mxu0 0
        %2248 = vmatmul.mubr.bf16.gmra.mxu0 %v1920
        %v2249 = vpop.f32.mrf.mxu0
        %v2250 = vadd.f32 %v770, %v2249
        %v2251 = vpop.f32.mrf.mxu0
        %v2252 = vadd.f32 %v770, %v2251
        %v2253 = vpop.f32.mrf.mxu0
        %v2254 = vadd.f32 %v775, %v2253
        %v2255 = vpop.f32.mrf.mxu0
        %v2256 = vadd.f32 %v775, %v2255
        %2257 = vmatprep.mubr.bf16.mxu0 0
        %2258 = vmatmul.mubr.bf16.gmra.mxu0 %v1923
        %v2259 = vpop.f32.mrf.mxu0
        %v2260 = vadd.f32 %v780, %v2259
        %v2261 = vpop.f32.mrf.mxu0
        %v2262 = vadd.f32 %v780, %v2261
        %v2263 = vpop.f32.mrf.mxu0
        %v2264 = vadd.f32 %v785, %v2263
        %v2265 = vpop.f32.mrf.mxu0
        %v2266 = vadd.f32 %v785, %v2265
        %2267 = vmatprep.mubr.bf16.mxu0 0
        %2268 = vmatmul.mubr.bf16.gmra.mxu0 %v1926
        %v2269 = vpop.f32.mrf.mxu0
        %v2270 = vadd.f32 %v790, %v2269
        %v2271 = vpop.f32.mrf.mxu0
        %v2272 = vadd.f32 %v790, %v2271
        %v2273 = vpop.f32.mrf.mxu0
        %v2274 = vadd.f32 %v795, %v2273
        %v2275 = vpop.f32.mrf.mxu0
        %v2276 = vadd.f32 %v795, %v2275
        %2277 = vmatprep.mubr.bf16.mxu0 0
        %2278 = vmatmul.mubr.bf16.gmra.mxu0 %v1929
        %v2279 = vpop.f32.mrf.mxu0
        %v2280 = vadd.f32 %v800, %v2279
        %v2281 = vpop.f32.mrf.mxu0
        %v2282 = vadd.f32 %v800, %v2281
        %v2283 = vpop.f32.mrf.mxu0
        %v2284 = vadd.f32 %v805, %v2283
        %v2285 = vpop.f32.mrf.mxu0
        %v2286 = vadd.f32 %v805, %v2285
        %2287 = vmatprep.mubr.bf16.mxu0 0
        %2288 = vmatmul.mubr.bf16.gmra.mxu0 %v1932
        %v2289 = vpop.f32.mrf.mxu0
        %v2290 = vadd.f32 %v810, %v2289
        %v2291 = vpop.f32.mrf.mxu0
        %v2292 = vadd.f32 %v810, %v2291
        %v2293 = vpop.f32.mrf.mxu0
        %v2294 = vadd.f32 %v815, %v2293
        %v2295 = vpop.f32.mrf.mxu0
        %v2296 = vadd.f32 %v815, %v2295
        %2297 = vmatprep.mubr.bf16.mxu0 0
        %2298 = vmatmul.mubr.bf16.gmra.mxu0 %v1935
        %v2299 = vpop.f32.mrf.mxu0
        %v2300 = vadd.f32 %v820, %v2299
        %v2301 = vpop.f32.mrf.mxu0
        %v2302 = vadd.f32 %v820, %v2301
        %v2303 = vpop.f32.mrf.mxu0
        %v2304 = vadd.f32 %v825, %v2303
        %v2305 = vpop.f32.mrf.mxu0
        %v2306 = vadd.f32 %v825, %v2305
        %2307 = vmatprep.mubr.bf16.mxu0 0
        %2308 = vmatmul.mubr.bf16.gmra.mxu0 %v1938
        %v2309 = vpop.f32.mrf.mxu0
        %v2310 = vadd.f32 %v830, %v2309
        %v2311 = vpop.f32.mrf.mxu0
        %v2312 = vadd.f32 %v830, %v2311
        %v2313 = vpop.f32.mrf.mxu0
        %v2314 = vadd.f32 %v835, %v2313
        %v2315 = vpop.f32.mrf.mxu0
        %v2316 = vadd.f32 %v835, %v2315
        %2317 = vmatprep.mubr.bf16.mxu0 0
        %2318 = vmatmul.mubr.bf16.gmra.mxu0 %v1941
        %v2319 = vpop.f32.mrf.mxu0
        %v2320 = vadd.f32 %v840, %v2319
        %v2321 = vpop.f32.mrf.mxu0
        %v2322 = vadd.f32 %v840, %v2321
        %v2323 = vpop.f32.mrf.mxu0
        %v2324 = vadd.f32 %v845, %v2323
        %v2325 = vpop.f32.mrf.mxu0
        %v2326 = vadd.f32 %v845, %v2325
        %2327 = vmatprep.mubr.bf16.mxu0 0
        %2328 = vmatmul.mubr.bf16.gmra.mxu0 %v1944
        %v2329 = vpop.f32.mrf.mxu0
        %v2330 = vadd.f32 %v850, %v2329
        %v2331 = vpop.f32.mrf.mxu0
        %v2332 = vadd.f32 %v850, %v2331
        %v2333 = vpop.f32.mrf.mxu0
        %v2334 = vadd.f32 %v855, %v2333
        %v2335 = vpop.f32.mrf.mxu0
        %v2336 = vadd.f32 %v855, %v2335
        %2337 = vmatprep.mubr.bf16.mxu0 0
        %2338 = vmatmul.mubr.bf16.gmra.mxu0 %v1947
        %v2339 = vpop.f32.mrf.mxu0
        %v2340 = vadd.f32 %v860, %v2339
        %v2341 = vpop.f32.mrf.mxu0
        %v2342 = vadd.f32 %v860, %v2341
        %v2343 = vpop.f32.mrf.mxu0
        %v2344 = vadd.f32 %v865, %v2343
        %v2345 = vpop.f32.mrf.mxu0
        %v2346 = vadd.f32 %v865, %v2345
        %2347 = vmatprep.mubr.bf16.mxu0 0
        %2348 = vmatmul.mubr.bf16.gmra.mxu0 %v1950
        %v2349 = vpop.f32.mrf.mxu0
        %v2350 = vadd.f32 %v870, %v2349
        %v2351 = vpop.f32.mrf.mxu0
        %v2352 = vadd.f32 %v870, %v2351
        %v2353 = vpop.f32.mrf.mxu0
        %v2354 = vadd.f32 %v875, %v2353
        %v2355 = vpop.f32.mrf.mxu0
        %v2356 = vadd.f32 %v875, %v2355
        %2357 = vmatprep.mubr.bf16.mxu0 0
        %2358 = vmatmul.mubr.bf16.gmra.mxu0 %v1953
        %v2359 = vpop.f32.mrf.mxu0
        %v2360 = vadd.f32 %v880, %v2359
        %v2361 = vpop.f32.mrf.mxu0
        %v2362 = vadd.f32 %v880, %v2361
        %v2363 = vpop.f32.mrf.mxu0
        %v2364 = vadd.f32 %v885, %v2363
        %v2365 = vpop.f32.mrf.mxu0
        %v2366 = vadd.f32 %v885, %v2365
        %2367 = vmatprep.mubr.bf16.mxu0 0
        %2368 = vmatmul.mubr.bf16.gmra.mxu0 %v1956
        %v2369 = vpop.f32.mrf.mxu0
        %v2370 = vadd.f32 %v890, %v2369
        %v2371 = vpop.f32.mrf.mxu0
        %v2372 = vadd.f32 %v890, %v2371
        %v2373 = vpop.f32.mrf.mxu0
        %v2374 = vadd.f32 %v895, %v2373
        %v2375 = vpop.f32.mrf.mxu0
        %v2376 = vadd.f32 %v895, %v2375
        %2377 = vmatprep.mubr.bf16.mxu0 0
        %2378 = vmatmul.mubr.bf16.gmra.mxu0 %v1959
        %v2379 = vpop.f32.mrf.mxu0
        %v2380 = vadd.f32 %v900, %v2379
        %v2381 = vpop.f32.mrf.mxu0
        %v2382 = vadd.f32 %v900, %v2381
        %v2383 = vpop.f32.mrf.mxu0
        %v2384 = vadd.f32 %v905, %v2383
        %v2385 = vpop.f32.mrf.mxu0
        %v2386 = vadd.f32 %v905, %v2385
        %2387 = vmatprep.mubr.bf16.mxu0 0
        %2388 = vmatmul.mubr.bf16.gmra.mxu0 %v1962
        %v2389 = vpop.f32.mrf.mxu0
        %v2390 = vadd.f32 %v910, %v2389
        %v2391 = vpop.f32.mrf.mxu0
        %v2392 = vadd.f32 %v910, %v2391
        %v2393 = vpop.f32.mrf.mxu0
        %v2394 = vadd.f32 %v915, %v2393
        %v2395 = vpop.f32.mrf.mxu0
        %v2396 = vadd.f32 %v915, %v2395
        %2397 = vmatprep.mubr.bf16.mxu0 0
        %2398 = vmatmul.mubr.bf16.gmra.mxu0 %v1965
        %v2399 = vpop.f32.mrf.mxu0
        %v2400 = vadd.f32 %v920, %v2399
        %v2401 = vpop.f32.mrf.mxu0
        %v2402 = vadd.f32 %v920, %v2401
        %v2403 = vpop.f32.mrf.mxu0
        %v2404 = vadd.f32 %v925, %v2403
        %v2405 = vpop.f32.mrf.mxu0
        %v2406 = vadd.f32 %v925, %v2405
        %2407 = vmatprep.mubr.bf16.mxu0 0
        %2408 = vmatmul.mubr.bf16.gmra.mxu0 %v1968
        %v2409 = vpop.f32.mrf.mxu0
        %v2410 = vadd.f32 %v930, %v2409
        %v2411 = vpop.f32.mrf.mxu0
        %v2412 = vadd.f32 %v930, %v2411
        %v2413 = vpop.f32.mrf.mxu0
        %v2414 = vadd.f32 %v935, %v2413
        %v2415 = vpop.f32.mrf.mxu0
        %v2416 = vadd.f32 %v935, %v2415
        %2417 = vmatprep.mubr.bf16.mxu0 0
        %2418 = vmatmul.mubr.bf16.gmra.mxu0 %v1971
        %v2419 = vpop.f32.mrf.mxu0
        %v2420 = vadd.f32 %v940, %v2419
        %v2421 = vpop.f32.mrf.mxu0
        %v2422 = vadd.f32 %v940, %v2421
        %v2423 = vpop.f32.mrf.mxu0
        %v2424 = vadd.f32 %v945, %v2423
        %v2425 = vpop.f32.mrf.mxu0
        %v2426 = vadd.f32 %v945, %v2425
        %2427 = vmatprep.mubr.bf16.mxu0 0
        %2428 = vmatmul.mubr.bf16.gmra.mxu0 %v1974
        %v2429 = vpop.f32.mrf.mxu0
        %v2430 = vadd.f32 %v950, %v2429
        %v2431 = vpop.f32.mrf.mxu0
        %v2432 = vadd.f32 %v950, %v2431
        %v2433 = vpop.f32.mrf.mxu0
        %v2434 = vadd.f32 %v955, %v2433
        %v2435 = vpop.f32.mrf.mxu0
        %v2436 = vadd.f32 %v955, %v2435
        %2437 = vmatprep.mubr.bf16.mxu0 0
        %2438 = vmatmul.mubr.bf16.gmra.mxu0 %v1977
        %v2439 = vpop.f32.mrf.mxu0
        %v2440 = vadd.f32 %v960, %v2439
        %v2441 = vpop.f32.mrf.mxu0
        %v2442 = vadd.f32 %v960, %v2441
        %v2443 = vpop.f32.mrf.mxu0
        %v2444 = vadd.f32 %v965, %v2443
        %v2445 = vpop.f32.mrf.mxu0
        %v2446 = vadd.f32 %v965, %v2445
        %2447 = vmatprep.mubr.bf16.mxu0 0
        %2448 = vmatmul.mubr.bf16.gmra.mxu0 %v1980
        %v2449 = vpop.f32.mrf.mxu0
        %v2450 = vadd.f32 %v970, %v2449
        %v2451 = vpop.f32.mrf.mxu0
        %v2452 = vadd.f32 %v970, %v2451
        %v2453 = vpop.f32.mrf.mxu0
        %v2454 = vadd.f32 %v975, %v2453
        %v2455 = vpop.f32.mrf.mxu0
        %v2456 = vadd.f32 %v975, %v2455
        %2457 = vmatprep.mubr.bf16.mxu0 0
        %2458 = vmatmul.mubr.bf16.gmra.mxu0 %v1983
        %v2459 = vpop.f32.mrf.mxu0
        %v2460 = vadd.f32 %v980, %v2459
        %v2461 = vpop.f32.mrf.mxu0
        %v2462 = vadd.f32 %v980, %v2461
        %v2463 = vpop.f32.mrf.mxu0
        %v2464 = vadd.f32 %v985, %v2463
        %v2465 = vpop.f32.mrf.mxu0
        %v2466 = vadd.f32 %v985, %v2465
        %2467 = vmatprep.mubr.bf16.mxu0 0
        %2468 = vmatmul.mubr.bf16.gmra.mxu0 %v1986
        %v2469 = vpop.f32.mrf.mxu0
        %v2470 = vadd.f32 %v990, %v2469
        %v2471 = vpop.f32.mrf.mxu0
        %v2472 = vadd.f32 %v990, %v2471
        %v2473 = vpop.f32.mrf.mxu0
        %v2474 = vadd.f32 %v995, %v2473
        %v2475 = vpop.f32.mrf.mxu0
        %v2476 = vadd.f32 %v995, %v2475
        %2477 = vmatprep.mubr.bf16.mxu0 0
        %2478 = vmatmul.mubr.bf16.gmra.mxu0 %v1989
        %v2479 = vpop.f32.mrf.mxu0
        %v2480 = vadd.f32 %v1000, %v2479
        %v2481 = vpop.f32.mrf.mxu0
        %v2482 = vadd.f32 %v1000, %v2481
        %v2483 = vpop.f32.mrf.mxu0
        %v2484 = vadd.f32 %v1005, %v2483
        %v2485 = vpop.f32.mrf.mxu0
        %v2486 = vadd.f32 %v1005, %v2485
        %2487 = vmatprep.mubr.bf16.mxu0 0
        %2488 = vmatmul.mubr.bf16.gmra.mxu0 %v1992
        %v2489 = vpop.f32.mrf.mxu0
        %v2490 = vadd.f32 %v1010, %v2489
        %v2491 = vpop.f32.mrf.mxu0
        %v2492 = vadd.f32 %v1010, %v2491
        %v2493 = vpop.f32.mrf.mxu0
        %v2494 = vadd.f32 %v1015, %v2493
        %v2495 = vpop.f32.mrf.mxu0
        %v2496 = vadd.f32 %v1015, %v2495
        %2497 = vmatprep.mubr.bf16.mxu0 0
        %2498 = vmatmul.mubr.bf16.gmra.mxu0 %v1995
        %v2499 = vpop.f32.mrf.mxu0
        %v2500 = vadd.f32 %v1020, %v2499
        %v2501 = vpop.f32.mrf.mxu0
        %v2502 = vadd.f32 %v1020, %v2501
        %v2503 = vpop.f32.mrf.mxu0
        %v2504 = vadd.f32 %v1025, %v2503
        %v2505 = vpop.f32.mrf.mxu0
        %v2506 = vadd.f32 %v1025, %v2505
        %2507 = vmatprep.mubr.bf16.mxu0 0
        %2508 = vmatmul.mubr.bf16.gmra.mxu0 %v1998
        %v2509 = vpop.f32.mrf.mxu0
        %v2510 = vadd.f32 %v1030, %v2509
        %v2511 = vpop.f32.mrf.mxu0
        %v2512 = vadd.f32 %v1030, %v2511
        %v2513 = vpop.f32.mrf.mxu0
        %v2514 = vadd.f32 %v1035, %v2513
        %v2515 = vpop.f32.mrf.mxu0
        %v2516 = vadd.f32 %v1035, %v2515
        %2517 = vmatprep.mubr.bf16.mxu0 0
        %2518 = vmatmul.mubr.bf16.gmra.mxu0 %v2001
        %v2519 = vpop.f32.mrf.mxu0
        %v2520 = vadd.f32 %v1040, %v2519
        %v2521 = vpop.f32.mrf.mxu0
        %v2522 = vadd.f32 %v1040, %v2521
        %v2523 = vpop.f32.mrf.mxu0
        %v2524 = vadd.f32 %v1045, %v2523
        %v2525 = vpop.f32.mrf.mxu0
        %v2526 = vadd.f32 %v1045, %v2525
        %2527 = vmatprep.mubr.bf16.mxu0 0
        %2528 = vmatmul.mubr.bf16.gmra.mxu0 %v2004
        %v2529 = vpop.f32.mrf.mxu0
        %v2530 = vadd.f32 %v1050, %v2529
        %v2531 = vpop.f32.mrf.mxu0
        %v2532 = vadd.f32 %v1050, %v2531
        %v2533 = vpop.f32.mrf.mxu0
        %v2534 = vadd.f32 %v1055, %v2533
        %v2535 = vpop.f32.mrf.mxu0
        %v2536 = vadd.f32 %v1055, %v2535
        %2537 = vmatprep.mubr.bf16.mxu0 0
        %2538 = vmatmul.mubr.bf16.gmra.mxu0 %v2007
        %v2539 = vpop.f32.mrf.mxu0
        %v2540 = vadd.f32 %v1060, %v2539
        %v2541 = vpop.f32.mrf.mxu0
        %v2542 = vadd.f32 %v1060, %v2541
        %v2543 = vpop.f32.mrf.mxu0
        %v2544 = vadd.f32 %v1065, %v2543
        %v2545 = vpop.f32.mrf.mxu0
        %v2546 = vadd.f32 %v1065, %v2545
        %2547 = vmatprep.mubr.bf16.mxu0 0
        %2548 = vmatmul.mubr.bf16.gmra.mxu0 %v2010
        %v2549 = vpop.f32.mrf.mxu0
        %v2550 = vadd.f32 %v1070, %v2549
        %v2551 = vpop.f32.mrf.mxu0
        %v2552 = vadd.f32 %v1070, %v2551
        %v2553 = vpop.f32.mrf.mxu0
        %v2554 = vadd.f32 %v1075, %v2553
        %v2555 = vpop.f32.mrf.mxu0
        %v2556 = vadd.f32 %v1075, %v2555
        %2557 = vmatprep.mubr.bf16.mxu0 0
        %2558 = vmatmul.mubr.bf16.gmra.mxu0 %v2013
        %v2559 = vpop.f32.mrf.mxu0
        %v2560 = vadd.f32 %v1080, %v2559
        %v2561 = vpop.f32.mrf.mxu0
        %v2562 = vadd.f32 %v1080, %v2561
        %v2563 = vpop.f32.mrf.mxu0
        %v2564 = vadd.f32 %v1085, %v2563
        %v2565 = vpop.f32.mrf.mxu0
        %v2566 = vadd.f32 %v1085, %v2565
        %2567 = vmatprep.mubr.bf16.mxu0 0
        %2568 = vmatmul.mubr.bf16.gmra.mxu0 %v2016
        %v2569 = vpop.f32.mrf.mxu0
        %v2570 = vadd.f32 %v1090, %v2569
        %v2571 = vpop.f32.mrf.mxu0
        %v2572 = vadd.f32 %v1090, %v2571
        %v2573 = vpop.f32.mrf.mxu0
        %v2574 = vadd.f32 %v1095, %v2573
        %v2575 = vpop.f32.mrf.mxu0
        %v2576 = vadd.f32 %v1095, %v2575
        %2577 = vmatprep.mubr.bf16.mxu0 0
        %2578 = vmatmul.mubr.bf16.gmra.mxu0 %v2019
        %v2579 = vpop.f32.mrf.mxu0
        %v2580 = vadd.f32 %v1100, %v2579
        %v2581 = vpop.f32.mrf.mxu0
        %v2582 = vadd.f32 %v1100, %v2581
        %v2583 = vpop.f32.mrf.mxu0
        %v2584 = vadd.f32 %v1105, %v2583
        %v2585 = vpop.f32.mrf.mxu0
        %v2586 = vadd.f32 %v1105, %v2585
        %2587 = vmatprep.mubr.bf16.mxu0 0
        %2588 = vmatmul.mubr.bf16.gmra.mxu0 %v2022
        %v2589 = vpop.f32.mrf.mxu0
        %v2590 = vadd.f32 %v1110, %v2589
        %v2591 = vpop.f32.mrf.mxu0
        %v2592 = vadd.f32 %v1110, %v2591
        %v2593 = vpop.f32.mrf.mxu0
        %v2594 = vadd.f32 %v1115, %v2593
        %v2595 = vpop.f32.mrf.mxu0
        %v2596 = vadd.f32 %v1115, %v2595
        %2597 = vmatprep.mubr.bf16.mxu0 0
        %2598 = vmatmul.mubr.bf16.gmra.mxu0 %v2025
        %v2599 = vpop.f32.mrf.mxu0
        %v2600 = vadd.f32 %v1120, %v2599
        %v2601 = vpop.f32.mrf.mxu0
        %v2602 = vadd.f32 %v1120, %v2601
        %v2603 = vpop.f32.mrf.mxu0
        %v2604 = vadd.f32 %v1125, %v2603
        %v2605 = vpop.f32.mrf.mxu0
        %v2606 = vadd.f32 %v1125, %v2605
        %2607 = vmatprep.mubr.bf16.mxu0 0
        %2608 = vmatmul.mubr.bf16.gmra.mxu0 %v2028
        %v2609 = vpop.f32.mrf.mxu0
        %v2610 = vadd.f32 %v1130, %v2609
        %v2611 = vpop.f32.mrf.mxu0
        %v2612 = vadd.f32 %v1130, %v2611
        %v2613 = vpop.f32.mrf.mxu0
        %v2614 = vadd.f32 %v1135, %v2613
        %v2615 = vpop.f32.mrf.mxu0
        %v2616 = vadd.f32 %v1135, %v2615
        %2617 = vmatprep.mubr.bf16.mxu0 0
        %2618 = vmatmul.mubr.bf16.gmra.mxu0 %v2031
        %v2619 = vpop.f32.mrf.mxu0
        %v2620 = vadd.f32 %v1140, %v2619
        %v2621 = vpop.f32.mrf.mxu0
        %v2622 = vadd.f32 %v1140, %v2621
        %v2623 = vpop.f32.mrf.mxu0
        %v2624 = vadd.f32 %v1145, %v2623
        %v2625 = vpop.f32.mrf.mxu0
        %v2626 = vadd.f32 %v1145, %v2625
        %2627 = vmatprep.mubr.bf16.mxu0 0
        %2628 = vmatmul.mubr.bf16.gmra.mxu0 %v2034
        %v2629 = vpop.f32.mrf.mxu0
        %v2630 = vadd.f32 %v1150, %v2629
        %v2631 = vpop.f32.mrf.mxu0
        %v2632 = vadd.f32 %v1150, %v2631
        %v2633 = vpop.f32.mrf.mxu0
        %v2634 = vadd.f32 %v1155, %v2633
        %v2635 = vpop.f32.mrf.mxu0
        %v2636 = vadd.f32 %v1155, %v2635
        %2637 = vmatprep.mubr.bf16.mxu0 0
        %2638 = vmatmul.mubr.bf16.gmra.mxu0 %v2037
        %v2639 = vpop.f32.mrf.mxu0
        %v2640 = vadd.f32 %v1160, %v2639
        %v2641 = vpop.f32.mrf.mxu0
        %v2642 = vadd.f32 %v1160, %v2641
        %v2643 = vpop.f32.mrf.mxu0
        %v2644 = vadd.f32 %v1165, %v2643
        %v2645 = vpop.f32.mrf.mxu0
        %v2646 = vadd.f32 %v1165, %v2645
        %2647 = vmatprep.mubr.bf16.mxu0 0
        %2648 = vmatmul.mubr.bf16.gmra.mxu0 %v2040
        %v2649 = vpop.f32.mrf.mxu0
        %v2650 = vadd.f32 %v1170, %v2649
        %v2651 = vpop.f32.mrf.mxu0
        %v2652 = vadd.f32 %v1170, %v2651
        %v2653 = vpop.f32.mrf.mxu0
        %v2654 = vadd.f32 %v1175, %v2653
        %v2655 = vpop.f32.mrf.mxu0
        %v2656 = vadd.f32 %v1175, %v2655
        %2657 = vmatprep.mubr.bf16.mxu0 0
        %2658 = vmatmul.mubr.bf16.gmra.mxu0 %v2043
        %v2659 = vpop.f32.mrf.mxu0
        %v2660 = vadd.f32 %v1180, %v2659
        %v2661 = vpop.f32.mrf.mxu0
        %v2662 = vadd.f32 %v1180, %v2661
        %v2663 = vpop.f32.mrf.mxu0
        %v2664 = vadd.f32 %v1185, %v2663
        %v2665 = vpop.f32.mrf.mxu0
        %v2666 = vadd.f32 %v1185, %v2665
        %2667 = vmatprep.mubr.bf16.mxu0 0
        %2668 = vmatmul.mubr.bf16.gmra.mxu0 %v2046
        %v2669 = vpop.f32.mrf.mxu0
        %v2670 = vadd.f32 %v1190, %v2669
        %v2671 = vpop.f32.mrf.mxu0
        %v2672 = vadd.f32 %v1190, %v2671
        %v2673 = vpop.f32.mrf.mxu0
        %v2674 = vadd.f32 %v1195, %v2673
        %v2675 = vpop.f32.mrf.mxu0
        %v2676 = vadd.f32 %v1195, %v2675
        %2677 = vmatprep.mubr.bf16.mxu0 0
        %2678 = vmatmul.mubr.bf16.gmra.mxu0 %v2049
        %v2679 = vpop.f32.mrf.mxu0
        %v2680 = vadd.f32 %v1200, %v2679
        %v2681 = vpop.f32.mrf.mxu0
        %v2682 = vadd.f32 %v1200, %v2681
        %v2683 = vpop.f32.mrf.mxu0
        %v2684 = vadd.f32 %v1205, %v2683
        %v2685 = vpop.f32.mrf.mxu0
        %v2686 = vadd.f32 %v1205, %v2685
        %2687 = vmatprep.mubr.bf16.mxu0 0
        %2688 = vmatmul.mubr.bf16.gmra.mxu0 %v2052
        %v2689 = vpop.f32.mrf.mxu0
        %v2690 = vadd.f32 %v1210, %v2689
        %v2691 = vpop.f32.mrf.mxu0
        %v2692 = vadd.f32 %v1210, %v2691
        %v2693 = vpop.f32.mrf.mxu0
        %v2694 = vadd.f32 %v1215, %v2693
        %v2695 = vpop.f32.mrf.mxu0
        %v2696 = vadd.f32 %v1215, %v2695
        %2697 = vmatprep.mubr.bf16.mxu0 0
        %2698 = vmatmul.mubr.bf16.gmra.mxu0 %v2055
        %v2699 = vpop.f32.mrf.mxu0
        %v2700 = vadd.f32 %v1220, %v2699
        %v2701 = vpop.f32.mrf.mxu0
        %v2702 = vadd.f32 %v1220, %v2701
        %v2703 = vpop.f32.mrf.mxu0
        %v2704 = vadd.f32 %v1225, %v2703
        %v2705 = vpop.f32.mrf.mxu0
        %v2706 = vadd.f32 %v1225, %v2705
        %2707 = vmatprep.mubr.bf16.mxu0 0
        %2708 = vmatmul.mubr.bf16.gmra.mxu0 %v2058
        %v2709 = vpop.f32.mrf.mxu0
        %v2710 = vadd.f32 %v1230, %v2709
        %v2711 = vpop.f32.mrf.mxu0
        %v2712 = vadd.f32 %v1230, %v2711
        %v2713 = vpop.f32.mrf.mxu0
        %v2714 = vadd.f32 %v1235, %v2713
        %v2715 = vpop.f32.mrf.mxu0
        %v2716 = vadd.f32 %v1235, %v2715
        %2717 = vmatprep.mubr.bf16.mxu0 0
        %2718 = vmatmul.mubr.bf16.gmra.mxu0 %v2061
        %v2719 = vpop.f32.mrf.mxu0
        %v2720 = vadd.f32 %v1240, %v2719
        %v2721 = vpop.f32.mrf.mxu0
        %v2722 = vadd.f32 %v1240, %v2721
        %v2723 = vpop.f32.mrf.mxu0
        %v2724 = vadd.f32 %v1245, %v2723
        %v2725 = vpop.f32.mrf.mxu0
        %v2726 = vadd.f32 %v1245, %v2725
        %2727 = vmatprep.mubr.bf16.mxu0 0
        %2728 = vmatmul.mubr.bf16.gmra.mxu0 %v2064
        %v2729 = vpop.f32.mrf.mxu0
        %v2730 = vadd.f32 %v1250, %v2729
        %v2731 = vpop.f32.mrf.mxu0
        %v2732 = vadd.f32 %v1250, %v2731
        %v2733 = vpop.f32.mrf.mxu0
        %v2734 = vadd.f32 %v1255, %v2733
        %v2735 = vpop.f32.mrf.mxu0
        %v2736 = vadd.f32 %v1255, %v2735
        %2737 = vmatprep.mubr.bf16.mxu0 0
        %2738 = vmatmul.mubr.bf16.gmra.mxu0 %v2067
        %v2739 = vpop.f32.mrf.mxu0
        %v2740 = vadd.f32 %v1260, %v2739
        %v2741 = vpop.f32.mrf.mxu0
        %v2742 = vadd.f32 %v1260, %v2741
        %v2743 = vpop.f32.mrf.mxu0
        %v2744 = vadd.f32 %v1265, %v2743
        %v2745 = vpop.f32.mrf.mxu0
        %v2746 = vadd.f32 %v1265, %v2745
        %2747 = vmatprep.mubr.bf16.mxu0 0
        %2748 = vmatmul.mubr.bf16.gmra.mxu0 %v2070
        %v2749 = vpop.f32.mrf.mxu0
        %v2750 = vadd.f32 %v1270, %v2749
        %v2751 = vpop.f32.mrf.mxu0
        %v2752 = vadd.f32 %v1270, %v2751
        %v2753 = vpop.f32.mrf.mxu0
        %v2754 = vadd.f32 %v1275, %v2753
        %v2755 = vpop.f32.mrf.mxu0
        %v2756 = vadd.f32 %v1275, %v2755
        %2757 = vmatprep.mubr.bf16.mxu0 0
        %2758 = vmatmul.mubr.bf16.gmra.mxu0 %v2073
        %v2759 = vpop.f32.mrf.mxu0
        %v2760 = vadd.f32 %v1280, %v2759
        %v2761 = vpop.f32.mrf.mxu0
        %v2762 = vadd.f32 %v1280, %v2761
        %v2763 = vpop.f32.mrf.mxu0
        %v2764 = vadd.f32 %v1285, %v2763
        %v2765 = vpop.f32.mrf.mxu0
        %v2766 = vadd.f32 %v1285, %v2765
        %2767 = vmatprep.mubr.bf16.mxu0 0
        %2768 = vmatmul.mubr.bf16.gmra.mxu0 %v2076
        %v2769 = vpop.f32.mrf.mxu0
        %v2770 = vadd.f32 %v1290, %v2769
        %v2771 = vpop.f32.mrf.mxu0
        %v2772 = vadd.f32 %v1290, %v2771
        %v2773 = vpop.f32.mrf.mxu0
        %v2774 = vadd.f32 %v1295, %v2773
        %v2775 = vpop.f32.mrf.mxu0
        %v2776 = vadd.f32 %v1295, %v2775
        %2777 = vmatprep.mubr.bf16.mxu0 0
        %2778 = vmatmul.mubr.bf16.gmra.mxu0 %v2079
        %v2779 = vpop.f32.mrf.mxu0
        %v2780 = vadd.f32 %v1300, %v2779
        %v2781 = vpop.f32.mrf.mxu0
        %v2782 = vadd.f32 %v1300, %v2781
        %v2783 = vpop.f32.mrf.mxu0
        %v2784 = vadd.f32 %v1305, %v2783
        %v2785 = vpop.f32.mrf.mxu0
        %v2786 = vadd.f32 %v1305, %v2785
        %2787 = vmatprep.mubr.bf16.mxu0 0
        %2788 = vmatmul.mubr.bf16.gmra.mxu0 %v2082
        %v2789 = vpop.f32.mrf.mxu0
        %v2790 = vadd.f32 %v1310, %v2789
        %v2791 = vpop.f32.mrf.mxu0
        %v2792 = vadd.f32 %v1310, %v2791
        %v2793 = vpop.f32.mrf.mxu0
        %v2794 = vadd.f32 %v1315, %v2793
        %v2795 = vpop.f32.mrf.mxu0
        %v2796 = vadd.f32 %v1315, %v2795
        %2797 = vmatprep.mubr.bf16.mxu0 0
        %2798 = vmatmul.mubr.bf16.gmra.mxu0 %v2085
        %v2799 = vpop.f32.mrf.mxu0
        %v2800 = vadd.f32 %v1320, %v2799
        %v2801 = vpop.f32.mrf.mxu0
        %v2802 = vadd.f32 %v1320, %v2801
        %v2803 = vpop.f32.mrf.mxu0
        %v2804 = vadd.f32 %v1325, %v2803
        %v2805 = vpop.f32.mrf.mxu0
        %v2806 = vadd.f32 %v1325, %v2805
        %2807 = vmatprep.mubr.bf16.mxu0 0
        %2808 = vmatmul.mubr.bf16.gmra.mxu0 %v2088
        %v2809 = vpop.f32.mrf.mxu0
        %v2810 = vadd.f32 %v1330, %v2809
        %v2811 = vpop.f32.mrf.mxu0
        %v2812 = vadd.f32 %v1330, %v2811
        %v2813 = vpop.f32.mrf.mxu0
        %v2814 = vadd.f32 %v1335, %v2813
        %v2815 = vpop.f32.mrf.mxu0
        %v2816 = vadd.f32 %v1335, %v2815
        %2817 = vmatprep.mubr.bf16.mxu0 0
        %2818 = vmatmul.mubr.bf16.gmra.mxu0 %v2091
        %v2819 = vpop.f32.mrf.mxu0
        %v2820 = vadd.f32 %v1340, %v2819
        %v2821 = vpop.f32.mrf.mxu0
        %v2822 = vadd.f32 %v1340, %v2821
        %v2823 = vpop.f32.mrf.mxu0
        %v2824 = vadd.f32 %v1345, %v2823
        %v2825 = vpop.f32.mrf.mxu0
        %v2826 = vadd.f32 %v1345, %v2825
        %2827 = vmatprep.mubr.bf16.mxu0 0
        %2828 = vmatmul.mubr.bf16.gmra.mxu0 %v2094
        %v2829 = vpop.f32.mrf.mxu0
        %v2830 = vadd.f32 %v1350, %v2829
        %v2831 = vpop.f32.mrf.mxu0
        %v2832 = vadd.f32 %v1350, %v2831
        %v2833 = vpop.f32.mrf.mxu0
        %v2834 = vadd.f32 %v1355, %v2833
        %v2835 = vpop.f32.mrf.mxu0
        %v2836 = vadd.f32 %v1355, %v2835
        %2837 = vmatprep.mubr.bf16.mxu0 0
        %2838 = vmatmul.mubr.bf16.gmra.mxu0 %v2097
        %v2839 = vpop.f32.mrf.mxu0
        %v2840 = vadd.f32 %v1360, %v2839
        %v2841 = vpop.f32.mrf.mxu0
        %v2842 = vadd.f32 %v1360, %v2841
        %v2843 = vpop.f32.mrf.mxu0
        %v2844 = vadd.f32 %v1365, %v2843
        %v2845 = vpop.f32.mrf.mxu0
        %v2846 = vadd.f32 %v1365, %v2845
        %2847 = vmatprep.mubr.bf16.mxu0 0
        %2848 = vmatmul.mubr.bf16.gmra.mxu0 %v2100
        %v2849 = vpop.f32.mrf.mxu0
        %v2850 = vadd.f32 %v1370, %v2849
        %v2851 = vpop.f32.mrf.mxu0
        %v2852 = vadd.f32 %v1370, %v2851
        %v2853 = vpop.f32.mrf.mxu0
        %v2854 = vadd.f32 %v1375, %v2853
        %v2855 = vpop.f32.mrf.mxu0
        %v2856 = vadd.f32 %v1375, %v2855
        %2857 = vmatprep.mubr.bf16.mxu0 0
        %2858 = vmatmul.mubr.bf16.gmra.mxu0 %v2103
        %v2859 = vpop.f32.mrf.mxu0
        %v2860 = vadd.f32 %v1380, %v2859
        %v2861 = vpop.f32.mrf.mxu0
        %v2862 = vadd.f32 %v1380, %v2861
        %v2863 = vpop.f32.mrf.mxu0
        %v2864 = vadd.f32 %v1385, %v2863
        %v2865 = vpop.f32.mrf.mxu0
        %v2866 = vadd.f32 %v1385, %v2865
        %2867 = vmatprep.mubr.bf16.mxu0 0
        %2868 = vmatmul.mubr.bf16.gmra.mxu0 %v2106
        %v2869 = vpop.f32.mrf.mxu0
        %v2870 = vadd.f32 %v1390, %v2869
        %v2871 = vpop.f32.mrf.mxu0
        %v2872 = vadd.f32 %v1390, %v2871
        %v2873 = vpop.f32.mrf.mxu0
        %v2874 = vadd.f32 %v1395, %v2873
        %v2875 = vpop.f32.mrf.mxu0
        %v2876 = vadd.f32 %v1395, %v2875
        %2877 = vmatprep.mubr.bf16.mxu0 0
        %2878 = vmatmul.mubr.bf16.gmra.mxu0 %v2109
        %v2879 = vpop.f32.mrf.mxu0
        %v2880 = vadd.f32 %v1400, %v2879
        %v2881 = vpop.f32.mrf.mxu0
        %v2882 = vadd.f32 %v1400, %v2881
        %v2883 = vpop.f32.mrf.mxu0
        %v2884 = vadd.f32 %v1405, %v2883
        %v2885 = vpop.f32.mrf.mxu0
        %v2886 = vadd.f32 %v1405, %v2885
        %2887 = vmatprep.mubr.bf16.mxu0 0
        %2888 = vmatmul.mubr.bf16.gmra.mxu0 %v2112
        %v2889 = vpop.f32.mrf.mxu0
        %v2890 = vadd.f32 %v1410, %v2889
        %v2891 = vpop.f32.mrf.mxu0
        %v2892 = vadd.f32 %v1410, %v2891
        %v2893 = vpop.f32.mrf.mxu0
        %v2894 = vadd.f32 %v1415, %v2893
        %v2895 = vpop.f32.mrf.mxu0
        %v2896 = vadd.f32 %v1415, %v2895
        %2897 = vmatprep.mubr.bf16.mxu0 0
        %2898 = vmatmul.mubr.bf16.gmra.mxu0 %v2115
        %v2899 = vpop.f32.mrf.mxu0
        %v2900 = vadd.f32 %v1420, %v2899
        %v2901 = vpop.f32.mrf.mxu0
        %v2902 = vadd.f32 %v1420, %v2901
        %v2903 = vpop.f32.mrf.mxu0
        %v2904 = vadd.f32 %v1425, %v2903
        %v2905 = vpop.f32.mrf.mxu0
        %v2906 = vadd.f32 %v1425, %v2905
        %2907 = vmatprep.mubr.bf16.mxu0 0
        %2908 = vmatmul.mubr.bf16.gmra.mxu0 %v2118
        %v2909 = vpop.f32.mrf.mxu0
        %v2910 = vadd.f32 %v1430, %v2909
        %v2911 = vpop.f32.mrf.mxu0
        %v2912 = vadd.f32 %v1430, %v2911
        %v2913 = vpop.f32.mrf.mxu0
        %v2914 = vadd.f32 %v1435, %v2913
        %v2915 = vpop.f32.mrf.mxu0
        %v2916 = vadd.f32 %v1435, %v2915
        %2917 = vmatprep.mubr.bf16.mxu0 0
        %2918 = vmatmul.mubr.bf16.gmra.mxu0 %v2121
        %v2919 = vpop.f32.mrf.mxu0
        %v2920 = vadd.f32 %v1440, %v2919
        %v2921 = vpop.f32.mrf.mxu0
        %v2922 = vadd.f32 %v1440, %v2921
        %v2923 = vpop.f32.mrf.mxu0
        %v2924 = vadd.f32 %v1445, %v2923
        %v2925 = vpop.f32.mrf.mxu0
        %v2926 = vadd.f32 %v1445, %v2925
        %2927 = vmatprep.mubr.bf16.mxu0 0
        %2928 = vmatmul.mubr.bf16.gmra.mxu0 %v2124
        %v2929 = vpop.f32.mrf.mxu0
        %v2930 = vadd.f32 %v1450, %v2929
        %v2931 = vpop.f32.mrf.mxu0
        %v2932 = vadd.f32 %v1450, %v2931
        %v2933 = vpop.f32.mrf.mxu0
        %v2934 = vadd.f32 %v1455, %v2933
        %v2935 = vpop.f32.mrf.mxu0
        %v2936 = vadd.f32 %v1455, %v2935
        %2937 = vmatprep.mubr.bf16.mxu0 0
        %2938 = vmatmul.mubr.bf16.gmra.mxu0 %v2127
        %v2939 = vpop.f32.mrf.mxu0
        %v2940 = vadd.f32 %v1460, %v2939
        %v2941 = vpop.f32.mrf.mxu0
        %v2942 = vadd.f32 %v1460, %v2941
        %v2943 = vpop.f32.mrf.mxu0
        %v2944 = vadd.f32 %v1465, %v2943
        %v2945 = vpop.f32.mrf.mxu0
        %v2946 = vadd.f32 %v1465, %v2945
        %2947 = vmatprep.mubr.bf16.mxu0 0
        %2948 = vmatmul.mubr.bf16.gmra.mxu0 %v2130
        %v2949 = vpop.f32.mrf.mxu0
        %v2950 = vadd.f32 %v1470, %v2949
        %v2951 = vpop.f32.mrf.mxu0
        %v2952 = vadd.f32 %v1470, %v2951
        %v2953 = vpop.f32.mrf.mxu0
        %v2954 = vadd.f32 %v1475, %v2953
        %v2955 = vpop.f32.mrf.mxu0
        %v2956 = vadd.f32 %v1475, %v2955
        %2957 = vmatprep.mubr.bf16.mxu0 0
        %2958 = vmatmul.mubr.bf16.gmra.mxu0 %v2133
        %v2959 = vpop.f32.mrf.mxu0
        %v2960 = vadd.f32 %v1480, %v2959
        %v2961 = vpop.f32.mrf.mxu0
        %v2962 = vadd.f32 %v1480, %v2961
        %v2963 = vpop.f32.mrf.mxu0
        %v2964 = vadd.f32 %v1485, %v2963
        %v2965 = vpop.f32.mrf.mxu0
        %v2966 = vadd.f32 %v1485, %v2965
        %2967 = vmatprep.mubr.bf16.mxu0 0
        %2968 = vmatmul.mubr.bf16.gmra.mxu0 %v2136
        %v2969 = vpop.f32.mrf.mxu0
        %v2970 = vadd.f32 %v1490, %v2969
        %v2971 = vpop.f32.mrf.mxu0
        %v2972 = vadd.f32 %v1490, %v2971
        %v2973 = vpop.f32.mrf.mxu0
        %v2974 = vadd.f32 %v1495, %v2973
        %v2975 = vpop.f32.mrf.mxu0
        %v2976 = vadd.f32 %v1495, %v2975
        %2977 = vdwg.mxu0
        %v2978 = vmul.f32 %v2180, 0.5
        %v2979 = vmul.f32 %v2182, 0.5
        %v2980 = vmul.f32 %v2184, 0.5
        %v2981 = vmul.f32 %v2186, 0.5
        %v2982 = vmul.f32 %v2190, 0.5
        %v2983 = vmul.f32 %v2192, 0.5
        %v2984 = vmul.f32 %v2194, 0.5
        %v2985 = vmul.f32 %v2196, 0.5
        %v2986 = vmul.f32 %v2200, 0.5
        %v2987 = vmul.f32 %v2202, 0.5
        %v2988 = vmul.f32 %v2204, 0.5
        %v2989 = vmul.f32 %v2206, 0.5
        %v2990 = vmul.f32 %v2210, 0.5
        %v2991 = vmul.f32 %v2212, 0.5
        %v2992 = vmul.f32 %v2214, 0.5
        %v2993 = vmul.f32 %v2216, 0.5
        %v2994 = vmul.f32 %v2220, 0.5
        %v2995 = vmul.f32 %v2222, 0.5
        %v2996 = vmul.f32 %v2224, 0.5
        %v2997 = vmul.f32 %v2226, 0.5
        %v2998 = vmul.f32 %v2230, 0.5
        %v2999 = vmul.f32 %v2232, 0.5
        %v3000 = vmul.f32 %v2234, 0.5
        %v3001 = vmul.f32 %v2236, 0.5
        %v3002 = vmul.f32 %v2240, 0.5
        %v3003 = vmul.f32 %v2242, 0.5
        %v3004 = vmul.f32 %v2244, 0.5
        %v3005 = vmul.f32 %v2246, 0.5
        %v3006 = vmul.f32 %v2250, 0.5
        %v3007 = vmul.f32 %v2252, 0.5
        %v3008 = vmul.f32 %v2254, 0.5
        %v3009 = vmul.f32 %v2256, 0.5
        %v3010 = vmul.f32 %v2260, 0.5
        %v3011 = vmul.f32 %v2262, 0.5
        %v3012 = vmul.f32 %v2264, 0.5
        %v3013 = vmul.f32 %v2266, 0.5
        %v3014 = vmul.f32 %v2270, 0.5
        %v3015 = vmul.f32 %v2272, 0.5
        %v3016 = vmul.f32 %v2274, 0.5
        %v3017 = vmul.f32 %v2276, 0.5
        %v3018 = vmul.f32 %v2280, 0.5
        %v3019 = vmul.f32 %v2282, 0.5
        %v3020 = vmul.f32 %v2284, 0.5
        %v3021 = vmul.f32 %v2286, 0.5
        %v3022 = vmul.f32 %v2290, 0.5
        %v3023 = vmul.f32 %v2292, 0.5
        %v3024 = vmul.f32 %v2294, 0.5
        %v3025 = vmul.f32 %v2296, 0.5
        %v3026 = vmul.f32 %v2300, 0.5
        %v3027 = vmul.f32 %v2302, 0.5
        %v3028 = vmul.f32 %v2304, 0.5
        %v3029 = vmul.f32 %v2306, 0.5
        %v3030 = vmul.f32 %v2310, 0.5
        %v3031 = vmul.f32 %v2312, 0.5
        %v3032 = vmul.f32 %v2314, 0.5
        %v3033 = vmul.f32 %v2316, 0.5
        %v3034 = vmul.f32 %v2320, 0.5
        %v3035 = vmul.f32 %v2322, 0.5
        %v3036 = vmul.f32 %v2324, 0.5
        %v3037 = vmul.f32 %v2326, 0.5
        %v3038 = vmul.f32 %v2330, 0.5
        %v3039 = vmul.f32 %v2332, 0.5
        %v3040 = vmul.f32 %v2334, 0.5
        %v3041 = vmul.f32 %v2336, 0.5
        %v3042 = vmul.f32 %v2340, 0.5
        %v3043 = vmul.f32 %v2342, 0.5
        %v3044 = vmul.f32 %v2344, 0.5
        %v3045 = vmul.f32 %v2346, 0.5
        %v3046 = vmul.f32 %v2350, 0.5
        %v3047 = vmul.f32 %v2352, 0.5
        %v3048 = vmul.f32 %v2354, 0.5
        %v3049 = vmul.f32 %v2356, 0.5
        %v3050 = vmul.f32 %v2360, 0.5
        %v3051 = vmul.f32 %v2362, 0.5
        %v3052 = vmul.f32 %v2364, 0.5
        %v3053 = vmul.f32 %v2366, 0.5
        %v3054 = vmul.f32 %v2370, 0.5
        %v3055 = vmul.f32 %v2372, 0.5
        %v3056 = vmul.f32 %v2374, 0.5
        %v3057 = vmul.f32 %v2376, 0.5
        %v3058 = vmul.f32 %v2380, 0.5
        %v3059 = vmul.f32 %v2382, 0.5
        %v3060 = vmul.f32 %v2384, 0.5
        %v3061 = vmul.f32 %v2386, 0.5
        %v3062 = vmul.f32 %v2390, 0.5
        %v3063 = vmul.f32 %v2392, 0.5
        %v3064 = vmul.f32 %v2394, 0.5
        %v3065 = vmul.f32 %v2396, 0.5
        %v3066 = vmul.f32 %v2400, 0.5
        %v3067 = vmul.f32 %v2402, 0.5
        %v3068 = vmul.f32 %v2404, 0.5
        %v3069 = vmul.f32 %v2406, 0.5
        %v3070 = vmul.f32 %v2410, 0.5
        %v3071 = vmul.f32 %v2412, 0.5
        %v3072 = vmul.f32 %v2414, 0.5
        %v3073 = vmul.f32 %v2416, 0.5
        %v3074 = vmul.f32 %v2420, 0.5
        %v3075 = vmul.f32 %v2422, 0.5
        %v3076 = vmul.f32 %v2424, 0.5
        %v3077 = vmul.f32 %v2426, 0.5
        %v3078 = vmul.f32 %v2430, 0.5
        %v3079 = vmul.f32 %v2432, 0.5
        %v3080 = vmul.f32 %v2434, 0.5
        %v3081 = vmul.f32 %v2436, 0.5
        %v3082 = vmul.f32 %v2440, 0.5
        %v3083 = vmul.f32 %v2442, 0.5
        %v3084 = vmul.f32 %v2444, 0.5
        %v3085 = vmul.f32 %v2446, 0.5
        %v3086 = vmul.f32 %v2450, 0.5
        %v3087 = vmul.f32 %v2452, 0.5
        %v3088 = vmul.f32 %v2454, 0.5
        %v3089 = vmul.f32 %v2456, 0.5
        %v3090 = vmul.f32 %v2460, 0.5
        %v3091 = vmul.f32 %v2462, 0.5
        %v3092 = vmul.f32 %v2464, 0.5
        %v3093 = vmul.f32 %v2466, 0.5
        %v3094 = vmul.f32 %v2470, 0.5
        %v3095 = vmul.f32 %v2472, 0.5
        %v3096 = vmul.f32 %v2474, 0.5
        %v3097 = vmul.f32 %v2476, 0.5
        %v3098 = vmul.f32 %v2480, 0.5
        %v3099 = vmul.f32 %v2482, 0.5
        %v3100 = vmul.f32 %v2484, 0.5
        %v3101 = vmul.f32 %v2486, 0.5
        %v3102 = vmul.f32 %v2490, 0.5
        %v3103 = vmul.f32 %v2492, 0.5
        %v3104 = vmul.f32 %v2494, 0.5
        %v3105 = vmul.f32 %v2496, 0.5
        %v3106 = vmul.f32 %v2500, 0.5
        %v3107 = vmul.f32 %v2502, 0.5
        %v3108 = vmul.f32 %v2504, 0.5
        %v3109 = vmul.f32 %v2506, 0.5
        %v3110 = vmul.f32 %v2510, 0.5
        %v3111 = vmul.f32 %v2512, 0.5
        %v3112 = vmul.f32 %v2514, 0.5
        %v3113 = vmul.f32 %v2516, 0.5
        %v3114 = vmul.f32 %v2520, 0.5
        %v3115 = vmul.f32 %v2522, 0.5
        %v3116 = vmul.f32 %v2524, 0.5
        %v3117 = vmul.f32 %v2526, 0.5
        %v3118 = vmul.f32 %v2530, 0.5
        %v3119 = vmul.f32 %v2532, 0.5
        %v3120 = vmul.f32 %v2534, 0.5
        %v3121 = vmul.f32 %v2536, 0.5
        %v3122 = vmul.f32 %v2540, 0.5
        %v3123 = vmul.f32 %v2542, 0.5
        %v3124 = vmul.f32 %v2544, 0.5
        %v3125 = vmul.f32 %v2546, 0.5
        %v3126 = vmul.f32 %v2550, 0.5
        %v3127 = vmul.f32 %v2552, 0.5
        %v3128 = vmul.f32 %v2554, 0.5
        %v3129 = vmul.f32 %v2556, 0.5
        %v3130 = vmul.f32 %v2560, 0.5
        %v3131 = vmul.f32 %v2562, 0.5
        %v3132 = vmul.f32 %v2564, 0.5
        %v3133 = vmul.f32 %v2566, 0.5
        %v3134 = vmul.f32 %v2570, 0.5
        %v3135 = vmul.f32 %v2572, 0.5
        %v3136 = vmul.f32 %v2574, 0.5
        %v3137 = vmul.f32 %v2576, 0.5
        %v3138 = vmul.f32 %v2580, 0.5
        %v3139 = vmul.f32 %v2582, 0.5
        %v3140 = vmul.f32 %v2584, 0.5
        %v3141 = vmul.f32 %v2586, 0.5
        %v3142 = vmul.f32 %v2590, 0.5
        %v3143 = vmul.f32 %v2592, 0.5
        %v3144 = vmul.f32 %v2594, 0.5
        %v3145 = vmul.f32 %v2596, 0.5
        %v3146 = vmul.f32 %v2600, 0.5
        %v3147 = vmul.f32 %v2602, 0.5
        %v3148 = vmul.f32 %v2604, 0.5
        %v3149 = vmul.f32 %v2606, 0.5
        %v3150 = vmul.f32 %v2610, 0.5
        %v3151 = vmul.f32 %v2612, 0.5
        %v3152 = vmul.f32 %v2614, 0.5
        %v3153 = vmul.f32 %v2616, 0.5
        %v3154 = vmul.f32 %v2620, 0.5
        %v3155 = vmul.f32 %v2622, 0.5
        %v3156 = vmul.f32 %v2624, 0.5
        %v3157 = vmul.f32 %v2626, 0.5
        %v3158 = vmul.f32 %v2630, 0.5
        %v3159 = vmul.f32 %v2632, 0.5
        %v3160 = vmul.f32 %v2634, 0.5
        %v3161 = vmul.f32 %v2636, 0.5
        %v3162 = vmul.f32 %v2640, 0.5
        %v3163 = vmul.f32 %v2642, 0.5
        %v3164 = vmul.f32 %v2644, 0.5
        %v3165 = vmul.f32 %v2646, 0.5
        %v3166 = vmul.f32 %v2650, 0.5
        %v3167 = vmul.f32 %v2652, 0.5
        %v3168 = vmul.f32 %v2654, 0.5
        %v3169 = vmul.f32 %v2656, 0.5
        %v3170 = vmul.f32 %v2660, 0.5
        %v3171 = vmul.f32 %v2662, 0.5
        %v3172 = vmul.f32 %v2664, 0.5
        %v3173 = vmul.f32 %v2666, 0.5
        %v3174 = vmul.f32 %v2670, 0.5
        %v3175 = vmul.f32 %v2672, 0.5
        %v3176 = vmul.f32 %v2674, 0.5
        %v3177 = vmul.f32 %v2676, 0.5
        %v3178 = vmul.f32 %v2680, 0.5
        %v3179 = vmul.f32 %v2682, 0.5
        %v3180 = vmul.f32 %v2684, 0.5
        %v3181 = vmul.f32 %v2686, 0.5
        %v3182 = vmul.f32 %v2690, 0.5
        %v3183 = vmul.f32 %v2692, 0.5
        %v3184 = vmul.f32 %v2694, 0.5
        %v3185 = vmul.f32 %v2696, 0.5
        %v3186 = vmul.f32 %v2700, 0.5
        %v3187 = vmul.f32 %v2702, 0.5
        %v3188 = vmul.f32 %v2704, 0.5
        %v3189 = vmul.f32 %v2706, 0.5
        %v3190 = vmul.f32 %v2710, 0.5
        %v3191 = vmul.f32 %v2712, 0.5
        %v3192 = vmul.f32 %v2714, 0.5
        %v3193 = vmul.f32 %v2716, 0.5
        %v3194 = vmul.f32 %v2720, 0.5
        %v3195 = vmul.f32 %v2722, 0.5
        %v3196 = vmul.f32 %v2724, 0.5
        %v3197 = vmul.f32 %v2726, 0.5
        %v3198 = vmul.f32 %v2730, 0.5
        %v3199 = vmul.f32 %v2732, 0.5
        %v3200 = vmul.f32 %v2734, 0.5
        %v3201 = vmul.f32 %v2736, 0.5
        %v3202 = vmul.f32 %v2740, 0.5
        %v3203 = vmul.f32 %v2742, 0.5
        %v3204 = vmul.f32 %v2744, 0.5
        %v3205 = vmul.f32 %v2746, 0.5
        %v3206 = vmul.f32 %v2750, 0.5
        %v3207 = vmul.f32 %v2752, 0.5
        %v3208 = vmul.f32 %v2754, 0.5
        %v3209 = vmul.f32 %v2756, 0.5
        %v3210 = vmul.f32 %v2760, 0.5
        %v3211 = vmul.f32 %v2762, 0.5
        %v3212 = vmul.f32 %v2764, 0.5
        %v3213 = vmul.f32 %v2766, 0.5
        %v3214 = vmul.f32 %v2770, 0.5
        %v3215 = vmul.f32 %v2772, 0.5
        %v3216 = vmul.f32 %v2774, 0.5
        %v3217 = vmul.f32 %v2776, 0.5
        %v3218 = vmul.f32 %v2780, 0.5
        %v3219 = vmul.f32 %v2782, 0.5
        %v3220 = vmul.f32 %v2784, 0.5
        %v3221 = vmul.f32 %v2786, 0.5
        %v3222 = vmul.f32 %v2790, 0.5
        %v3223 = vmul.f32 %v2792, 0.5
        %v3224 = vmul.f32 %v2794, 0.5
        %v3225 = vmul.f32 %v2796, 0.5
        %v3226 = vmul.f32 %v2800, 0.5
        %v3227 = vmul.f32 %v2802, 0.5
        %v3228 = vmul.f32 %v2804, 0.5
        %v3229 = vmul.f32 %v2806, 0.5
        %v3230 = vmul.f32 %v2810, 0.5
        %v3231 = vmul.f32 %v2812, 0.5
        %v3232 = vmul.f32 %v2814, 0.5
        %v3233 = vmul.f32 %v2816, 0.5
        %v3234 = vmul.f32 %v2820, 0.5
        %v3235 = vmul.f32 %v2822, 0.5
        %v3236 = vmul.f32 %v2824, 0.5
        %v3237 = vmul.f32 %v2826, 0.5
        %v3238 = vmul.f32 %v2830, 0.5
        %v3239 = vmul.f32 %v2832, 0.5
        %v3240 = vmul.f32 %v2834, 0.5
        %v3241 = vmul.f32 %v2836, 0.5
        %v3242 = vmul.f32 %v2840, 0.5
        %v3243 = vmul.f32 %v2842, 0.5
        %v3244 = vmul.f32 %v2844, 0.5
        %v3245 = vmul.f32 %v2846, 0.5
        %v3246 = vmul.f32 %v2850, 0.5
        %v3247 = vmul.f32 %v2852, 0.5
        %v3248 = vmul.f32 %v2854, 0.5
        %v3249 = vmul.f32 %v2856, 0.5
        %v3250 = vmul.f32 %v2860, 0.5
        %v3251 = vmul.f32 %v2862, 0.5
        %v3252 = vmul.f32 %v2864, 0.5
        %v3253 = vmul.f32 %v2866, 0.5
        %v3254 = vmul.f32 %v2870, 0.5
        %v3255 = vmul.f32 %v2872, 0.5
        %v3256 = vmul.f32 %v2874, 0.5
        %v3257 = vmul.f32 %v2876, 0.5
        %v3258 = vmul.f32 %v2880, 0.5
        %v3259 = vmul.f32 %v2882, 0.5
        %v3260 = vmul.f32 %v2884, 0.5
        %v3261 = vmul.f32 %v2886, 0.5
        %v3262 = vmul.f32 %v2890, 0.5
        %v3263 = vmul.f32 %v2892, 0.5
        %v3264 = vmul.f32 %v2894, 0.5
        %v3265 = vmul.f32 %v2896, 0.5
        %v3266 = vmul.f32 %v2900, 0.5
        %v3267 = vmul.f32 %v2902, 0.5
        %v3268 = vmul.f32 %v2904, 0.5
        %v3269 = vmul.f32 %v2906, 0.5
        %v3270 = vmul.f32 %v2910, 0.5
        %v3271 = vmul.f32 %v2912, 0.5
        %v3272 = vmul.f32 %v2914, 0.5
        %v3273 = vmul.f32 %v2916, 0.5
        %v3274 = vmul.f32 %v2920, 0.5
        %v3275 = vmul.f32 %v2922, 0.5
        %v3276 = vmul.f32 %v2924, 0.5
        %v3277 = vmul.f32 %v2926, 0.5
        %v3278 = vmul.f32 %v2930, 0.5
        %v3279 = vmul.f32 %v2932, 0.5
        %v3280 = vmul.f32 %v2934, 0.5
        %v3281 = vmul.f32 %v2936, 0.5
        %v3282 = vmul.f32 %v2940, 0.5
        %v3283 = vmul.f32 %v2942, 0.5
        %v3284 = vmul.f32 %v2944, 0.5
        %v3285 = vmul.f32 %v2946, 0.5
        %v3286 = vmul.f32 %v2950, 0.5
        %v3287 = vmul.f32 %v2952, 0.5
        %v3288 = vmul.f32 %v2954, 0.5
        %v3289 = vmul.f32 %v2956, 0.5
        %v3290 = vmul.f32 %v2960, 0.5
        %v3291 = vmul.f32 %v2962, 0.5
        %v3292 = vmul.f32 %v2964, 0.5
        %v3293 = vmul.f32 %v2966, 0.5
        %v3294 = vmul.f32 %v2970, 0.5
        %v3295 = vmul.f32 %v2972, 0.5
        %v3296 = vmul.f32 %v2974, 0.5
        %v3297 = vmul.f32 %v2976, 0.5
        %v3298 = vtanh.pop %v2978
        %v3299 = vtanh.pop %v2979
        %v3300 = vtanh.pop %v2980
        %v3301 = vtanh.pop %v2981
        %v3302 = vtanh.pop %v2982
        %v3303 = vtanh.pop %v2983
        %v3304 = vtanh.pop %v2984
        %v3305 = vtanh.pop %v2985
        %v3306 = vtanh.pop %v2986
        %v3307 = vtanh.pop %v2987
        %v3308 = vtanh.pop %v2988
        %v3309 = vtanh.pop %v2989
        %v3310 = vtanh.pop %v2990
        %v3311 = vtanh.pop %v2991
        %v3312 = vtanh.pop %v2992
        %v3313 = vtanh.pop %v2993
        %v3314 = vtanh.pop %v2994
        %v3315 = vtanh.pop %v2995
        %v3316 = vtanh.pop %v2996
        %v3317 = vtanh.pop %v2997
        %v3318 = vtanh.pop %v2998
        %v3319 = vtanh.pop %v2999
        %v3320 = vtanh.pop %v3000
        %v3321 = vtanh.pop %v3001
        %v3322 = vtanh.pop %v3002
        %v3323 = vtanh.pop %v3003
        %v3324 = vtanh.pop %v3004
        %v3325 = vtanh.pop %v3005
        %v3326 = vtanh.pop %v3006
        %v3327 = vtanh.pop %v3007
        %v3328 = vtanh.pop %v3008
        %v3329 = vtanh.pop %v3009
        %v3330 = vtanh.pop %v3010
        %v3331 = vtanh.pop %v3011
        %v3332 = vtanh.pop %v3012
        %v3333 = vtanh.pop %v3013
        %v3334 = vtanh.pop %v3014
        %v3335 = vtanh.pop %v3015
        %v3336 = vtanh.pop %v3016
        %v3337 = vtanh.pop %v3017
        %v3338 = vtanh.pop %v3018
        %v3339 = vtanh.pop %v3019
        %v3340 = vtanh.pop %v3020
        %v3341 = vtanh.pop %v3021
        %v3342 = vtanh.pop %v3022
        %v3343 = vtanh.pop %v3023
        %v3344 = vtanh.pop %v3024
        %v3345 = vtanh.pop %v3025
        %v3346 = vtanh.pop %v3026
        %v3347 = vtanh.pop %v3027
        %v3348 = vtanh.pop %v3028
        %v3349 = vtanh.pop %v3029
        %v3350 = vtanh.pop %v3030
        %v3351 = vtanh.pop %v3031
        %v3352 = vtanh.pop %v3032
        %v3353 = vtanh.pop %v3033
        %v3354 = vtanh.pop %v3034
        %v3355 = vtanh.pop %v3035
        %v3356 = vtanh.pop %v3036
        %v3357 = vtanh.pop %v3037
        %v3358 = vtanh.pop %v3038
        %v3359 = vtanh.pop %v3039
        %v3360 = vtanh.pop %v3040
        %v3361 = vtanh.pop %v3041
        %v3362 = vtanh.pop %v3042
        %v3363 = vtanh.pop %v3043
        %v3364 = vtanh.pop %v3044
        %v3365 = vtanh.pop %v3045
        %v3366 = vtanh.pop %v3046
        %v3367 = vtanh.pop %v3047
        %v3368 = vtanh.pop %v3048
        %v3369 = vtanh.pop %v3049
        %v3370 = vtanh.pop %v3050
        %v3371 = vtanh.pop %v3051
        %v3372 = vtanh.pop %v3052
        %v3373 = vtanh.pop %v3053
        %v3374 = vtanh.pop %v3054
        %v3375 = vtanh.pop %v3055
        %v3376 = vtanh.pop %v3056
        %v3377 = vtanh.pop %v3057
        %v3378 = vtanh.pop %v3058
        %v3379 = vtanh.pop %v3059
        %v3380 = vtanh.pop %v3060
        %v3381 = vtanh.pop %v3061
        %v3382 = vtanh.pop %v3062
        %v3383 = vtanh.pop %v3063
        %v3384 = vtanh.pop %v3064
        %v3385 = vtanh.pop %v3065
        %v3386 = vtanh.pop %v3066
        %v3387 = vtanh.pop %v3067
        %v3388 = vtanh.pop %v3068
        %v3389 = vtanh.pop %v3069
        %v3390 = vtanh.pop %v3070
        %v3391 = vtanh.pop %v3071
        %v3392 = vtanh.pop %v3072
        %v3393 = vtanh.pop %v3073
        %v3394 = vtanh.pop %v3074
        %v3395 = vtanh.pop %v3075
        %v3396 = vtanh.pop %v3076
        %v3397 = vtanh.pop %v3077
        %v3398 = vtanh.pop %v3078
        %v3399 = vtanh.pop %v3079
        %v3400 = vtanh.pop %v3080
        %v3401 = vtanh.pop %v3081
        %v3402 = vtanh.pop %v3082
        %v3403 = vtanh.pop %v3083
        %v3404 = vtanh.pop %v3084
        %v3405 = vtanh.pop %v3085
        %v3406 = vtanh.pop %v3086
        %v3407 = vtanh.pop %v3087
        %v3408 = vtanh.pop %v3088
        %v3409 = vtanh.pop %v3089
        %v3410 = vtanh.pop %v3090
        %v3411 = vtanh.pop %v3091
        %v3412 = vtanh.pop %v3092
        %v3413 = vtanh.pop %v3093
        %v3414 = vtanh.pop %v3094
        %v3415 = vtanh.pop %v3095
        %v3416 = vtanh.pop %v3096
        %v3417 = vtanh.pop %v3097
        %v3418 = vtanh.pop %v3098
        %v3419 = vtanh.pop %v3099
        %v3420 = vtanh.pop %v3100
        %v3421 = vtanh.pop %v3101
        %v3422 = vtanh.pop %v3102
        %v3423 = vtanh.pop %v3103
        %v3424 = vtanh.pop %v3104
        %v3425 = vtanh.pop %v3105
        %v3426 = vtanh.pop %v3106
        %v3427 = vtanh.pop %v3107
        %v3428 = vtanh.pop %v3108
        %v3429 = vtanh.pop %v3109
        %v3430 = vtanh.pop %v3110
        %v3431 = vtanh.pop %v3111
        %v3432 = vtanh.pop %v3112
        %v3433 = vtanh.pop %v3113
        %v3434 = vtanh.pop %v3114
        %v3435 = vtanh.pop %v3115
        %v3436 = vtanh.pop %v3116
        %v3437 = vtanh.pop %v3117
        %v3438 = vtanh.pop %v3118
        %v3439 = vtanh.pop %v3119
        %v3440 = vtanh.pop %v3120
        %v3441 = vtanh.pop %v3121
        %v3442 = vtanh.pop %v3122
        %v3443 = vtanh.pop %v3123
        %v3444 = vtanh.pop %v3124
        %v3445 = vtanh.pop %v3125
        %v3446 = vtanh.pop %v3126
        %v3447 = vtanh.pop %v3127
        %v3448 = vtanh.pop %v3128
        %v3449 = vtanh.pop %v3129
        %v3450 = vtanh.pop %v3130
        %v3451 = vtanh.pop %v3131
        %v3452 = vtanh.pop %v3132
        %v3453 = vtanh.pop %v3133
        %v3454 = vtanh.pop %v3134
        %v3455 = vtanh.pop %v3135
        %v3456 = vtanh.pop %v3136
        %v3457 = vtanh.pop %v3137
        %v3458 = vtanh.pop %v3138
        %v3459 = vtanh.pop %v3139
        %v3460 = vtanh.pop %v3140
        %v3461 = vtanh.pop %v3141
        %v3462 = vtanh.pop %v3142
        %v3463 = vtanh.pop %v3143
        %v3464 = vtanh.pop %v3144
        %v3465 = vtanh.pop %v3145
        %v3466 = vtanh.pop %v3146
        %v3467 = vtanh.pop %v3147
        %v3468 = vtanh.pop %v3148
        %v3469 = vtanh.pop %v3149
        %v3470 = vtanh.pop %v3150
        %v3471 = vtanh.pop %v3151
        %v3472 = vtanh.pop %v3152
        %v3473 = vtanh.pop %v3153
        %v3474 = vtanh.pop %v3154
        %v3475 = vtanh.pop %v3155
        %v3476 = vtanh.pop %v3156
        %v3477 = vtanh.pop %v3157
        %v3478 = vtanh.pop %v3158
        %v3479 = vtanh.pop %v3159
        %v3480 = vtanh.pop %v3160
        %v3481 = vtanh.pop %v3161
        %v3482 = vtanh.pop %v3162
        %v3483 = vtanh.pop %v3163
        %v3484 = vtanh.pop %v3164
        %v3485 = vtanh.pop %v3165
        %v3486 = vtanh.pop %v3166
        %v3487 = vtanh.pop %v3167
        %v3488 = vtanh.pop %v3168
        %v3489 = vtanh.pop %v3169
        %v3490 = vtanh.pop %v3170
        %v3491 = vtanh.pop %v3171
        %v3492 = vtanh.pop %v3172
        %v3493 = vtanh.pop %v3173
        %v3494 = vtanh.pop %v3174
        %v3495 = vtanh.pop %v3175
        %v3496 = vtanh.pop %v3176
        %v3497 = vtanh.pop %v3177
        %v3498 = vtanh.pop %v3178
        %v3499 = vtanh.pop %v3179
        %v3500 = vtanh.pop %v3180
        %v3501 = vtanh.pop %v3181
        %v3502 = vtanh.pop %v3182
        %v3503 = vtanh.pop %v3183
        %v3504 = vtanh.pop %v3184
        %v3505 = vtanh.pop %v3185
        %v3506 = vtanh.pop %v3186
        %v3507 = vtanh.pop %v3187
        %v3508 = vtanh.pop %v3188
        %v3509 = vtanh.pop %v3189
        %v3510 = vtanh.pop %v3190
        %v3511 = vtanh.pop %v3191
        %v3512 = vtanh.pop %v3192
        %v3513 = vtanh.pop %v3193
        %v3514 = vtanh.pop %v3194
        %v3515 = vtanh.pop %v3195
        %v3516 = vtanh.pop %v3196
        %v3517 = vtanh.pop %v3197
        %v3518 = vtanh.pop %v3198
        %v3519 = vtanh.pop %v3199
        %v3520 = vtanh.pop %v3200
        %v3521 = vtanh.pop %v3201
        %v3522 = vtanh.pop %v3202
        %v3523 = vtanh.pop %v3203
        %v3524 = vtanh.pop %v3204
        %v3525 = vtanh.pop %v3205
        %v3526 = vtanh.pop %v3206
        %v3527 = vtanh.pop %v3207
        %v3528 = vtanh.pop %v3208
        %v3529 = vtanh.pop %v3209
        %v3530 = vtanh.pop %v3210
        %v3531 = vtanh.pop %v3211
        %v3532 = vtanh.pop %v3212
        %v3533 = vtanh.pop %v3213
        %v3534 = vtanh.pop %v3214
        %v3535 = vtanh.pop %v3215
        %v3536 = vtanh.pop %v3216
        %v3537 = vtanh.pop %v3217
        %v3538 = vtanh.pop %v3218
        %v3539 = vtanh.pop %v3219
        %v3540 = vtanh.pop %v3220
        %v3541 = vtanh.pop %v3221
        %v3542 = vtanh.pop %v3222
        %v3543 = vtanh.pop %v3223
        %v3544 = vtanh.pop %v3224
        %v3545 = vtanh.pop %v3225
        %v3546 = vtanh.pop %v3226
        %v3547 = vtanh.pop %v3227
        %v3548 = vtanh.pop %v3228
        %v3549 = vtanh.pop %v3229
        %v3550 = vtanh.pop %v3230
        %v3551 = vtanh.pop %v3231
        %v3552 = vtanh.pop %v3232
        %v3553 = vtanh.pop %v3233
        %v3554 = vtanh.pop %v3234
        %v3555 = vtanh.pop %v3235
        %v3556 = vtanh.pop %v3236
        %v3557 = vtanh.pop %v3237
        %v3558 = vtanh.pop %v3238
        %v3559 = vtanh.pop %v3239
        %v3560 = vtanh.pop %v3240
        %v3561 = vtanh.pop %v3241
        %v3562 = vtanh.pop %v3242
        %v3563 = vtanh.pop %v3243
        %v3564 = vtanh.pop %v3244
        %v3565 = vtanh.pop %v3245
        %v3566 = vtanh.pop %v3246
        %v3567 = vtanh.pop %v3247
        %v3568 = vtanh.pop %v3248
        %v3569 = vtanh.pop %v3249
        %v3570 = vtanh.pop %v3250
        %v3571 = vtanh.pop %v3251
        %v3572 = vtanh.pop %v3252
        %v3573 = vtanh.pop %v3253
        %v3574 = vtanh.pop %v3254
        %v3575 = vtanh.pop %v3255
        %v3576 = vtanh.pop %v3256
        %v3577 = vtanh.pop %v3257
        %v3578 = vtanh.pop %v3258
        %v3579 = vtanh.pop %v3259
        %v3580 = vtanh.pop %v3260
        %v3581 = vtanh.pop %v3261
        %v3582 = vtanh.pop %v3262
        %v3583 = vtanh.pop %v3263
        %v3584 = vtanh.pop %v3264
        %v3585 = vtanh.pop %v3265
        %v3586 = vtanh.pop %v3266
        %v3587 = vtanh.pop %v3267
        %v3588 = vtanh.pop %v3268
        %v3589 = vtanh.pop %v3269
        %v3590 = vtanh.pop %v3270
        %v3591 = vtanh.pop %v3271
        %v3592 = vtanh.pop %v3272
        %v3593 = vtanh.pop %v3273
        %v3594 = vtanh.pop %v3274
        %v3595 = vtanh.pop %v3275
        %v3596 = vtanh.pop %v3276
        %v3597 = vtanh.pop %v3277
        %v3598 = vtanh.pop %v3278
        %v3599 = vtanh.pop %v3279
        %v3600 = vtanh.pop %v3280
        %v3601 = vtanh.pop %v3281
        %v3602 = vtanh.pop %v3282
        %v3603 = vtanh.pop %v3283
        %v3604 = vtanh.pop %v3284
        %v3605 = vtanh.pop %v3285
        %v3606 = vtanh.pop %v3286
        %v3607 = vtanh.pop %v3287
        %v3608 = vtanh.pop %v3288
        %v3609 = vtanh.pop %v3289
        %v3610 = vtanh.pop %v3290
        %v3611 = vtanh.pop %v3291
        %v3612 = vtanh.pop %v3292
        %v3613 = vtanh.pop %v3293
        %v3614 = vtanh.pop %v3294
        %v3615 = vtanh.pop %v3295
        %v3616 = vtanh.pop %v3296
        %v3617 = vtanh.pop %v3297
        %v3618 = vmul.f32 %v3298, 0.5
        %v3619 = vmul.f32 %v3299, 0.5
        %v3620 = vmul.f32 %v3300, 0.5
        %v3621 = vmul.f32 %v3301, 0.5
        %v3622 = vmul.f32 %v3302, 0.5
        %v3623 = vmul.f32 %v3303, 0.5
        %v3624 = vmul.f32 %v3304, 0.5
        %v3625 = vmul.f32 %v3305, 0.5
        %v3626 = vmul.f32 %v3306, 0.5
        %v3627 = vmul.f32 %v3307, 0.5
        %v3628 = vmul.f32 %v3308, 0.5
        %v3629 = vmul.f32 %v3309, 0.5
        %v3630 = vmul.f32 %v3310, 0.5
        %v3631 = vmul.f32 %v3311, 0.5
        %v3632 = vmul.f32 %v3312, 0.5
        %v3633 = vmul.f32 %v3313, 0.5
        %v3634 = vmul.f32 %v3314, 0.5
        %v3635 = vmul.f32 %v3315, 0.5
        %v3636 = vmul.f32 %v3316, 0.5
        %v3637 = vmul.f32 %v3317, 0.5
        %v3638 = vmul.f32 %v3318, 0.5
        %v3639 = vmul.f32 %v3319, 0.5
        %v3640 = vmul.f32 %v3320, 0.5
        %v3641 = vmul.f32 %v3321, 0.5
        %v3642 = vmul.f32 %v3322, 0.5
        %v3643 = vmul.f32 %v3323, 0.5
        %v3644 = vmul.f32 %v3324, 0.5
        %v3645 = vmul.f32 %v3325, 0.5
        %v3646 = vmul.f32 %v3326, 0.5
        %v3647 = vmul.f32 %v3327, 0.5
        %v3648 = vmul.f32 %v3328, 0.5
        %v3649 = vmul.f32 %v3329, 0.5
        %v3650 = vmul.f32 %v3330, 0.5
        %v3651 = vmul.f32 %v3331, 0.5
        %v3652 = vmul.f32 %v3332, 0.5
        %v3653 = vmul.f32 %v3333, 0.5
        %v3654 = vmul.f32 %v3334, 0.5
        %v3655 = vmul.f32 %v3335, 0.5
        %v3656 = vmul.f32 %v3336, 0.5
        %v3657 = vmul.f32 %v3337, 0.5
        %v3658 = vmul.f32 %v3338, 0.5
        %v3659 = vmul.f32 %v3339, 0.5
        %v3660 = vmul.f32 %v3340, 0.5
        %v3661 = vmul.f32 %v3341, 0.5
        %v3662 = vmul.f32 %v3342, 0.5
        %v3663 = vmul.f32 %v3343, 0.5
        %v3664 = vmul.f32 %v3344, 0.5
        %v3665 = vmul.f32 %v3345, 0.5
        %v3666 = vmul.f32 %v3346, 0.5
        %v3667 = vmul.f32 %v3347, 0.5
        %v3668 = vmul.f32 %v3348, 0.5
        %v3669 = vmul.f32 %v3349, 0.5
        %v3670 = vmul.f32 %v3350, 0.5
        %v3671 = vmul.f32 %v3351, 0.5
        %v3672 = vmul.f32 %v3352, 0.5
        %v3673 = vmul.f32 %v3353, 0.5
        %v3674 = vmul.f32 %v3354, 0.5
        %v3675 = vmul.f32 %v3355, 0.5
        %v3676 = vmul.f32 %v3356, 0.5
        %v3677 = vmul.f32 %v3357, 0.5
        %v3678 = vmul.f32 %v3358, 0.5
        %v3679 = vmul.f32 %v3359, 0.5
        %v3680 = vmul.f32 %v3360, 0.5
        %v3681 = vmul.f32 %v3361, 0.5
        %v3682 = vmul.f32 %v3362, 0.5
        %v3683 = vmul.f32 %v3363, 0.5
        %v3684 = vmul.f32 %v3364, 0.5
        %v3685 = vmul.f32 %v3365, 0.5
        %v3686 = vmul.f32 %v3366, 0.5
        %v3687 = vmul.f32 %v3367, 0.5
        %v3688 = vmul.f32 %v3368, 0.5
        %v3689 = vmul.f32 %v3369, 0.5
        %v3690 = vmul.f32 %v3370, 0.5
        %v3691 = vmul.f32 %v3371, 0.5
        %v3692 = vmul.f32 %v3372, 0.5
        %v3693 = vmul.f32 %v3373, 0.5
        %v3694 = vmul.f32 %v3374, 0.5
        %v3695 = vmul.f32 %v3375, 0.5
        %v3696 = vmul.f32 %v3376, 0.5
        %v3697 = vmul.f32 %v3377, 0.5
        %v3698 = vmul.f32 %v3378, 0.5
        %v3699 = vmul.f32 %v3379, 0.5
        %v3700 = vmul.f32 %v3380, 0.5
        %v3701 = vmul.f32 %v3381, 0.5
        %v3702 = vmul.f32 %v3382, 0.5
        %v3703 = vmul.f32 %v3383, 0.5
        %v3704 = vmul.f32 %v3384, 0.5
        %v3705 = vmul.f32 %v3385, 0.5
        %v3706 = vmul.f32 %v3386, 0.5
        %v3707 = vmul.f32 %v3387, 0.5
        %v3708 = vmul.f32 %v3388, 0.5
        %v3709 = vmul.f32 %v3389, 0.5
        %v3710 = vmul.f32 %v3390, 0.5
        %v3711 = vmul.f32 %v3391, 0.5
        %v3712 = vmul.f32 %v3392, 0.5
        %v3713 = vmul.f32 %v3393, 0.5
        %v3714 = vmul.f32 %v3394, 0.5
        %v3715 = vmul.f32 %v3395, 0.5
        %v3716 = vmul.f32 %v3396, 0.5
        %v3717 = vmul.f32 %v3397, 0.5
        %v3718 = vmul.f32 %v3398, 0.5
        %v3719 = vmul.f32 %v3399, 0.5
        %v3720 = vmul.f32 %v3400, 0.5
        %v3721 = vmul.f32 %v3401, 0.5
        %v3722 = vmul.f32 %v3402, 0.5
        %v3723 = vmul.f32 %v3403, 0.5
        %v3724 = vmul.f32 %v3404, 0.5
        %v3725 = vmul.f32 %v3405, 0.5
        %v3726 = vmul.f32 %v3406, 0.5
        %v3727 = vmul.f32 %v3407, 0.5
        %v3728 = vmul.f32 %v3408, 0.5
        %v3729 = vmul.f32 %v3409, 0.5
        %v3730 = vmul.f32 %v3410, 0.5
        %v3731 = vmul.f32 %v3411, 0.5
        %v3732 = vmul.f32 %v3412, 0.5
        %v3733 = vmul.f32 %v3413, 0.5
        %v3734 = vmul.f32 %v3414, 0.5
        %v3735 = vmul.f32 %v3415, 0.5
        %v3736 = vmul.f32 %v3416, 0.5
        %v3737 = vmul.f32 %v3417, 0.5
        %v3738 = vmul.f32 %v3418, 0.5
        %v3739 = vmul.f32 %v3419, 0.5
        %v3740 = vmul.f32 %v3420, 0.5
        %v3741 = vmul.f32 %v3421, 0.5
        %v3742 = vmul.f32 %v3422, 0.5
        %v3743 = vmul.f32 %v3423, 0.5
        %v3744 = vmul.f32 %v3424, 0.5
        %v3745 = vmul.f32 %v3425, 0.5
        %v3746 = vmul.f32 %v3426, 0.5
        %v3747 = vmul.f32 %v3427, 0.5
        %v3748 = vmul.f32 %v3428, 0.5
        %v3749 = vmul.f32 %v3429, 0.5
        %v3750 = vmul.f32 %v3430, 0.5
        %v3751 = vmul.f32 %v3431, 0.5
        %v3752 = vmul.f32 %v3432, 0.5
        %v3753 = vmul.f32 %v3433, 0.5
        %v3754 = vmul.f32 %v3434, 0.5
        %v3755 = vmul.f32 %v3435, 0.5
        %v3756 = vmul.f32 %v3436, 0.5
        %v3757 = vmul.f32 %v3437, 0.5
        %v3758 = vmul.f32 %v3438, 0.5
        %v3759 = vmul.f32 %v3439, 0.5
        %v3760 = vmul.f32 %v3440, 0.5
        %v3761 = vmul.f32 %v3441, 0.5
        %v3762 = vmul.f32 %v3442, 0.5
        %v3763 = vmul.f32 %v3443, 0.5
        %v3764 = vmul.f32 %v3444, 0.5
        %v3765 = vmul.f32 %v3445, 0.5
        %v3766 = vmul.f32 %v3446, 0.5
        %v3767 = vmul.f32 %v3447, 0.5
        %v3768 = vmul.f32 %v3448, 0.5
        %v3769 = vmul.f32 %v3449, 0.5
        %v3770 = vmul.f32 %v3450, 0.5
        %v3771 = vmul.f32 %v3451, 0.5
        %v3772 = vmul.f32 %v3452, 0.5
        %v3773 = vmul.f32 %v3453, 0.5
        %v3774 = vmul.f32 %v3454, 0.5
        %v3775 = vmul.f32 %v3455, 0.5
        %v3776 = vmul.f32 %v3456, 0.5
        %v3777 = vmul.f32 %v3457, 0.5
        %v3778 = vmul.f32 %v3458, 0.5
        %v3779 = vmul.f32 %v3459, 0.5
        %v3780 = vmul.f32 %v3460, 0.5
        %v3781 = vmul.f32 %v3461, 0.5
        %v3782 = vmul.f32 %v3462, 0.5
        %v3783 = vmul.f32 %v3463, 0.5
        %v3784 = vmul.f32 %v3464, 0.5
        %v3785 = vmul.f32 %v3465, 0.5
        %v3786 = vmul.f32 %v3466, 0.5
        %v3787 = vmul.f32 %v3467, 0.5
        %v3788 = vmul.f32 %v3468, 0.5
        %v3789 = vmul.f32 %v3469, 0.5
        %v3790 = vmul.f32 %v3470, 0.5
        %v3791 = vmul.f32 %v3471, 0.5
        %v3792 = vmul.f32 %v3472, 0.5
        %v3793 = vmul.f32 %v3473, 0.5
        %v3794 = vmul.f32 %v3474, 0.5
        %v3795 = vmul.f32 %v3475, 0.5
        %v3796 = vmul.f32 %v3476, 0.5
        %v3797 = vmul.f32 %v3477, 0.5
        %v3798 = vmul.f32 %v3478, 0.5
        %v3799 = vmul.f32 %v3479, 0.5
        %v3800 = vmul.f32 %v3480, 0.5
        %v3801 = vmul.f32 %v3481, 0.5
        %v3802 = vmul.f32 %v3482, 0.5
        %v3803 = vmul.f32 %v3483, 0.5
        %v3804 = vmul.f32 %v3484, 0.5
        %v3805 = vmul.f32 %v3485, 0.5
        %v3806 = vmul.f32 %v3486, 0.5
        %v3807 = vmul.f32 %v3487, 0.5
        %v3808 = vmul.f32 %v3488, 0.5
        %v3809 = vmul.f32 %v3489, 0.5
        %v3810 = vmul.f32 %v3490, 0.5
        %v3811 = vmul.f32 %v3491, 0.5
        %v3812 = vmul.f32 %v3492, 0.5
        %v3813 = vmul.f32 %v3493, 0.5
        %v3814 = vmul.f32 %v3494, 0.5
        %v3815 = vmul.f32 %v3495, 0.5
        %v3816 = vmul.f32 %v3496, 0.5
        %v3817 = vmul.f32 %v3497, 0.5
        %v3818 = vmul.f32 %v3498, 0.5
        %v3819 = vmul.f32 %v3499, 0.5
        %v3820 = vmul.f32 %v3500, 0.5
        %v3821 = vmul.f32 %v3501, 0.5
        %v3822 = vmul.f32 %v3502, 0.5
        %v3823 = vmul.f32 %v3503, 0.5
        %v3824 = vmul.f32 %v3504, 0.5
        %v3825 = vmul.f32 %v3505, 0.5
        %v3826 = vmul.f32 %v3506, 0.5
        %v3827 = vmul.f32 %v3507, 0.5
        %v3828 = vmul.f32 %v3508, 0.5
        %v3829 = vmul.f32 %v3509, 0.5
        %v3830 = vmul.f32 %v3510, 0.5
        %v3831 = vmul.f32 %v3511, 0.5
        %v3832 = vmul.f32 %v3512, 0.5
        %v3833 = vmul.f32 %v3513, 0.5
        %v3834 = vmul.f32 %v3514, 0.5
        %v3835 = vmul.f32 %v3515, 0.5
        %v3836 = vmul.f32 %v3516, 0.5
        %v3837 = vmul.f32 %v3517, 0.5
        %v3838 = vmul.f32 %v3518, 0.5
        %v3839 = vmul.f32 %v3519, 0.5
        %v3840 = vmul.f32 %v3520, 0.5
        %v3841 = vmul.f32 %v3521, 0.5
        %v3842 = vmul.f32 %v3522, 0.5
        %v3843 = vmul.f32 %v3523, 0.5
        %v3844 = vmul.f32 %v3524, 0.5
        %v3845 = vmul.f32 %v3525, 0.5
        %v3846 = vmul.f32 %v3526, 0.5
        %v3847 = vmul.f32 %v3527, 0.5
        %v3848 = vmul.f32 %v3528, 0.5
        %v3849 = vmul.f32 %v3529, 0.5
        %v3850 = vmul.f32 %v3530, 0.5
        %v3851 = vmul.f32 %v3531, 0.5
        %v3852 = vmul.f32 %v3532, 0.5
        %v3853 = vmul.f32 %v3533, 0.5
        %v3854 = vmul.f32 %v3534, 0.5
        %v3855 = vmul.f32 %v3535, 0.5
        %v3856 = vmul.f32 %v3536, 0.5
        %v3857 = vmul.f32 %v3537, 0.5
        %v3858 = vmul.f32 %v3538, 0.5
        %v3859 = vmul.f32 %v3539, 0.5
        %v3860 = vmul.f32 %v3540, 0.5
        %v3861 = vmul.f32 %v3541, 0.5
        %v3862 = vmul.f32 %v3542, 0.5
        %v3863 = vmul.f32 %v3543, 0.5
        %v3864 = vmul.f32 %v3544, 0.5
        %v3865 = vmul.f32 %v3545, 0.5
        %v3866 = vmul.f32 %v3546, 0.5
        %v3867 = vmul.f32 %v3547, 0.5
        %v3868 = vmul.f32 %v3548, 0.5
        %v3869 = vmul.f32 %v3549, 0.5
        %v3870 = vmul.f32 %v3550, 0.5
        %v3871 = vmul.f32 %v3551, 0.5
        %v3872 = vmul.f32 %v3552, 0.5
        %v3873 = vmul.f32 %v3553, 0.5
        %v3874 = vmul.f32 %v3554, 0.5
        %v3875 = vmul.f32 %v3555, 0.5
        %v3876 = vmul.f32 %v3556, 0.5
        %v3877 = vmul.f32 %v3557, 0.5
        %v3878 = vmul.f32 %v3558, 0.5
        %v3879 = vmul.f32 %v3559, 0.5
        %v3880 = vmul.f32 %v3560, 0.5
        %v3881 = vmul.f32 %v3561, 0.5
        %v3882 = vmul.f32 %v3562, 0.5
        %v3883 = vmul.f32 %v3563, 0.5
        %v3884 = vmul.f32 %v3564, 0.5
        %v3885 = vmul.f32 %v3565, 0.5
        %v3886 = vmul.f32 %v3566, 0.5
        %v3887 = vmul.f32 %v3567, 0.5
        %v3888 = vmul.f32 %v3568, 0.5
        %v3889 = vmul.f32 %v3569, 0.5
        %v3890 = vmul.f32 %v3570, 0.5
        %v3891 = vmul.f32 %v3571, 0.5
        %v3892 = vmul.f32 %v3572, 0.5
        %v3893 = vmul.f32 %v3573, 0.5
        %v3894 = vmul.f32 %v3574, 0.5
        %v3895 = vmul.f32 %v3575, 0.5
        %v3896 = vmul.f32 %v3576, 0.5
        %v3897 = vmul.f32 %v3577, 0.5
        %v3898 = vmul.f32 %v3578, 0.5
        %v3899 = vmul.f32 %v3579, 0.5
        %v3900 = vmul.f32 %v3580, 0.5
        %v3901 = vmul.f32 %v3581, 0.5
        %v3902 = vmul.f32 %v3582, 0.5
        %v3903 = vmul.f32 %v3583, 0.5
        %v3904 = vmul.f32 %v3584, 0.5
        %v3905 = vmul.f32 %v3585, 0.5
        %v3906 = vmul.f32 %v3586, 0.5
        %v3907 = vmul.f32 %v3587, 0.5
        %v3908 = vmul.f32 %v3588, 0.5
        %v3909 = vmul.f32 %v3589, 0.5
        %v3910 = vmul.f32 %v3590, 0.5
        %v3911 = vmul.f32 %v3591, 0.5
        %v3912 = vmul.f32 %v3592, 0.5
        %v3913 = vmul.f32 %v3593, 0.5
        %v3914 = vmul.f32 %v3594, 0.5
        %v3915 = vmul.f32 %v3595, 0.5
        %v3916 = vmul.f32 %v3596, 0.5
        %v3917 = vmul.f32 %v3597, 0.5
        %v3918 = vmul.f32 %v3598, 0.5
        %v3919 = vmul.f32 %v3599, 0.5
        %v3920 = vmul.f32 %v3600, 0.5
        %v3921 = vmul.f32 %v3601, 0.5
        %v3922 = vmul.f32 %v3602, 0.5
        %v3923 = vmul.f32 %v3603, 0.5
        %v3924 = vmul.f32 %v3604, 0.5
        %v3925 = vmul.f32 %v3605, 0.5
        %v3926 = vmul.f32 %v3606, 0.5
        %v3927 = vmul.f32 %v3607, 0.5
        %v3928 = vmul.f32 %v3608, 0.5
        %v3929 = vmul.f32 %v3609, 0.5
        %v3930 = vmul.f32 %v3610, 0.5
        %v3931 = vmul.f32 %v3611, 0.5
        %v3932 = vmul.f32 %v3612, 0.5
        %v3933 = vmul.f32 %v3613, 0.5
        %v3934 = vmul.f32 %v3614, 0.5
        %v3935 = vmul.f32 %v3615, 0.5
        %v3936 = vmul.f32 %v3616, 0.5
        %v3937 = vmul.f32 %v3617, 0.5
        %v3938 = vadd.f32 %v3618, 0.5
        %v3939 = vadd.f32 %v3619, 0.5
        %v3940 = vadd.f32 %v3620, 0.5
        %v3941 = vadd.f32 %v3621, 0.5
        %v3942 = vadd.f32 %v3622, 0.5
        %v3943 = vadd.f32 %v3623, 0.5
        %v3944 = vadd.f32 %v3624, 0.5
        %v3945 = vadd.f32 %v3625, 0.5
        %v3946 = vadd.f32 %v3626, 0.5
        %v3947 = vadd.f32 %v3627, 0.5
        %v3948 = vadd.f32 %v3628, 0.5
        %v3949 = vadd.f32 %v3629, 0.5
        %v3950 = vadd.f32 %v3630, 0.5
        %v3951 = vadd.f32 %v3631, 0.5
        %v3952 = vadd.f32 %v3632, 0.5
        %v3953 = vadd.f32 %v3633, 0.5
        %v3954 = vadd.f32 %v3634, 0.5
        %v3955 = vadd.f32 %v3635, 0.5
        %v3956 = vadd.f32 %v3636, 0.5
        %v3957 = vadd.f32 %v3637, 0.5
        %v3958 = vadd.f32 %v3638, 0.5
        %v3959 = vadd.f32 %v3639, 0.5
        %v3960 = vadd.f32 %v3640, 0.5
        %v3961 = vadd.f32 %v3641, 0.5
        %v3962 = vadd.f32 %v3642, 0.5
        %v3963 = vadd.f32 %v3643, 0.5
        %v3964 = vadd.f32 %v3644, 0.5
        %v3965 = vadd.f32 %v3645, 0.5
        %v3966 = vadd.f32 %v3646, 0.5
        %v3967 = vadd.f32 %v3647, 0.5
        %v3968 = vadd.f32 %v3648, 0.5
        %v3969 = vadd.f32 %v3649, 0.5
        %v3970 = vadd.f32 %v3650, 0.5
        %v3971 = vadd.f32 %v3651, 0.5
        %v3972 = vadd.f32 %v3652, 0.5
        %v3973 = vadd.f32 %v3653, 0.5
        %v3974 = vadd.f32 %v3654, 0.5
        %v3975 = vadd.f32 %v3655, 0.5
        %v3976 = vadd.f32 %v3656, 0.5
        %v3977 = vadd.f32 %v3657, 0.5
        %v3978 = vadd.f32 %v3658, 0.5
        %v3979 = vadd.f32 %v3659, 0.5
        %v3980 = vadd.f32 %v3660, 0.5
        %v3981 = vadd.f32 %v3661, 0.5
        %v3982 = vadd.f32 %v3662, 0.5
        %v3983 = vadd.f32 %v3663, 0.5
        %v3984 = vadd.f32 %v3664, 0.5
        %v3985 = vadd.f32 %v3665, 0.5
        %v3986 = vadd.f32 %v3666, 0.5
        %v3987 = vadd.f32 %v3667, 0.5
        %v3988 = vadd.f32 %v3668, 0.5
        %v3989 = vadd.f32 %v3669, 0.5
        %v3990 = vadd.f32 %v3670, 0.5
        %v3991 = vadd.f32 %v3671, 0.5
        %v3992 = vadd.f32 %v3672, 0.5
        %v3993 = vadd.f32 %v3673, 0.5
        %v3994 = vadd.f32 %v3674, 0.5
        %v3995 = vadd.f32 %v3675, 0.5
        %v3996 = vadd.f32 %v3676, 0.5
        %v3997 = vadd.f32 %v3677, 0.5
        %v3998 = vadd.f32 %v3678, 0.5
        %v3999 = vadd.f32 %v3679, 0.5
        %v4000 = vadd.f32 %v3680, 0.5
        %v4001 = vadd.f32 %v3681, 0.5
        %v4002 = vadd.f32 %v3682, 0.5
        %v4003 = vadd.f32 %v3683, 0.5
        %v4004 = vadd.f32 %v3684, 0.5
        %v4005 = vadd.f32 %v3685, 0.5
        %v4006 = vadd.f32 %v3686, 0.5
        %v4007 = vadd.f32 %v3687, 0.5
        %v4008 = vadd.f32 %v3688, 0.5
        %v4009 = vadd.f32 %v3689, 0.5
        %v4010 = vadd.f32 %v3690, 0.5
        %v4011 = vadd.f32 %v3691, 0.5
        %v4012 = vadd.f32 %v3692, 0.5
        %v4013 = vadd.f32 %v3693, 0.5
        %v4014 = vadd.f32 %v3694, 0.5
        %v4015 = vadd.f32 %v3695, 0.5
        %v4016 = vadd.f32 %v3696, 0.5
        %v4017 = vadd.f32 %v3697, 0.5
        %v4018 = vadd.f32 %v3698, 0.5
        %v4019 = vadd.f32 %v3699, 0.5
        %v4020 = vadd.f32 %v3700, 0.5
        %v4021 = vadd.f32 %v3701, 0.5
        %v4022 = vadd.f32 %v3702, 0.5
        %v4023 = vadd.f32 %v3703, 0.5
        %v4024 = vadd.f32 %v3704, 0.5
        %v4025 = vadd.f32 %v3705, 0.5
        %v4026 = vadd.f32 %v3706, 0.5
        %v4027 = vadd.f32 %v3707, 0.5
        %v4028 = vadd.f32 %v3708, 0.5
        %v4029 = vadd.f32 %v3709, 0.5
        %v4030 = vadd.f32 %v3710, 0.5
        %v4031 = vadd.f32 %v3711, 0.5
        %v4032 = vadd.f32 %v3712, 0.5
        %v4033 = vadd.f32 %v3713, 0.5
        %v4034 = vadd.f32 %v3714, 0.5
        %v4035 = vadd.f32 %v3715, 0.5
        %v4036 = vadd.f32 %v3716, 0.5
        %v4037 = vadd.f32 %v3717, 0.5
        %v4038 = vadd.f32 %v3718, 0.5
        %v4039 = vadd.f32 %v3719, 0.5
        %v4040 = vadd.f32 %v3720, 0.5
        %v4041 = vadd.f32 %v3721, 0.5
        %v4042 = vadd.f32 %v3722, 0.5
        %v4043 = vadd.f32 %v3723, 0.5
        %v4044 = vadd.f32 %v3724, 0.5
        %v4045 = vadd.f32 %v3725, 0.5
        %v4046 = vadd.f32 %v3726, 0.5
        %v4047 = vadd.f32 %v3727, 0.5
        %v4048 = vadd.f32 %v3728, 0.5
        %v4049 = vadd.f32 %v3729, 0.5
        %v4050 = vadd.f32 %v3730, 0.5
        %v4051 = vadd.f32 %v3731, 0.5
        %v4052 = vadd.f32 %v3732, 0.5
        %v4053 = vadd.f32 %v3733, 0.5
        %v4054 = vadd.f32 %v3734, 0.5
        %v4055 = vadd.f32 %v3735, 0.5
        %v4056 = vadd.f32 %v3736, 0.5
        %v4057 = vadd.f32 %v3737, 0.5
        %v4058 = vadd.f32 %v3738, 0.5
        %v4059 = vadd.f32 %v3739, 0.5
        %v4060 = vadd.f32 %v3740, 0.5
        %v4061 = vadd.f32 %v3741, 0.5
        %v4062 = vadd.f32 %v3742, 0.5
        %v4063 = vadd.f32 %v3743, 0.5
        %v4064 = vadd.f32 %v3744, 0.5
        %v4065 = vadd.f32 %v3745, 0.5
        %v4066 = vadd.f32 %v3746, 0.5
        %v4067 = vadd.f32 %v3747, 0.5
        %v4068 = vadd.f32 %v3748, 0.5
        %v4069 = vadd.f32 %v3749, 0.5
        %v4070 = vadd.f32 %v3750, 0.5
        %v4071 = vadd.f32 %v3751, 0.5
        %v4072 = vadd.f32 %v3752, 0.5
        %v4073 = vadd.f32 %v3753, 0.5
        %v4074 = vadd.f32 %v3754, 0.5
        %v4075 = vadd.f32 %v3755, 0.5
        %v4076 = vadd.f32 %v3756, 0.5
        %v4077 = vadd.f32 %v3757, 0.5
        %v4078 = vadd.f32 %v3758, 0.5
        %v4079 = vadd.f32 %v3759, 0.5
        %v4080 = vadd.f32 %v3760, 0.5
        %v4081 = vadd.f32 %v3761, 0.5
        %v4082 = vadd.f32 %v3762, 0.5
        %v4083 = vadd.f32 %v3763, 0.5
        %v4084 = vadd.f32 %v3764, 0.5
        %v4085 = vadd.f32 %v3765, 0.5
        %v4086 = vadd.f32 %v3766, 0.5
        %v4087 = vadd.f32 %v3767, 0.5
        %v4088 = vadd.f32 %v3768, 0.5
        %v4089 = vadd.f32 %v3769, 0.5
        %v4090 = vadd.f32 %v3770, 0.5
        %v4091 = vadd.f32 %v3771, 0.5
        %v4092 = vadd.f32 %v3772, 0.5
        %v4093 = vadd.f32 %v3773, 0.5
        %v4094 = vadd.f32 %v3774, 0.5
        %v4095 = vadd.f32 %v3775, 0.5
        %v4096 = vadd.f32 %v3776, 0.5
        %v4097 = vadd.f32 %v3777, 0.5
        %v4098 = vadd.f32 %v3778, 0.5
        %v4099 = vadd.f32 %v3779, 0.5
        %v4100 = vadd.f32 %v3780, 0.5
        %v4101 = vadd.f32 %v3781, 0.5
        %v4102 = vadd.f32 %v3782, 0.5
        %v4103 = vadd.f32 %v3783, 0.5
        %v4104 = vadd.f32 %v3784, 0.5
        %v4105 = vadd.f32 %v3785, 0.5
        %v4106 = vadd.f32 %v3786, 0.5
        %v4107 = vadd.f32 %v3787, 0.5
        %v4108 = vadd.f32 %v3788, 0.5
        %v4109 = vadd.f32 %v3789, 0.5
        %v4110 = vadd.f32 %v3790, 0.5
        %v4111 = vadd.f32 %v3791, 0.5
        %v4112 = vadd.f32 %v3792, 0.5
        %v4113 = vadd.f32 %v3793, 0.5
        %v4114 = vadd.f32 %v3794, 0.5
        %v4115 = vadd.f32 %v3795, 0.5
        %v4116 = vadd.f32 %v3796, 0.5
        %v4117 = vadd.f32 %v3797, 0.5
        %v4118 = vadd.f32 %v3798, 0.5
        %v4119 = vadd.f32 %v3799, 0.5
        %v4120 = vadd.f32 %v3800, 0.5
        %v4121 = vadd.f32 %v3801, 0.5
        %v4122 = vadd.f32 %v3802, 0.5
        %v4123 = vadd.f32 %v3803, 0.5
        %v4124 = vadd.f32 %v3804, 0.5
        %v4125 = vadd.f32 %v3805, 0.5
        %v4126 = vadd.f32 %v3806, 0.5
        %v4127 = vadd.f32 %v3807, 0.5
        %v4128 = vadd.f32 %v3808, 0.5
        %v4129 = vadd.f32 %v3809, 0.5
        %v4130 = vadd.f32 %v3810, 0.5
        %v4131 = vadd.f32 %v3811, 0.5
        %v4132 = vadd.f32 %v3812, 0.5
        %v4133 = vadd.f32 %v3813, 0.5
        %v4134 = vadd.f32 %v3814, 0.5
        %v4135 = vadd.f32 %v3815, 0.5
        %v4136 = vadd.f32 %v3816, 0.5
        %v4137 = vadd.f32 %v3817, 0.5
        %v4138 = vadd.f32 %v3818, 0.5
        %v4139 = vadd.f32 %v3819, 0.5
        %v4140 = vadd.f32 %v3820, 0.5
        %v4141 = vadd.f32 %v3821, 0.5
        %v4142 = vadd.f32 %v3822, 0.5
        %v4143 = vadd.f32 %v3823, 0.5
        %v4144 = vadd.f32 %v3824, 0.5
        %v4145 = vadd.f32 %v3825, 0.5
        %v4146 = vadd.f32 %v3826, 0.5
        %v4147 = vadd.f32 %v3827, 0.5
        %v4148 = vadd.f32 %v3828, 0.5
        %v4149 = vadd.f32 %v3829, 0.5
        %v4150 = vadd.f32 %v3830, 0.5
        %v4151 = vadd.f32 %v3831, 0.5
        %v4152 = vadd.f32 %v3832, 0.5
        %v4153 = vadd.f32 %v3833, 0.5
        %v4154 = vadd.f32 %v3834, 0.5
        %v4155 = vadd.f32 %v3835, 0.5
        %v4156 = vadd.f32 %v3836, 0.5
        %v4157 = vadd.f32 %v3837, 0.5
        %v4158 = vadd.f32 %v3838, 0.5
        %v4159 = vadd.f32 %v3839, 0.5
        %v4160 = vadd.f32 %v3840, 0.5
        %v4161 = vadd.f32 %v3841, 0.5
        %v4162 = vadd.f32 %v3842, 0.5
        %v4163 = vadd.f32 %v3843, 0.5
        %v4164 = vadd.f32 %v3844, 0.5
        %v4165 = vadd.f32 %v3845, 0.5
        %v4166 = vadd.f32 %v3846, 0.5
        %v4167 = vadd.f32 %v3847, 0.5
        %v4168 = vadd.f32 %v3848, 0.5
        %v4169 = vadd.f32 %v3849, 0.5
        %v4170 = vadd.f32 %v3850, 0.5
        %v4171 = vadd.f32 %v3851, 0.5
        %v4172 = vadd.f32 %v3852, 0.5
        %v4173 = vadd.f32 %v3853, 0.5
        %v4174 = vadd.f32 %v3854, 0.5
        %v4175 = vadd.f32 %v3855, 0.5
        %v4176 = vadd.f32 %v3856, 0.5
        %v4177 = vadd.f32 %v3857, 0.5
        %v4178 = vadd.f32 %v3858, 0.5
        %v4179 = vadd.f32 %v3859, 0.5
        %v4180 = vadd.f32 %v3860, 0.5
        %v4181 = vadd.f32 %v3861, 0.5
        %v4182 = vadd.f32 %v3862, 0.5
        %v4183 = vadd.f32 %v3863, 0.5
        %v4184 = vadd.f32 %v3864, 0.5
        %v4185 = vadd.f32 %v3865, 0.5
        %v4186 = vadd.f32 %v3866, 0.5
        %v4187 = vadd.f32 %v3867, 0.5
        %v4188 = vadd.f32 %v3868, 0.5
        %v4189 = vadd.f32 %v3869, 0.5
        %v4190 = vadd.f32 %v3870, 0.5
        %v4191 = vadd.f32 %v3871, 0.5
        %v4192 = vadd.f32 %v3872, 0.5
        %v4193 = vadd.f32 %v3873, 0.5
        %v4194 = vadd.f32 %v3874, 0.5
        %v4195 = vadd.f32 %v3875, 0.5
        %v4196 = vadd.f32 %v3876, 0.5
        %v4197 = vadd.f32 %v3877, 0.5
        %v4198 = vadd.f32 %v3878, 0.5
        %v4199 = vadd.f32 %v3879, 0.5
        %v4200 = vadd.f32 %v3880, 0.5
        %v4201 = vadd.f32 %v3881, 0.5
        %v4202 = vadd.f32 %v3882, 0.5
        %v4203 = vadd.f32 %v3883, 0.5
        %v4204 = vadd.f32 %v3884, 0.5
        %v4205 = vadd.f32 %v3885, 0.5
        %v4206 = vadd.f32 %v3886, 0.5
        %v4207 = vadd.f32 %v3887, 0.5
        %v4208 = vadd.f32 %v3888, 0.5
        %v4209 = vadd.f32 %v3889, 0.5
        %v4210 = vadd.f32 %v3890, 0.5
        %v4211 = vadd.f32 %v3891, 0.5
        %v4212 = vadd.f32 %v3892, 0.5
        %v4213 = vadd.f32 %v3893, 0.5
        %v4214 = vadd.f32 %v3894, 0.5
        %v4215 = vadd.f32 %v3895, 0.5
        %v4216 = vadd.f32 %v3896, 0.5
        %v4217 = vadd.f32 %v3897, 0.5
        %v4218 = vadd.f32 %v3898, 0.5
        %v4219 = vadd.f32 %v3899, 0.5
        %v4220 = vadd.f32 %v3900, 0.5
        %v4221 = vadd.f32 %v3901, 0.5
        %v4222 = vadd.f32 %v3902, 0.5
        %v4223 = vadd.f32 %v3903, 0.5
        %v4224 = vadd.f32 %v3904, 0.5
        %v4225 = vadd.f32 %v3905, 0.5
        %v4226 = vadd.f32 %v3906, 0.5
        %v4227 = vadd.f32 %v3907, 0.5
        %v4228 = vadd.f32 %v3908, 0.5
        %v4229 = vadd.f32 %v3909, 0.5
        %v4230 = vadd.f32 %v3910, 0.5
        %v4231 = vadd.f32 %v3911, 0.5
        %v4232 = vadd.f32 %v3912, 0.5
        %v4233 = vadd.f32 %v3913, 0.5
        %v4234 = vadd.f32 %v3914, 0.5
        %v4235 = vadd.f32 %v3915, 0.5
        %v4236 = vadd.f32 %v3916, 0.5
        %v4237 = vadd.f32 %v3917, 0.5
        %v4238 = vadd.f32 %v3918, 0.5
        %v4239 = vadd.f32 %v3919, 0.5
        %v4240 = vadd.f32 %v3920, 0.5
        %v4241 = vadd.f32 %v3921, 0.5
        %v4242 = vadd.f32 %v3922, 0.5
        %v4243 = vadd.f32 %v3923, 0.5
        %v4244 = vadd.f32 %v3924, 0.5
        %v4245 = vadd.f32 %v3925, 0.5
        %v4246 = vadd.f32 %v3926, 0.5
        %v4247 = vadd.f32 %v3927, 0.5
        %v4248 = vadd.f32 %v3928, 0.5
        %v4249 = vadd.f32 %v3929, 0.5
        %v4250 = vadd.f32 %v3930, 0.5
        %v4251 = vadd.f32 %v3931, 0.5
        %v4252 = vadd.f32 %v3932, 0.5
        %v4253 = vadd.f32 %v3933, 0.5
        %v4254 = vadd.f32 %v3934, 0.5
        %v4255 = vadd.f32 %v3935, 0.5
        %v4256 = vadd.f32 %v3936, 0.5
        %v4257 = vadd.f32 %v3937, 0.5
        %v4258 = vmul.f32 %v2180, %v3938
        %v4259 = vmul.f32 %v2182, %v3939
        %v4260 = vmul.f32 %v2184, %v3940
        %v4261 = vmul.f32 %v2186, %v3941
        %v4262 = vmul.f32 %v2190, %v3942
        %v4263 = vmul.f32 %v2192, %v3943
        %v4264 = vmul.f32 %v2194, %v3944
        %v4265 = vmul.f32 %v2196, %v3945
        %v4266 = vmul.f32 %v2200, %v3946
        %v4267 = vmul.f32 %v2202, %v3947
        %v4268 = vmul.f32 %v2204, %v3948
        %v4269 = vmul.f32 %v2206, %v3949
        %v4270 = vmul.f32 %v2210, %v3950
        %v4271 = vmul.f32 %v2212, %v3951
        %v4272 = vmul.f32 %v2214, %v3952
        %v4273 = vmul.f32 %v2216, %v3953
        %v4274 = vmul.f32 %v2220, %v3954
        %v4275 = vmul.f32 %v2222, %v3955
        %v4276 = vmul.f32 %v2224, %v3956
        %v4277 = vmul.f32 %v2226, %v3957
        %v4278 = vmul.f32 %v2230, %v3958
        %v4279 = vmul.f32 %v2232, %v3959
        %v4280 = vmul.f32 %v2234, %v3960
        %v4281 = vmul.f32 %v2236, %v3961
        %v4282 = vmul.f32 %v2240, %v3962
        %v4283 = vmul.f32 %v2242, %v3963
        %v4284 = vmul.f32 %v2244, %v3964
        %v4285 = vmul.f32 %v2246, %v3965
        %v4286 = vmul.f32 %v2250, %v3966
        %v4287 = vmul.f32 %v2252, %v3967
        %v4288 = vmul.f32 %v2254, %v3968
        %v4289 = vmul.f32 %v2256, %v3969
        %v4290 = vmul.f32 %v2260, %v3970
        %v4291 = vmul.f32 %v2262, %v3971
        %v4292 = vmul.f32 %v2264, %v3972
        %v4293 = vmul.f32 %v2266, %v3973
        %v4294 = vmul.f32 %v2270, %v3974
        %v4295 = vmul.f32 %v2272, %v3975
        %v4296 = vmul.f32 %v2274, %v3976
        %v4297 = vmul.f32 %v2276, %v3977
        %v4298 = vmul.f32 %v2280, %v3978
        %v4299 = vmul.f32 %v2282, %v3979
        %v4300 = vmul.f32 %v2284, %v3980
        %v4301 = vmul.f32 %v2286, %v3981
        %v4302 = vmul.f32 %v2290, %v3982
        %v4303 = vmul.f32 %v2292, %v3983
        %v4304 = vmul.f32 %v2294, %v3984
        %v4305 = vmul.f32 %v2296, %v3985
        %v4306 = vmul.f32 %v2300, %v3986
        %v4307 = vmul.f32 %v2302, %v3987
        %v4308 = vmul.f32 %v2304, %v3988
        %v4309 = vmul.f32 %v2306, %v3989
        %v4310 = vmul.f32 %v2310, %v3990
        %v4311 = vmul.f32 %v2312, %v3991
        %v4312 = vmul.f32 %v2314, %v3992
        %v4313 = vmul.f32 %v2316, %v3993
        %v4314 = vmul.f32 %v2320, %v3994
        %v4315 = vmul.f32 %v2322, %v3995
        %v4316 = vmul.f32 %v2324, %v3996
        %v4317 = vmul.f32 %v2326, %v3997
        %v4318 = vmul.f32 %v2330, %v3998
        %v4319 = vmul.f32 %v2332, %v3999
        %v4320 = vmul.f32 %v2334, %v4000
        %v4321 = vmul.f32 %v2336, %v4001
        %v4322 = vmul.f32 %v2340, %v4002
        %v4323 = vmul.f32 %v2342, %v4003
        %v4324 = vmul.f32 %v2344, %v4004
        %v4325 = vmul.f32 %v2346, %v4005
        %v4326 = vmul.f32 %v2350, %v4006
        %v4327 = vmul.f32 %v2352, %v4007
        %v4328 = vmul.f32 %v2354, %v4008
        %v4329 = vmul.f32 %v2356, %v4009
        %v4330 = vmul.f32 %v2360, %v4010
        %v4331 = vmul.f32 %v2362, %v4011
        %v4332 = vmul.f32 %v2364, %v4012
        %v4333 = vmul.f32 %v2366, %v4013
        %v4334 = vmul.f32 %v2370, %v4014
        %v4335 = vmul.f32 %v2372, %v4015
        %v4336 = vmul.f32 %v2374, %v4016
        %v4337 = vmul.f32 %v2376, %v4017
        %v4338 = vmul.f32 %v2380, %v4018
        %v4339 = vmul.f32 %v2382, %v4019
        %v4340 = vmul.f32 %v2384, %v4020
        %v4341 = vmul.f32 %v2386, %v4021
        %v4342 = vmul.f32 %v2390, %v4022
        %v4343 = vmul.f32 %v2392, %v4023
        %v4344 = vmul.f32 %v2394, %v4024
        %v4345 = vmul.f32 %v2396, %v4025
        %v4346 = vmul.f32 %v2400, %v4026
        %v4347 = vmul.f32 %v2402, %v4027
        %v4348 = vmul.f32 %v2404, %v4028
        %v4349 = vmul.f32 %v2406, %v4029
        %v4350 = vmul.f32 %v2410, %v4030
        %v4351 = vmul.f32 %v2412, %v4031
        %v4352 = vmul.f32 %v2414, %v4032
        %v4353 = vmul.f32 %v2416, %v4033
        %v4354 = vmul.f32 %v2420, %v4034
        %v4355 = vmul.f32 %v2422, %v4035
        %v4356 = vmul.f32 %v2424, %v4036
        %v4357 = vmul.f32 %v2426, %v4037
        %v4358 = vmul.f32 %v2430, %v4038
        %v4359 = vmul.f32 %v2432, %v4039
        %v4360 = vmul.f32 %v2434, %v4040
        %v4361 = vmul.f32 %v2436, %v4041
        %v4362 = vmul.f32 %v2440, %v4042
        %v4363 = vmul.f32 %v2442, %v4043
        %v4364 = vmul.f32 %v2444, %v4044
        %v4365 = vmul.f32 %v2446, %v4045
        %v4366 = vmul.f32 %v2450, %v4046
        %v4367 = vmul.f32 %v2452, %v4047
        %v4368 = vmul.f32 %v2454, %v4048
        %v4369 = vmul.f32 %v2456, %v4049
        %v4370 = vmul.f32 %v2460, %v4050
        %v4371 = vmul.f32 %v2462, %v4051
        %v4372 = vmul.f32 %v2464, %v4052
        %v4373 = vmul.f32 %v2466, %v4053
        %v4374 = vmul.f32 %v2470, %v4054
        %v4375 = vmul.f32 %v2472, %v4055
        %v4376 = vmul.f32 %v2474, %v4056
        %v4377 = vmul.f32 %v2476, %v4057
        %v4378 = vmul.f32 %v2480, %v4058
        %v4379 = vmul.f32 %v2482, %v4059
        %v4380 = vmul.f32 %v2484, %v4060
        %v4381 = vmul.f32 %v2486, %v4061
        %v4382 = vmul.f32 %v2490, %v4062
        %v4383 = vmul.f32 %v2492, %v4063
        %v4384 = vmul.f32 %v2494, %v4064
        %v4385 = vmul.f32 %v2496, %v4065
        %v4386 = vmul.f32 %v2500, %v4066
        %v4387 = vmul.f32 %v2502, %v4067
        %v4388 = vmul.f32 %v2504, %v4068
        %v4389 = vmul.f32 %v2506, %v4069
        %v4390 = vmul.f32 %v2510, %v4070
        %v4391 = vmul.f32 %v2512, %v4071
        %v4392 = vmul.f32 %v2514, %v4072
        %v4393 = vmul.f32 %v2516, %v4073
        %v4394 = vmul.f32 %v2520, %v4074
        %v4395 = vmul.f32 %v2522, %v4075
        %v4396 = vmul.f32 %v2524, %v4076
        %v4397 = vmul.f32 %v2526, %v4077
        %v4398 = vmul.f32 %v2530, %v4078
        %v4399 = vmul.f32 %v2532, %v4079
        %v4400 = vmul.f32 %v2534, %v4080
        %v4401 = vmul.f32 %v2536, %v4081
        %v4402 = vmul.f32 %v2540, %v4082
        %v4403 = vmul.f32 %v2542, %v4083
        %v4404 = vmul.f32 %v2544, %v4084
        %v4405 = vmul.f32 %v2546, %v4085
        %v4406 = vmul.f32 %v2550, %v4086
        %v4407 = vmul.f32 %v2552, %v4087
        %v4408 = vmul.f32 %v2554, %v4088
        %v4409 = vmul.f32 %v2556, %v4089
        %v4410 = vmul.f32 %v2560, %v4090
        %v4411 = vmul.f32 %v2562, %v4091
        %v4412 = vmul.f32 %v2564, %v4092
        %v4413 = vmul.f32 %v2566, %v4093
        %v4414 = vmul.f32 %v2570, %v4094
        %v4415 = vmul.f32 %v2572, %v4095
        %v4416 = vmul.f32 %v2574, %v4096
        %v4417 = vmul.f32 %v2576, %v4097
        %v4418 = vmul.f32 %v2580, %v4098
        %v4419 = vmul.f32 %v2582, %v4099
        %v4420 = vmul.f32 %v2584, %v4100
        %v4421 = vmul.f32 %v2586, %v4101
        %v4422 = vmul.f32 %v2590, %v4102
        %v4423 = vmul.f32 %v2592, %v4103
        %v4424 = vmul.f32 %v2594, %v4104
        %v4425 = vmul.f32 %v2596, %v4105
        %v4426 = vmul.f32 %v2600, %v4106
        %v4427 = vmul.f32 %v2602, %v4107
        %v4428 = vmul.f32 %v2604, %v4108
        %v4429 = vmul.f32 %v2606, %v4109
        %v4430 = vmul.f32 %v2610, %v4110
        %v4431 = vmul.f32 %v2612, %v4111
        %v4432 = vmul.f32 %v2614, %v4112
        %v4433 = vmul.f32 %v2616, %v4113
        %v4434 = vmul.f32 %v2620, %v4114
        %v4435 = vmul.f32 %v2622, %v4115
        %v4436 = vmul.f32 %v2624, %v4116
        %v4437 = vmul.f32 %v2626, %v4117
        %v4438 = vmul.f32 %v2630, %v4118
        %v4439 = vmul.f32 %v2632, %v4119
        %v4440 = vmul.f32 %v2634, %v4120
        %v4441 = vmul.f32 %v2636, %v4121
        %v4442 = vmul.f32 %v2640, %v4122
        %v4443 = vmul.f32 %v2642, %v4123
        %v4444 = vmul.f32 %v2644, %v4124
        %v4445 = vmul.f32 %v2646, %v4125
        %v4446 = vmul.f32 %v2650, %v4126
        %v4447 = vmul.f32 %v2652, %v4127
        %v4448 = vmul.f32 %v2654, %v4128
        %v4449 = vmul.f32 %v2656, %v4129
        %v4450 = vmul.f32 %v2660, %v4130
        %v4451 = vmul.f32 %v2662, %v4131
        %v4452 = vmul.f32 %v2664, %v4132
        %v4453 = vmul.f32 %v2666, %v4133
        %v4454 = vmul.f32 %v2670, %v4134
        %v4455 = vmul.f32 %v2672, %v4135
        %v4456 = vmul.f32 %v2674, %v4136
        %v4457 = vmul.f32 %v2676, %v4137
        %v4458 = vmul.f32 %v2680, %v4138
        %v4459 = vmul.f32 %v2682, %v4139
        %v4460 = vmul.f32 %v2684, %v4140
        %v4461 = vmul.f32 %v2686, %v4141
        %v4462 = vmul.f32 %v2690, %v4142
        %v4463 = vmul.f32 %v2692, %v4143
        %v4464 = vmul.f32 %v2694, %v4144
        %v4465 = vmul.f32 %v2696, %v4145
        %v4466 = vmul.f32 %v2700, %v4146
        %v4467 = vmul.f32 %v2702, %v4147
        %v4468 = vmul.f32 %v2704, %v4148
        %v4469 = vmul.f32 %v2706, %v4149
        %v4470 = vmul.f32 %v2710, %v4150
        %v4471 = vmul.f32 %v2712, %v4151
        %v4472 = vmul.f32 %v2714, %v4152
        %v4473 = vmul.f32 %v2716, %v4153
        %v4474 = vmul.f32 %v2720, %v4154
        %v4475 = vmul.f32 %v2722, %v4155
        %v4476 = vmul.f32 %v2724, %v4156
        %v4477 = vmul.f32 %v2726, %v4157
        %v4478 = vmul.f32 %v2730, %v4158
        %v4479 = vmul.f32 %v2732, %v4159
        %v4480 = vmul.f32 %v2734, %v4160
        %v4481 = vmul.f32 %v2736, %v4161
        %v4482 = vmul.f32 %v2740, %v4162
        %v4483 = vmul.f32 %v2742, %v4163
        %v4484 = vmul.f32 %v2744, %v4164
        %v4485 = vmul.f32 %v2746, %v4165
        %v4486 = vmul.f32 %v2750, %v4166
        %v4487 = vmul.f32 %v2752, %v4167
        %v4488 = vmul.f32 %v2754, %v4168
        %v4489 = vmul.f32 %v2756, %v4169
        %v4490 = vmul.f32 %v2760, %v4170
        %v4491 = vmul.f32 %v2762, %v4171
        %v4492 = vmul.f32 %v2764, %v4172
        %v4493 = vmul.f32 %v2766, %v4173
        %v4494 = vmul.f32 %v2770, %v4174
        %v4495 = vmul.f32 %v2772, %v4175
        %v4496 = vmul.f32 %v2774, %v4176
        %v4497 = vmul.f32 %v2776, %v4177
        %v4498 = vmul.f32 %v2780, %v4178
        %v4499 = vmul.f32 %v2782, %v4179
        %v4500 = vmul.f32 %v2784, %v4180
        %v4501 = vmul.f32 %v2786, %v4181
        %v4502 = vmul.f32 %v2790, %v4182
        %v4503 = vmul.f32 %v2792, %v4183
        %v4504 = vmul.f32 %v2794, %v4184
        %v4505 = vmul.f32 %v2796, %v4185
        %v4506 = vmul.f32 %v2800, %v4186
        %v4507 = vmul.f32 %v2802, %v4187
        %v4508 = vmul.f32 %v2804, %v4188
        %v4509 = vmul.f32 %v2806, %v4189
        %v4510 = vmul.f32 %v2810, %v4190
        %v4511 = vmul.f32 %v2812, %v4191
        %v4512 = vmul.f32 %v2814, %v4192
        %v4513 = vmul.f32 %v2816, %v4193
        %v4514 = vmul.f32 %v2820, %v4194
        %v4515 = vmul.f32 %v2822, %v4195
        %v4516 = vmul.f32 %v2824, %v4196
        %v4517 = vmul.f32 %v2826, %v4197
        %v4518 = vmul.f32 %v2830, %v4198
        %v4519 = vmul.f32 %v2832, %v4199
        %v4520 = vmul.f32 %v2834, %v4200
        %v4521 = vmul.f32 %v2836, %v4201
        %v4522 = vmul.f32 %v2840, %v4202
        %v4523 = vmul.f32 %v2842, %v4203
        %v4524 = vmul.f32 %v2844, %v4204
        %v4525 = vmul.f32 %v2846, %v4205
        %v4526 = vmul.f32 %v2850, %v4206
        %v4527 = vmul.f32 %v2852, %v4207
        %v4528 = vmul.f32 %v2854, %v4208
        %v4529 = vmul.f32 %v2856, %v4209
        %v4530 = vmul.f32 %v2860, %v4210
        %v4531 = vmul.f32 %v2862, %v4211
        %v4532 = vmul.f32 %v2864, %v4212
        %v4533 = vmul.f32 %v2866, %v4213
        %v4534 = vmul.f32 %v2870, %v4214
        %v4535 = vmul.f32 %v2872, %v4215
        %v4536 = vmul.f32 %v2874, %v4216
        %v4537 = vmul.f32 %v2876, %v4217
        %v4538 = vmul.f32 %v2880, %v4218
        %v4539 = vmul.f32 %v2882, %v4219
        %v4540 = vmul.f32 %v2884, %v4220
        %v4541 = vmul.f32 %v2886, %v4221
        %v4542 = vmul.f32 %v2890, %v4222
        %v4543 = vmul.f32 %v2892, %v4223
        %v4544 = vmul.f32 %v2894, %v4224
        %v4545 = vmul.f32 %v2896, %v4225
        %v4546 = vmul.f32 %v2900, %v4226
        %v4547 = vmul.f32 %v2902, %v4227
        %v4548 = vmul.f32 %v2904, %v4228
        %v4549 = vmul.f32 %v2906, %v4229
        %v4550 = vmul.f32 %v2910, %v4230
        %v4551 = vmul.f32 %v2912, %v4231
        %v4552 = vmul.f32 %v2914, %v4232
        %v4553 = vmul.f32 %v2916, %v4233
        %v4554 = vmul.f32 %v2920, %v4234
        %v4555 = vmul.f32 %v2922, %v4235
        %v4556 = vmul.f32 %v2924, %v4236
        %v4557 = vmul.f32 %v2926, %v4237
        %v4558 = vmul.f32 %v2930, %v4238
        %v4559 = vmul.f32 %v2932, %v4239
        %v4560 = vmul.f32 %v2934, %v4240
        %v4561 = vmul.f32 %v2936, %v4241
        %v4562 = vmul.f32 %v2940, %v4242
        %v4563 = vmul.f32 %v2942, %v4243
        %v4564 = vmul.f32 %v2944, %v4244
        %v4565 = vmul.f32 %v2946, %v4245
        %v4566 = vmul.f32 %v2950, %v4246
        %v4567 = vmul.f32 %v2952, %v4247
        %v4568 = vmul.f32 %v2954, %v4248
        %v4569 = vmul.f32 %v2956, %v4249
        %v4570 = vmul.f32 %v2960, %v4250
        %v4571 = vmul.f32 %v2962, %v4251
        %v4572 = vmul.f32 %v2964, %v4252
        %v4573 = vmul.f32 %v2966, %v4253
        %v4574 = vmul.f32 %v2970, %v4254
        %v4575 = vmul.f32 %v2972, %v4255
        %v4576 = vmul.f32 %v2974, %v4256
        %v4577 = vmul.f32 %v2976, %v4257
        %v4578 = vadd.f32 %v4258, %v4259
        %v4579 = vadd.f32 %v4260, %v4261
        %v4580 = vadd.f32 %v4262, %v4263
        %v4581 = vadd.f32 %v4264, %v4265
        %v4582 = vadd.f32 %v4266, %v4267
        %v4583 = vadd.f32 %v4268, %v4269
        %v4584 = vadd.f32 %v4270, %v4271
        %v4585 = vadd.f32 %v4272, %v4273
        %v4586 = vadd.f32 %v4274, %v4275
        %v4587 = vadd.f32 %v4276, %v4277
        %v4588 = vadd.f32 %v4278, %v4279
        %v4589 = vadd.f32 %v4280, %v4281
        %v4590 = vadd.f32 %v4282, %v4283
        %v4591 = vadd.f32 %v4284, %v4285
        %v4592 = vadd.f32 %v4286, %v4287
        %v4593 = vadd.f32 %v4288, %v4289
        %v4594 = vadd.f32 %v4290, %v4291
        %v4595 = vadd.f32 %v4292, %v4293
        %v4596 = vadd.f32 %v4294, %v4295
        %v4597 = vadd.f32 %v4296, %v4297
        %v4598 = vadd.f32 %v4298, %v4299
        %v4599 = vadd.f32 %v4300, %v4301
        %v4600 = vadd.f32 %v4302, %v4303
        %v4601 = vadd.f32 %v4304, %v4305
        %v4602 = vadd.f32 %v4306, %v4307
        %v4603 = vadd.f32 %v4308, %v4309
        %v4604 = vadd.f32 %v4310, %v4311
        %v4605 = vadd.f32 %v4312, %v4313
        %v4606 = vadd.f32 %v4314, %v4315
        %v4607 = vadd.f32 %v4316, %v4317
        %v4608 = vadd.f32 %v4318, %v4319
        %v4609 = vadd.f32 %v4320, %v4321
        %v4610 = vadd.f32 %v4322, %v4323
        %v4611 = vadd.f32 %v4324, %v4325
        %v4612 = vadd.f32 %v4326, %v4327
        %v4613 = vadd.f32 %v4328, %v4329
        %v4614 = vadd.f32 %v4330, %v4331
        %v4615 = vadd.f32 %v4332, %v4333
        %v4616 = vadd.f32 %v4334, %v4335
        %v4617 = vadd.f32 %v4336, %v4337
        %v4618 = vadd.f32 %v4338, %v4339
        %v4619 = vadd.f32 %v4340, %v4341
        %v4620 = vadd.f32 %v4342, %v4343
        %v4621 = vadd.f32 %v4344, %v4345
        %v4622 = vadd.f32 %v4346, %v4347
        %v4623 = vadd.f32 %v4348, %v4349
        %v4624 = vadd.f32 %v4350, %v4351
        %v4625 = vadd.f32 %v4352, %v4353
        %v4626 = vadd.f32 %v4354, %v4355
        %v4627 = vadd.f32 %v4356, %v4357
        %v4628 = vadd.f32 %v4358, %v4359
        %v4629 = vadd.f32 %v4360, %v4361
        %v4630 = vadd.f32 %v4362, %v4363
        %v4631 = vadd.f32 %v4364, %v4365
        %v4632 = vadd.f32 %v4366, %v4367
        %v4633 = vadd.f32 %v4368, %v4369
        %v4634 = vadd.f32 %v4370, %v4371
        %v4635 = vadd.f32 %v4372, %v4373
        %v4636 = vadd.f32 %v4374, %v4375
        %v4637 = vadd.f32 %v4376, %v4377
        %v4638 = vadd.f32 %v4378, %v4379
        %v4639 = vadd.f32 %v4380, %v4381
        %v4640 = vadd.f32 %v4382, %v4383
        %v4641 = vadd.f32 %v4384, %v4385
        %v4642 = vadd.f32 %v4386, %v4387
        %v4643 = vadd.f32 %v4388, %v4389
        %v4644 = vadd.f32 %v4390, %v4391
        %v4645 = vadd.f32 %v4392, %v4393
        %v4646 = vadd.f32 %v4394, %v4395
        %v4647 = vadd.f32 %v4396, %v4397
        %v4648 = vadd.f32 %v4398, %v4399
        %v4649 = vadd.f32 %v4400, %v4401
        %v4650 = vadd.f32 %v4402, %v4403
        %v4651 = vadd.f32 %v4404, %v4405
        %v4652 = vadd.f32 %v4406, %v4407
        %v4653 = vadd.f32 %v4408, %v4409
        %v4654 = vadd.f32 %v4410, %v4411
        %v4655 = vadd.f32 %v4412, %v4413
        %v4656 = vadd.f32 %v4414, %v4415
        %v4657 = vadd.f32 %v4416, %v4417
        %v4658 = vadd.f32 %v4418, %v4419
        %v4659 = vadd.f32 %v4420, %v4421
        %v4660 = vadd.f32 %v4422, %v4423
        %v4661 = vadd.f32 %v4424, %v4425
        %v4662 = vadd.f32 %v4426, %v4427
        %v4663 = vadd.f32 %v4428, %v4429
        %v4664 = vadd.f32 %v4430, %v4431
        %v4665 = vadd.f32 %v4432, %v4433
        %v4666 = vadd.f32 %v4434, %v4435
        %v4667 = vadd.f32 %v4436, %v4437
        %v4668 = vadd.f32 %v4438, %v4439
        %v4669 = vadd.f32 %v4440, %v4441
        %v4670 = vadd.f32 %v4442, %v4443
        %v4671 = vadd.f32 %v4444, %v4445
        %v4672 = vadd.f32 %v4446, %v4447
        %v4673 = vadd.f32 %v4448, %v4449
        %v4674 = vadd.f32 %v4450, %v4451
        %v4675 = vadd.f32 %v4452, %v4453
        %v4676 = vadd.f32 %v4454, %v4455
        %v4677 = vadd.f32 %v4456, %v4457
        %v4678 = vadd.f32 %v4458, %v4459
        %v4679 = vadd.f32 %v4460, %v4461
        %v4680 = vadd.f32 %v4462, %v4463
        %v4681 = vadd.f32 %v4464, %v4465
        %v4682 = vadd.f32 %v4466, %v4467
        %v4683 = vadd.f32 %v4468, %v4469
        %v4684 = vadd.f32 %v4470, %v4471
        %v4685 = vadd.f32 %v4472, %v4473
        %v4686 = vadd.f32 %v4474, %v4475
        %v4687 = vadd.f32 %v4476, %v4477
        %v4688 = vadd.f32 %v4478, %v4479
        %v4689 = vadd.f32 %v4480, %v4481
        %v4690 = vadd.f32 %v4482, %v4483
        %v4691 = vadd.f32 %v4484, %v4485
        %v4692 = vadd.f32 %v4486, %v4487
        %v4693 = vadd.f32 %v4488, %v4489
        %v4694 = vadd.f32 %v4490, %v4491
        %v4695 = vadd.f32 %v4492, %v4493
        %v4696 = vadd.f32 %v4494, %v4495
        %v4697 = vadd.f32 %v4496, %v4497
        %v4698 = vadd.f32 %v4498, %v4499
        %v4699 = vadd.f32 %v4500, %v4501
        %v4700 = vadd.f32 %v4502, %v4503
        %v4701 = vadd.f32 %v4504, %v4505
        %v4702 = vadd.f32 %v4506, %v4507
        %v4703 = vadd.f32 %v4508, %v4509
        %v4704 = vadd.f32 %v4510, %v4511
        %v4705 = vadd.f32 %v4512, %v4513
        %v4706 = vadd.f32 %v4514, %v4515
        %v4707 = vadd.f32 %v4516, %v4517
        %v4708 = vadd.f32 %v4518, %v4519
        %v4709 = vadd.f32 %v4520, %v4521
        %v4710 = vadd.f32 %v4522, %v4523
        %v4711 = vadd.f32 %v4524, %v4525
        %v4712 = vadd.f32 %v4526, %v4527
        %v4713 = vadd.f32 %v4528, %v4529
        %v4714 = vadd.f32 %v4530, %v4531
        %v4715 = vadd.f32 %v4532, %v4533
        %v4716 = vadd.f32 %v4534, %v4535
        %v4717 = vadd.f32 %v4536, %v4537
        %v4718 = vadd.f32 %v4538, %v4539
        %v4719 = vadd.f32 %v4540, %v4541
        %v4720 = vadd.f32 %v4542, %v4543
        %v4721 = vadd.f32 %v4544, %v4545
        %v4722 = vadd.f32 %v4546, %v4547
        %v4723 = vadd.f32 %v4548, %v4549
        %v4724 = vadd.f32 %v4550, %v4551
        %v4725 = vadd.f32 %v4552, %v4553
        %v4726 = vadd.f32 %v4554, %v4555
        %v4727 = vadd.f32 %v4556, %v4557
        %v4728 = vadd.f32 %v4558, %v4559
        %v4729 = vadd.f32 %v4560, %v4561
        %v4730 = vadd.f32 %v4562, %v4563
        %v4731 = vadd.f32 %v4564, %v4565
        %v4732 = vadd.f32 %v4566, %v4567
        %v4733 = vadd.f32 %v4568, %v4569
        %v4734 = vadd.f32 %v4570, %v4571
        %v4735 = vadd.f32 %v4572, %v4573
        %v4736 = vadd.f32 %v4574, %v4575
        %v4737 = vadd.f32 %v4576, %v4577
        %v4738 = vld [vmem:[#allocation2] sm:$0xff]
        %v4739 = vld [vmem:[#allocation2 + $0x8] sm:$0xff]
        %v4740 = vld [vmem:[#allocation2 + $0x10] sm:$0xff]
        %v4741 = vld [vmem:[#allocation2 + $0x18] sm:$0xff]
        %v4742 = vld [vmem:[#allocation2 + $0x20] sm:$0xff]
        %v4743 = vld [vmem:[#allocation2 + $0x28] sm:$0xff]
        %v4744 = vld [vmem:[#allocation2 + $0x30] sm:$0xff]
        %v4745 = vld [vmem:[#allocation2 + $0x38] sm:$0xff]
        %v4746 = vld [vmem:[#allocation2 + $0x40] sm:$0xff]
        %v4747 = vld [vmem:[#allocation2 + $0x48] sm:$0xff]
        %v4748 = vld [vmem:[#allocation2 + $0x50] sm:$0xff]
        %v4749 = vld [vmem:[#allocation2 + $0x58] sm:$0xff]
        %v4750 = vld [vmem:[#allocation2 + $0x60] sm:$0xff]
        %v4751 = vld [vmem:[#allocation2 + $0x68] sm:$0xff]
        %v4752 = vld [vmem:[#allocation2 + $0x70] sm:$0xff]
        %v4753 = vld [vmem:[#allocation2 + $0x78] sm:$0xff]
        %v4754 = vld [vmem:[#allocation2 + $0x80] sm:$0xff]
        %v4755 = vld [vmem:[#allocation2 + $0x88] sm:$0xff]
        %v4756 = vld [vmem:[#allocation2 + $0x90] sm:$0xff]
        %v4757 = vld [vmem:[#allocation2 + $0x98] sm:$0xff]
        %v4758 = vld [vmem:[#allocation2 + $0xa0] sm:$0xff]
        %v4759 = vld [vmem:[#allocation2 + $0xa8] sm:$0xff]
        %v4760 = vld [vmem:[#allocation2 + $0xb0] sm:$0xff]
        %v4761 = vld [vmem:[#allocation2 + $0xb8] sm:$0xff]
        %v4762 = vld [vmem:[#allocation2 + $0xc0] sm:$0xff]
        %v4763 = vld [vmem:[#allocation2 + $0xc8] sm:$0xff]
        %v4764 = vld [vmem:[#allocation2 + $0xd0] sm:$0xff]
        %v4765 = vld [vmem:[#allocation2 + $0xd8] sm:$0xff]
        %v4766 = vld [vmem:[#allocation2 + $0xe0] sm:$0xff]
        %v4767 = vld [vmem:[#allocation2 + $0xe8] sm:$0xff]
        %v4768 = vld [vmem:[#allocation2 + $0xf0] sm:$0xff]
        %v4769 = vld [vmem:[#allocation2 + $0xf8] sm:$0xff]
        %v4770 = vld [vmem:[#allocation2 + $0x100] sm:$0xff]
        %v4771 = vld [vmem:[#allocation2 + $0x108] sm:$0xff]
        %v4772 = vld [vmem:[#allocation2 + $0x110] sm:$0xff]
        %v4773 = vld [vmem:[#allocation2 + $0x118] sm:$0xff]
        %v4774 = vld [vmem:[#allocation2 + $0x120] sm:$0xff]
        %v4775 = vld [vmem:[#allocation2 + $0x128] sm:$0xff]
        %v4776 = vld [vmem:[#allocation2 + $0x130] sm:$0xff]
        %v4777 = vld [vmem:[#allocation2 + $0x138] sm:$0xff]
        %v4778 = vld [vmem:[#allocation2 + $0x140] sm:$0xff]
        %v4779 = vld [vmem:[#allocation2 + $0x148] sm:$0xff]
        %v4780 = vld [vmem:[#allocation2 + $0x150] sm:$0xff]
        %v4781 = vld [vmem:[#allocation2 + $0x158] sm:$0xff]
        %v4782 = vld [vmem:[#allocation2 + $0x160] sm:$0xff]
        %v4783 = vld [vmem:[#allocation2 + $0x168] sm:$0xff]
        %v4784 = vld [vmem:[#allocation2 + $0x170] sm:$0xff]
        %v4785 = vld [vmem:[#allocation2 + $0x178] sm:$0xff]
        %v4786 = vld [vmem:[#allocation2 + $0x180] sm:$0xff]
        %v4787 = vld [vmem:[#allocation2 + $0x188] sm:$0xff]
        %v4788 = vld [vmem:[#allocation2 + $0x190] sm:$0xff]
        %v4789 = vld [vmem:[#allocation2 + $0x198] sm:$0xff]
        %v4790 = vld [vmem:[#allocation2 + $0x1a0] sm:$0xff]
        %v4791 = vld [vmem:[#allocation2 + $0x1a8] sm:$0xff]
        %v4792 = vld [vmem:[#allocation2 + $0x1b0] sm:$0xff]
        %v4793 = vld [vmem:[#allocation2 + $0x1b8] sm:$0xff]
        %v4794 = vld [vmem:[#allocation2 + $0x1c0] sm:$0xff]
        %v4795 = vld [vmem:[#allocation2 + $0x1c8] sm:$0xff]
        %v4796 = vld [vmem:[#allocation2 + $0x1d0] sm:$0xff]
        %v4797 = vld [vmem:[#allocation2 + $0x1d8] sm:$0xff]
        %v4798 = vld [vmem:[#allocation2 + $0x1e0] sm:$0xff]
        %v4799 = vld [vmem:[#allocation2 + $0x1e8] sm:$0xff]
        %v4800 = vld [vmem:[#allocation2 + $0x1f0] sm:$0xff]
        %v4801 = vld [vmem:[#allocation2 + $0x1f8] sm:$0xff]
        %v4802 = vld [vmem:[#allocation2 + $0x200] sm:$0xff]
        %v4803 = vld [vmem:[#allocation2 + $0x208] sm:$0xff]
        %v4804 = vld [vmem:[#allocation2 + $0x210] sm:$0xff]
        %v4805 = vld [vmem:[#allocation2 + $0x218] sm:$0xff]
        %v4806 = vld [vmem:[#allocation2 + $0x220] sm:$0xff]
        %v4807 = vld [vmem:[#allocation2 + $0x228] sm:$0xff]
        %v4808 = vld [vmem:[#allocation2 + $0x230] sm:$0xff]
        %v4809 = vld [vmem:[#allocation2 + $0x238] sm:$0xff]
        %v4810 = vld [vmem:[#allocation2 + $0x240] sm:$0xff]
        %v4811 = vld [vmem:[#allocation2 + $0x248] sm:$0xff]
        %v4812 = vld [vmem:[#allocation2 + $0x250] sm:$0xff]
        %v4813 = vld [vmem:[#allocation2 + $0x258] sm:$0xff]
        %v4814 = vld [vmem:[#allocation2 + $0x260] sm:$0xff]
        %v4815 = vld [vmem:[#allocation2 + $0x268] sm:$0xff]
        %v4816 = vld [vmem:[#allocation2 + $0x270] sm:$0xff]
        %v4817 = vld [vmem:[#allocation2 + $0x278] sm:$0xff]
        %v4818 = vld [vmem:[#allocation2 + $0x280] sm:$0xff]
        %v4819 = vld [vmem:[#allocation2 + $0x288] sm:$0xff]
        %v4820 = vld [vmem:[#allocation2 + $0x290] sm:$0xff]
        %v4821 = vld [vmem:[#allocation2 + $0x298] sm:$0xff]
        %v4822 = vld [vmem:[#allocation2 + $0x2a0] sm:$0xff]
        %v4823 = vld [vmem:[#allocation2 + $0x2a8] sm:$0xff]
        %v4824 = vld [vmem:[#allocation2 + $0x2b0] sm:$0xff]
        %v4825 = vld [vmem:[#allocation2 + $0x2b8] sm:$0xff]
        %v4826 = vld [vmem:[#allocation2 + $0x2c0] sm:$0xff]
        %v4827 = vld [vmem:[#allocation2 + $0x2c8] sm:$0xff]
        %v4828 = vld [vmem:[#allocation2 + $0x2d0] sm:$0xff]
        %v4829 = vld [vmem:[#allocation2 + $0x2d8] sm:$0xff]
        %v4830 = vld [vmem:[#allocation2 + $0x2e0] sm:$0xff]
        %v4831 = vld [vmem:[#allocation2 + $0x2e8] sm:$0xff]
        %v4832 = vld [vmem:[#allocation2 + $0x2f0] sm:$0xff]
        %v4833 = vld [vmem:[#allocation2 + $0x2f8] sm:$0xff]
        %v4834 = vld [vmem:[#allocation2 + $0x300] sm:$0xff]
        %v4835 = vld [vmem:[#allocation2 + $0x308] sm:$0xff]
        %v4836 = vld [vmem:[#allocation2 + $0x310] sm:$0xff]
        %v4837 = vld [vmem:[#allocation2 + $0x318] sm:$0xff]
        %v4838 = vld [vmem:[#allocation2 + $0x320] sm:$0xff]
        %v4839 = vld [vmem:[#allocation2 + $0x328] sm:$0xff]
        %v4840 = vld [vmem:[#allocation2 + $0x330] sm:$0xff]
        %v4841 = vld [vmem:[#allocation2 + $0x338] sm:$0xff]
        %v4842 = vld [vmem:[#allocation2 + $0x340] sm:$0xff]
        %v4843 = vld [vmem:[#allocation2 + $0x348] sm:$0xff]
        %v4844 = vld [vmem:[#allocation2 + $0x350] sm:$0xff]
        %v4845 = vld [vmem:[#allocation2 + $0x358] sm:$0xff]
        %v4846 = vld [vmem:[#allocation2 + $0x360] sm:$0xff]
        %v4847 = vld [vmem:[#allocation2 + $0x368] sm:$0xff]
        %v4848 = vld [vmem:[#allocation2 + $0x370] sm:$0xff]
        %v4849 = vld [vmem:[#allocation2 + $0x378] sm:$0xff]
        %v4850 = vld [vmem:[#allocation2 + $0x380] sm:$0xff]
        %v4851 = vld [vmem:[#allocation2 + $0x388] sm:$0xff]
        %v4852 = vld [vmem:[#allocation2 + $0x390] sm:$0xff]
        %v4853 = vld [vmem:[#allocation2 + $0x398] sm:$0xff]
        %v4854 = vld [vmem:[#allocation2 + $0x3a0] sm:$0xff]
        %v4855 = vld [vmem:[#allocation2 + $0x3a8] sm:$0xff]
        %v4856 = vld [vmem:[#allocation2 + $0x3b0] sm:$0xff]
        %v4857 = vld [vmem:[#allocation2 + $0x3b8] sm:$0xff]
        %v4858 = vld [vmem:[#allocation2 + $0x3c0] sm:$0xff]
        %v4859 = vld [vmem:[#allocation2 + $0x3c8] sm:$0xff]
        %v4860 = vld [vmem:[#allocation2 + $0x3d0] sm:$0xff]
        %v4861 = vld [vmem:[#allocation2 + $0x3d8] sm:$0xff]
        %v4862 = vld [vmem:[#allocation2 + $0x3e0] sm:$0xff]
        %v4863 = vld [vmem:[#allocation2 + $0x3e8] sm:$0xff]
        %v4864 = vld [vmem:[#allocation2 + $0x3f0] sm:$0xff]
        %v4865 = vld [vmem:[#allocation2 + $0x3f8] sm:$0xff]
        %v4866 = vld [vmem:[#allocation2 + $0x400] sm:$0xff]
        %v4867 = vld [vmem:[#allocation2 + $0x408] sm:$0xff]
        %v4868 = vld [vmem:[#allocation2 + $0x410] sm:$0xff]
        %v4869 = vld [vmem:[#allocation2 + $0x418] sm:$0xff]
        %v4870 = vld [vmem:[#allocation2 + $0x420] sm:$0xff]
        %v4871 = vld [vmem:[#allocation2 + $0x428] sm:$0xff]
        %v4872 = vld [vmem:[#allocation2 + $0x430] sm:$0xff]
        %v4873 = vld [vmem:[#allocation2 + $0x438] sm:$0xff]
        %v4874 = vld [vmem:[#allocation2 + $0x440] sm:$0xff]
        %v4875 = vld [vmem:[#allocation2 + $0x448] sm:$0xff]
        %v4876 = vld [vmem:[#allocation2 + $0x450] sm:$0xff]
        %v4877 = vld [vmem:[#allocation2 + $0x458] sm:$0xff]
        %v4878 = vld [vmem:[#allocation2 + $0x460] sm:$0xff]
        %v4879 = vld [vmem:[#allocation2 + $0x468] sm:$0xff]
        %v4880 = vld [vmem:[#allocation2 + $0x470] sm:$0xff]
        %v4881 = vld [vmem:[#allocation2 + $0x478] sm:$0xff]
        %v4882 = vld [vmem:[#allocation2 + $0x480] sm:$0xff]
        %v4883 = vld [vmem:[#allocation2 + $0x488] sm:$0xff]
        %v4884 = vld [vmem:[#allocation2 + $0x490] sm:$0xff]
        %v4885 = vld [vmem:[#allocation2 + $0x498] sm:$0xff]
        %v4886 = vld [vmem:[#allocation2 + $0x4a0] sm:$0xff]
        %v4887 = vld [vmem:[#allocation2 + $0x4a8] sm:$0xff]
        %v4888 = vld [vmem:[#allocation2 + $0x4b0] sm:$0xff]
        %v4889 = vld [vmem:[#allocation2 + $0x4b8] sm:$0xff]
        %v4890 = vld [vmem:[#allocation2 + $0x4c0] sm:$0xff]
        %v4891 = vld [vmem:[#allocation2 + $0x4c8] sm:$0xff]
        %v4892 = vld [vmem:[#allocation2 + $0x4d0] sm:$0xff]
        %v4893 = vld [vmem:[#allocation2 + $0x4d8] sm:$0xff]
        %v4894 = vld [vmem:[#allocation2 + $0x4e0] sm:$0xff]
        %v4895 = vld [vmem:[#allocation2 + $0x4e8] sm:$0xff]
        %v4896 = vld [vmem:[#allocation2 + $0x4f0] sm:$0xff]
        %v4897 = vld [vmem:[#allocation2 + $0x4f8] sm:$0xff]
        %v4898 = vadd.f32 %v4738, %v4578
        %v4899 = vadd.f32 %v4739, %v4579
        %v4900 = vadd.f32 %v4740, %v4580
        %v4901 = vadd.f32 %v4741, %v4581
        %v4902 = vadd.f32 %v4742, %v4582
        %v4903 = vadd.f32 %v4743, %v4583
        %v4904 = vadd.f32 %v4744, %v4584
        %v4905 = vadd.f32 %v4745, %v4585
        %v4906 = vadd.f32 %v4746, %v4586
        %v4907 = vadd.f32 %v4747, %v4587
        %v4908 = vadd.f32 %v4748, %v4588
        %v4909 = vadd.f32 %v4749, %v4589
        %v4910 = vadd.f32 %v4750, %v4590
        %v4911 = vadd.f32 %v4751, %v4591
        %v4912 = vadd.f32 %v4752, %v4592
        %v4913 = vadd.f32 %v4753, %v4593
        %v4914 = vadd.f32 %v4754, %v4594
        %v4915 = vadd.f32 %v4755, %v4595
        %v4916 = vadd.f32 %v4756, %v4596
        %v4917 = vadd.f32 %v4757, %v4597
        %v4918 = vadd.f32 %v4758, %v4598
        %v4919 = vadd.f32 %v4759, %v4599
        %v4920 = vadd.f32 %v4760, %v4600
        %v4921 = vadd.f32 %v4761, %v4601
        %v4922 = vadd.f32 %v4762, %v4602
        %v4923 = vadd.f32 %v4763, %v4603
        %v4924 = vadd.f32 %v4764, %v4604
        %v4925 = vadd.f32 %v4765, %v4605
        %v4926 = vadd.f32 %v4766, %v4606
        %v4927 = vadd.f32 %v4767, %v4607
        %v4928 = vadd.f32 %v4768, %v4608
        %v4929 = vadd.f32 %v4769, %v4609
        %v4930 = vadd.f32 %v4770, %v4610
        %v4931 = vadd.f32 %v4771, %v4611
        %v4932 = vadd.f32 %v4772, %v4612
        %v4933 = vadd.f32 %v4773, %v4613
        %v4934 = vadd.f32 %v4774, %v4614
        %v4935 = vadd.f32 %v4775, %v4615
        %v4936 = vadd.f32 %v4776, %v4616
        %v4937 = vadd.f32 %v4777, %v4617
        %v4938 = vadd.f32 %v4778, %v4618
        %v4939 = vadd.f32 %v4779, %v4619
        %v4940 = vadd.f32 %v4780, %v4620
        %v4941 = vadd.f32 %v4781, %v4621
        %v4942 = vadd.f32 %v4782, %v4622
        %v4943 = vadd.f32 %v4783, %v4623
        %v4944 = vadd.f32 %v4784, %v4624
        %v4945 = vadd.f32 %v4785, %v4625
        %v4946 = vadd.f32 %v4786, %v4626
        %v4947 = vadd.f32 %v4787, %v4627
        %v4948 = vadd.f32 %v4788, %v4628
        %v4949 = vadd.f32 %v4789, %v4629
        %v4950 = vadd.f32 %v4790, %v4630
        %v4951 = vadd.f32 %v4791, %v4631
        %v4952 = vadd.f32 %v4792, %v4632
        %v4953 = vadd.f32 %v4793, %v4633
        %v4954 = vadd.f32 %v4794, %v4634
        %v4955 = vadd.f32 %v4795, %v4635
        %v4956 = vadd.f32 %v4796, %v4636
        %v4957 = vadd.f32 %v4797, %v4637
        %v4958 = vadd.f32 %v4798, %v4638
        %v4959 = vadd.f32 %v4799, %v4639
        %v4960 = vadd.f32 %v4800, %v4640
        %v4961 = vadd.f32 %v4801, %v4641
        %v4962 = vadd.f32 %v4802, %v4642
        %v4963 = vadd.f32 %v4803, %v4643
        %v4964 = vadd.f32 %v4804, %v4644
        %v4965 = vadd.f32 %v4805, %v4645
        %v4966 = vadd.f32 %v4806, %v4646
        %v4967 = vadd.f32 %v4807, %v4647
        %v4968 = vadd.f32 %v4808, %v4648
        %v4969 = vadd.f32 %v4809, %v4649
        %v4970 = vadd.f32 %v4810, %v4650
        %v4971 = vadd.f32 %v4811, %v4651
        %v4972 = vadd.f32 %v4812, %v4652
        %v4973 = vadd.f32 %v4813, %v4653
        %v4974 = vadd.f32 %v4814, %v4654
        %v4975 = vadd.f32 %v4815, %v4655
        %v4976 = vadd.f32 %v4816, %v4656
        %v4977 = vadd.f32 %v4817, %v4657
        %v4978 = vadd.f32 %v4818, %v4658
        %v4979 = vadd.f32 %v4819, %v4659
        %v4980 = vadd.f32 %v4820, %v4660
        %v4981 = vadd.f32 %v4821, %v4661
        %v4982 = vadd.f32 %v4822, %v4662
        %v4983 = vadd.f32 %v4823, %v4663
        %v4984 = vadd.f32 %v4824, %v4664
        %v4985 = vadd.f32 %v4825, %v4665
        %v4986 = vadd.f32 %v4826, %v4666
        %v4987 = vadd.f32 %v4827, %v4667
        %v4988 = vadd.f32 %v4828, %v4668
        %v4989 = vadd.f32 %v4829, %v4669
        %v4990 = vadd.f32 %v4830, %v4670
        %v4991 = vadd.f32 %v4831, %v4671
        %v4992 = vadd.f32 %v4832, %v4672
        %v4993 = vadd.f32 %v4833, %v4673
        %v4994 = vadd.f32 %v4834, %v4674
        %v4995 = vadd.f32 %v4835, %v4675
        %v4996 = vadd.f32 %v4836, %v4676
        %v4997 = vadd.f32 %v4837, %v4677
        %v4998 = vadd.f32 %v4838, %v4678
        %v4999 = vadd.f32 %v4839, %v4679
        %v5000 = vadd.f32 %v4840, %v4680
        %v5001 = vadd.f32 %v4841, %v4681
        %v5002 = vadd.f32 %v4842, %v4682
        %v5003 = vadd.f32 %v4843, %v4683
        %v5004 = vadd.f32 %v4844, %v4684
        %v5005 = vadd.f32 %v4845, %v4685
        %v5006 = vadd.f32 %v4846, %v4686
        %v5007 = vadd.f32 %v4847, %v4687
        %v5008 = vadd.f32 %v4848, %v4688
        %v5009 = vadd.f32 %v4849, %v4689
        %v5010 = vadd.f32 %v4850, %v4690
        %v5011 = vadd.f32 %v4851, %v4691
        %v5012 = vadd.f32 %v4852, %v4692
        %v5013 = vadd.f32 %v4853, %v4693
        %v5014 = vadd.f32 %v4854, %v4694
        %v5015 = vadd.f32 %v4855, %v4695
        %v5016 = vadd.f32 %v4856, %v4696
        %v5017 = vadd.f32 %v4857, %v4697
        %v5018 = vadd.f32 %v4858, %v4698
        %v5019 = vadd.f32 %v4859, %v4699
        %v5020 = vadd.f32 %v4860, %v4700
        %v5021 = vadd.f32 %v4861, %v4701
        %v5022 = vadd.f32 %v4862, %v4702
        %v5023 = vadd.f32 %v4863, %v4703
        %v5024 = vadd.f32 %v4864, %v4704
        %v5025 = vadd.f32 %v4865, %v4705
        %v5026 = vadd.f32 %v4866, %v4706
        %v5027 = vadd.f32 %v4867, %v4707
        %v5028 = vadd.f32 %v4868, %v4708
        %v5029 = vadd.f32 %v4869, %v4709
        %v5030 = vadd.f32 %v4870, %v4710
        %v5031 = vadd.f32 %v4871, %v4711
        %v5032 = vadd.f32 %v4872, %v4712
        %v5033 = vadd.f32 %v4873, %v4713
        %v5034 = vadd.f32 %v4874, %v4714
        %v5035 = vadd.f32 %v4875, %v4715
        %v5036 = vadd.f32 %v4876, %v4716
        %v5037 = vadd.f32 %v4877, %v4717
        %v5038 = vadd.f32 %v4878, %v4718
        %v5039 = vadd.f32 %v4879, %v4719
        %v5040 = vadd.f32 %v4880, %v4720
        %v5041 = vadd.f32 %v4881, %v4721
        %v5042 = vadd.f32 %v4882, %v4722
        %v5043 = vadd.f32 %v4883, %v4723
        %v5044 = vadd.f32 %v4884, %v4724
        %v5045 = vadd.f32 %v4885, %v4725
        %v5046 = vadd.f32 %v4886, %v4726
        %v5047 = vadd.f32 %v4887, %v4727
        %v5048 = vadd.f32 %v4888, %v4728
        %v5049 = vadd.f32 %v4889, %v4729
        %v5050 = vadd.f32 %v4890, %v4730
        %v5051 = vadd.f32 %v4891, %v4731
        %v5052 = vadd.f32 %v4892, %v4732
        %v5053 = vadd.f32 %v4893, %v4733
        %v5054 = vadd.f32 %v4894, %v4734
        %v5055 = vadd.f32 %v4895, %v4735
        %v5056 = vadd.f32 %v4896, %v4736
        %v5057 = vadd.f32 %v4897, %v4737
        %5058 = vst [vmem:[#allocation2] sm:$0xff] %v4898
        %5059 = vst [vmem:[#allocation2 + $0x8] sm:$0xff] %v4899
        %5060 = vst [vmem:[#allocation2 + $0x10] sm:$0xff] %v4900
        %5061 = vst [vmem:[#allocation2 + $0x18] sm:$0xff] %v4901
        %5062 = vst [vmem:[#allocation2 + $0x20] sm:$0xff] %v4902
        %5063 = vst [vmem:[#allocation2 + $0x28] sm:$0xff] %v4903
        %5064 = vst [vmem:[#allocation2 + $0x30] sm:$0xff] %v4904
        %5065 = vst [vmem:[#allocation2 + $0x38] sm:$0xff] %v4905
        %5066 = vst [vmem:[#allocation2 + $0x40] sm:$0xff] %v4906
        %5067 = vst [vmem:[#allocation2 + $0x48] sm:$0xff] %v4907
        %5068 = vst [vmem:[#allocation2 + $0x50] sm:$0xff] %v4908
        %5069 = vst [vmem:[#allocation2 + $0x58] sm:$0xff] %v4909
        %5070 = vst [vmem:[#allocation2 + $0x60] sm:$0xff] %v4910
        %5071 = vst [vmem:[#allocation2 + $0x68] sm:$0xff] %v4911
        %5072 = vst [vmem:[#allocation2 + $0x70] sm:$0xff] %v4912
        %5073 = vst [vmem:[#allocation2 + $0x78] sm:$0xff] %v4913
        %5074 = vst [vmem:[#allocation2 + $0x80] sm:$0xff] %v4914
        %5075 = vst [vmem:[#allocation2 + $0x88] sm:$0xff] %v4915
        %5076 = vst [vmem:[#allocation2 + $0x90] sm:$0xff] %v4916
        %5077 = vst [vmem:[#allocation2 + $0x98] sm:$0xff] %v4917
        %5078 = vst [vmem:[#allocation2 + $0xa0] sm:$0xff] %v4918
        %5079 = vst [vmem:[#allocation2 + $0xa8] sm:$0xff] %v4919
        %5080 = vst [vmem:[#allocation2 + $0xb0] sm:$0xff] %v4920
        %5081 = vst [vmem:[#allocation2 + $0xb8] sm:$0xff] %v4921
        %5082 = vst [vmem:[#allocation2 + $0xc0] sm:$0xff] %v4922
        %5083 = vst [vmem:[#allocation2 + $0xc8] sm:$0xff] %v4923
        %5084 = vst [vmem:[#allocation2 + $0xd0] sm:$0xff] %v4924
        %5085 = vst [vmem:[#allocation2 + $0xd8] sm:$0xff] %v4925
        %5086 = vst [vmem:[#allocation2 + $0xe0] sm:$0xff] %v4926
        %5087 = vst [vmem:[#allocation2 + $0xe8] sm:$0xff] %v4927
        %5088 = vst [vmem:[#allocation2 + $0xf0] sm:$0xff] %v4928
        %5089 = vst [vmem:[#allocation2 + $0xf8] sm:$0xff] %v4929
        %5090 = vst [vmem:[#allocation2 + $0x100] sm:$0xff] %v4930
        %5091 = vst [vmem:[#allocation2 + $0x108] sm:$0xff] %v4931
        %5092 = vst [vmem:[#allocation2 + $0x110] sm:$0xff] %v4932
        %5093 = vst [vmem:[#allocation2 + $0x118] sm:$0xff] %v4933
        %5094 = vst [vmem:[#allocation2 + $0x120] sm:$0xff] %v4934
        %5095 = vst [vmem:[#allocation2 + $0x128] sm:$0xff] %v4935
        %5096 = vst [vmem:[#allocation2 + $0x130] sm:$0xff] %v4936
        %5097 = vst [vmem:[#allocation2 + $0x138] sm:$0xff] %v4937
        %5098 = vst [vmem:[#allocation2 + $0x140] sm:$0xff] %v4938
        %5099 = vst [vmem:[#allocation2 + $0x148] sm:$0xff] %v4939
        %5100 = vst [vmem:[#allocation2 + $0x150] sm:$0xff] %v4940
        %5101 = vst [vmem:[#allocation2 + $0x158] sm:$0xff] %v4941
        %5102 = vst [vmem:[#allocation2 + $0x160] sm:$0xff] %v4942
        %5103 = vst [vmem:[#allocation2 + $0x168] sm:$0xff] %v4943
        %5104 = vst [vmem:[#allocation2 + $0x170] sm:$0xff] %v4944
        %5105 = vst [vmem:[#allocation2 + $0x178] sm:$0xff] %v4945
        %5106 = vst [vmem:[#allocation2 + $0x180] sm:$0xff] %v4946
        %5107 = vst [vmem:[#allocation2 + $0x188] sm:$0xff] %v4947
        %5108 = vst [vmem:[#allocation2 + $0x190] sm:$0xff] %v4948
        %5109 = vst [vmem:[#allocation2 + $0x198] sm:$0xff] %v4949
        %5110 = vst [vmem:[#allocation2 + $0x1a0] sm:$0xff] %v4950
        %5111 = vst [vmem:[#allocation2 + $0x1a8] sm:$0xff] %v4951
        %5112 = vst [vmem:[#allocation2 + $0x1b0] sm:$0xff] %v4952
        %5113 = vst [vmem:[#allocation2 + $0x1b8] sm:$0xff] %v4953
        %5114 = vst [vmem:[#allocation2 + $0x1c0] sm:$0xff] %v4954
        %5115 = vst [vmem:[#allocation2 + $0x1c8] sm:$0xff] %v4955
        %5116 = vst [vmem:[#allocation2 + $0x1d0] sm:$0xff] %v4956
        %5117 = vst [vmem:[#allocation2 + $0x1d8] sm:$0xff] %v4957
        %5118 = vst [vmem:[#allocation2 + $0x1e0] sm:$0xff] %v4958
        %5119 = vst [vmem:[#allocation2 + $0x1e8] sm:$0xff] %v4959
        %5120 = vst [vmem:[#allocation2 + $0x1f0] sm:$0xff] %v4960
        %5121 = vst [vmem:[#allocation2 + $0x1f8] sm:$0xff] %v4961
        %5122 = vst [vmem:[#allocation2 + $0x200] sm:$0xff] %v4962
        %5123 = vst [vmem:[#allocation2 + $0x208] sm:$0xff] %v4963
        %5124 = vst [vmem:[#allocation2 + $0x210] sm:$0xff] %v4964
        %5125 = vst [vmem:[#allocation2 + $0x218] sm:$0xff] %v4965
        %5126 = vst [vmem:[#allocation2 + $0x220] sm:$0xff] %v4966
        %5127 = vst [vmem:[#allocation2 + $0x228] sm:$0xff] %v4967
        %5128 = vst [vmem:[#allocation2 + $0x230] sm:$0xff] %v4968
        %5129 = vst [vmem:[#allocation2 + $0x238] sm:$0xff] %v4969
        %5130 = vst [vmem:[#allocation2 + $0x240] sm:$0xff] %v4970
        %5131 = vst [vmem:[#allocation2 + $0x248] sm:$0xff] %v4971
        %5132 = vst [vmem:[#allocation2 + $0x250] sm:$0xff] %v4972
        %5133 = vst [vmem:[#allocation2 + $0x258] sm:$0xff] %v4973
        %5134 = vst [vmem:[#allocation2 + $0x260] sm:$0xff] %v4974
        %5135 = vst [vmem:[#allocation2 + $0x268] sm:$0xff] %v4975
        %5136 = vst [vmem:[#allocation2 + $0x270] sm:$0xff] %v4976
        %5137 = vst [vmem:[#allocation2 + $0x278] sm:$0xff] %v4977
        %5138 = vst [vmem:[#allocation2 + $0x280] sm:$0xff] %v4978
        %5139 = vst [vmem:[#allocation2 + $0x288] sm:$0xff] %v4979
        %5140 = vst [vmem:[#allocation2 + $0x290] sm:$0xff] %v4980
        %5141 = vst [vmem:[#allocation2 + $0x298] sm:$0xff] %v4981
        %5142 = vst [vmem:[#allocation2 + $0x2a0] sm:$0xff] %v4982
        %5143 = vst [vmem:[#allocation2 + $0x2a8] sm:$0xff] %v4983
        %5144 = vst [vmem:[#allocation2 + $0x2b0] sm:$0xff] %v4984
        %5145 = vst [vmem:[#allocation2 + $0x2b8] sm:$0xff] %v4985
        %5146 = vst [vmem:[#allocation2 + $0x2c0] sm:$0xff] %v4986
        %5147 = vst [vmem:[#allocation2 + $0x2c8] sm:$0xff] %v4987
        %5148 = vst [vmem:[#allocation2 + $0x2d0] sm:$0xff] %v4988
        %5149 = vst [vmem:[#allocation2 + $0x2d8] sm:$0xff] %v4989
        %5150 = vst [vmem:[#allocation2 + $0x2e0] sm:$0xff] %v4990
        %5151 = vst [vmem:[#allocation2 + $0x2e8] sm:$0xff] %v4991
        %5152 = vst [vmem:[#allocation2 + $0x2f0] sm:$0xff] %v4992
        %5153 = vst [vmem:[#allocation2 + $0x2f8] sm:$0xff] %v4993
        %5154 = vst [vmem:[#allocation2 + $0x300] sm:$0xff] %v4994
        %5155 = vst [vmem:[#allocation2 + $0x308] sm:$0xff] %v4995
        %5156 = vst [vmem:[#allocation2 + $0x310] sm:$0xff] %v4996
        %5157 = vst [vmem:[#allocation2 + $0x318] sm:$0xff] %v4997
        %5158 = vst [vmem:[#allocation2 + $0x320] sm:$0xff] %v4998
        %5159 = vst [vmem:[#allocation2 + $0x328] sm:$0xff] %v4999
        %5160 = vst [vmem:[#allocation2 + $0x330] sm:$0xff] %v5000
        %5161 = vst [vmem:[#allocation2 + $0x338] sm:$0xff] %v5001
        %5162 = vst [vmem:[#allocation2 + $0x340] sm:$0xff] %v5002
        %5163 = vst [vmem:[#allocation2 + $0x348] sm:$0xff] %v5003
        %5164 = vst [vmem:[#allocation2 + $0x350] sm:$0xff] %v5004
        %5165 = vst [vmem:[#allocation2 + $0x358] sm:$0xff] %v5005
        %5166 = vst [vmem:[#allocation2 + $0x360] sm:$0xff] %v5006
        %5167 = vst [vmem:[#allocation2 + $0x368] sm:$0xff] %v5007
        %5168 = vst [vmem:[#allocation2 + $0x370] sm:$0xff] %v5008
        %5169 = vst [vmem:[#allocation2 + $0x378] sm:$0xff] %v5009
        %5170 = vst [vmem:[#allocation2 + $0x380] sm:$0xff] %v5010
        %5171 = vst [vmem:[#allocation2 + $0x388] sm:$0xff] %v5011
        %5172 = vst [vmem:[#allocation2 + $0x390] sm:$0xff] %v5012
        %5173 = vst [vmem:[#allocation2 + $0x398] sm:$0xff] %v5013
        %5174 = vst [vmem:[#allocation2 + $0x3a0] sm:$0xff] %v5014
        %5175 = vst [vmem:[#allocation2 + $0x3a8] sm:$0xff] %v5015
        %5176 = vst [vmem:[#allocation2 + $0x3b0] sm:$0xff] %v5016
        %5177 = vst [vmem:[#allocation2 + $0x3b8] sm:$0xff] %v5017
        %5178 = vst [vmem:[#allocation2 + $0x3c0] sm:$0xff] %v5018
        %5179 = vst [vmem:[#allocation2 + $0x3c8] sm:$0xff] %v5019
        %5180 = vst [vmem:[#allocation2 + $0x3d0] sm:$0xff] %v5020
        %5181 = vst [vmem:[#allocation2 + $0x3d8] sm:$0xff] %v5021
        %5182 = vst [vmem:[#allocation2 + $0x3e0] sm:$0xff] %v5022
        %5183 = vst [vmem:[#allocation2 + $0x3e8] sm:$0xff] %v5023
        %5184 = vst [vmem:[#allocation2 + $0x3f0] sm:$0xff] %v5024
        %5185 = vst [vmem:[#allocation2 + $0x3f8] sm:$0xff] %v5025
        %5186 = vst [vmem:[#allocation2 + $0x400] sm:$0xff] %v5026
        %5187 = vst [vmem:[#allocation2 + $0x408] sm:$0xff] %v5027
        %5188 = vst [vmem:[#allocation2 + $0x410] sm:$0xff] %v5028
        %5189 = vst [vmem:[#allocation2 + $0x418] sm:$0xff] %v5029
        %5190 = vst [vmem:[#allocation2 + $0x420] sm:$0xff] %v5030
        %5191 = vst [vmem:[#allocation2 + $0x428] sm:$0xff] %v5031
        %5192 = vst [vmem:[#allocation2 + $0x430] sm:$0xff] %v5032
        %5193 = vst [vmem:[#allocation2 + $0x438] sm:$0xff] %v5033
        %5194 = vst [vmem:[#allocation2 + $0x440] sm:$0xff] %v5034
        %5195 = vst [vmem:[#allocation2 + $0x448] sm:$0xff] %v5035
        %5196 = vst [vmem:[#allocation2 + $0x450] sm:$0xff] %v5036
        %5197 = vst [vmem:[#allocation2 + $0x458] sm:$0xff] %v5037
        %5198 = vst [vmem:[#allocation2 + $0x460] sm:$0xff] %v5038
        %5199 = vst [vmem:[#allocation2 + $0x468] sm:$0xff] %v5039
        %5200 = vst [vmem:[#allocation2 + $0x470] sm:$0xff] %v5040
        %5201 = vst [vmem:[#allocation2 + $0x478] sm:$0xff] %v5041
        %5202 = vst [vmem:[#allocation2 + $0x480] sm:$0xff] %v5042
        %5203 = vst [vmem:[#allocation2 + $0x488] sm:$0xff] %v5043
        %5204 = vst [vmem:[#allocation2 + $0x490] sm:$0xff] %v5044
        %5205 = vst [vmem:[#allocation2 + $0x498] sm:$0xff] %v5045
        %5206 = vst [vmem:[#allocation2 + $0x4a0] sm:$0xff] %v5046
        %5207 = vst [vmem:[#allocation2 + $0x4a8] sm:$0xff] %v5047
        %5208 = vst [vmem:[#allocation2 + $0x4b0] sm:$0xff] %v5048
        %5209 = vst [vmem:[#allocation2 + $0x4b8] sm:$0xff] %v5049
        %5210 = vst [vmem:[#allocation2 + $0x4c0] sm:$0xff] %v5050
        %5211 = vst [vmem:[#allocation2 + $0x4c8] sm:$0xff] %v5051
        %5212 = vst [vmem:[#allocation2 + $0x4d0] sm:$0xff] %v5052
        %5213 = vst [vmem:[#allocation2 + $0x4d8] sm:$0xff] %v5053
        %5214 = vst [vmem:[#allocation2 + $0x4e0] sm:$0xff] %v5054
        %5215 = vst [vmem:[#allocation2 + $0x4e8] sm:$0xff] %v5055
        %5216 = vst [vmem:[#allocation2 + $0x4f0] sm:$0xff] %v5056
        %5217 = vst [vmem:[#allocation2 + $0x4f8] sm:$0xff] %v5057
        // Predicated region
        $region41: #{tpu_custom_call.1} parent=31 // pred_check
          %p5218 = pneg %p207
        $region42: #{tpu_custom_call.1} parent=31 // pred_check_branch
          %5220 = sbr.rel (%p5218) target = $region44
        $region43: #{tpu_custom_call.1} parent=31 // pred_region
          %v5221 = vld [vmem:[#allocation2] sm:$0xff]
          %v5222 = vld [vmem:[#allocation2 + $0x8] sm:$0xff]
          %v5223 = vld [vmem:[#allocation2 + $0x10] sm:$0xff]
          %v5224 = vld [vmem:[#allocation2 + $0x18] sm:$0xff]
          %v5225 = vld [vmem:[#allocation2 + $0x20] sm:$0xff]
          %v5226 = vld [vmem:[#allocation2 + $0x28] sm:$0xff]
          %v5227 = vld [vmem:[#allocation2 + $0x30] sm:$0xff]
          %v5228 = vld [vmem:[#allocation2 + $0x38] sm:$0xff]
          %v5229 = vld [vmem:[#allocation2 + $0x40] sm:$0xff]
          %v5230 = vld [vmem:[#allocation2 + $0x48] sm:$0xff]
          %v5231 = vld [vmem:[#allocation2 + $0x50] sm:$0xff]
          %v5232 = vld [vmem:[#allocation2 + $0x58] sm:$0xff]
          %v5233 = vld [vmem:[#allocation2 + $0x60] sm:$0xff]
          %v5234 = vld [vmem:[#allocation2 + $0x68] sm:$0xff]
          %v5235 = vld [vmem:[#allocation2 + $0x70] sm:$0xff]
          %v5236 = vld [vmem:[#allocation2 + $0x78] sm:$0xff]
          %v5237 = vld [vmem:[#allocation2 + $0x80] sm:$0xff]
          %v5238 = vld [vmem:[#allocation2 + $0x88] sm:$0xff]
          %v5239 = vld [vmem:[#allocation2 + $0x90] sm:$0xff]
          %v5240 = vld [vmem:[#allocation2 + $0x98] sm:$0xff]
          %v5241 = vld [vmem:[#allocation2 + $0xa0] sm:$0xff]
          %v5242 = vld [vmem:[#allocation2 + $0xa8] sm:$0xff]
          %v5243 = vld [vmem:[#allocation2 + $0xb0] sm:$0xff]
          %v5244 = vld [vmem:[#allocation2 + $0xb8] sm:$0xff]
          %v5245 = vld [vmem:[#allocation2 + $0xc0] sm:$0xff]
          %v5246 = vld [vmem:[#allocation2 + $0xc8] sm:$0xff]
          %v5247 = vld [vmem:[#allocation2 + $0xd0] sm:$0xff]
          %v5248 = vld [vmem:[#allocation2 + $0xd8] sm:$0xff]
          %v5249 = vld [vmem:[#allocation2 + $0xe0] sm:$0xff]
          %v5250 = vld [vmem:[#allocation2 + $0xe8] sm:$0xff]
          %v5251 = vld [vmem:[#allocation2 + $0xf0] sm:$0xff]
          %v5252 = vld [vmem:[#allocation2 + $0xf8] sm:$0xff]
          %v5253 = vld [vmem:[#allocation2 + $0x100] sm:$0xff]
          %v5254 = vld [vmem:[#allocation2 + $0x108] sm:$0xff]
          %v5255 = vld [vmem:[#allocation2 + $0x110] sm:$0xff]
          %v5256 = vld [vmem:[#allocation2 + $0x118] sm:$0xff]
          %v5257 = vld [vmem:[#allocation2 + $0x120] sm:$0xff]
          %v5258 = vld [vmem:[#allocation2 + $0x128] sm:$0xff]
          %v5259 = vld [vmem:[#allocation2 + $0x130] sm:$0xff]
          %v5260 = vld [vmem:[#allocation2 + $0x138] sm:$0xff]
          %v5261 = vld [vmem:[#allocation2 + $0x140] sm:$0xff]
          %v5262 = vld [vmem:[#allocation2 + $0x148] sm:$0xff]
          %v5263 = vld [vmem:[#allocation2 + $0x150] sm:$0xff]
          %v5264 = vld [vmem:[#allocation2 + $0x158] sm:$0xff]
          %v5265 = vld [vmem:[#allocation2 + $0x160] sm:$0xff]
          %v5266 = vld [vmem:[#allocation2 + $0x168] sm:$0xff]
          %v5267 = vld [vmem:[#allocation2 + $0x170] sm:$0xff]
          %v5268 = vld [vmem:[#allocation2 + $0x178] sm:$0xff]
          %v5269 = vld [vmem:[#allocation2 + $0x180] sm:$0xff]
          %v5270 = vld [vmem:[#allocation2 + $0x188] sm:$0xff]
          %v5271 = vld [vmem:[#allocation2 + $0x190] sm:$0xff]
          %v5272 = vld [vmem:[#allocation2 + $0x198] sm:$0xff]
          %v5273 = vld [vmem:[#allocation2 + $0x1a0] sm:$0xff]
          %v5274 = vld [vmem:[#allocation2 + $0x1a8] sm:$0xff]
          %v5275 = vld [vmem:[#allocation2 + $0x1b0] sm:$0xff]
          %v5276 = vld [vmem:[#allocation2 + $0x1b8] sm:$0xff]
          %v5277 = vld [vmem:[#allocation2 + $0x1c0] sm:$0xff]
          %v5278 = vld [vmem:[#allocation2 + $0x1c8] sm:$0xff]
          %v5279 = vld [vmem:[#allocation2 + $0x1d0] sm:$0xff]
          %v5280 = vld [vmem:[#allocation2 + $0x1d8] sm:$0xff]
          %v5281 = vld [vmem:[#allocation2 + $0x1e0] sm:$0xff]
          %v5282 = vld [vmem:[#allocation2 + $0x1e8] sm:$0xff]
          %v5283 = vld [vmem:[#allocation2 + $0x1f0] sm:$0xff]
          %v5284 = vld [vmem:[#allocation2 + $0x1f8] sm:$0xff]
          %v5285 = vld [vmem:[#allocation2 + $0x200] sm:$0xff]
          %v5286 = vld [vmem:[#allocation2 + $0x208] sm:$0xff]
          %v5287 = vld [vmem:[#allocation2 + $0x210] sm:$0xff]
          %v5288 = vld [vmem:[#allocation2 + $0x218] sm:$0xff]
          %v5289 = vld [vmem:[#allocation2 + $0x220] sm:$0xff]
          %v5290 = vld [vmem:[#allocation2 + $0x228] sm:$0xff]
          %v5291 = vld [vmem:[#allocation2 + $0x230] sm:$0xff]
          %v5292 = vld [vmem:[#allocation2 + $0x238] sm:$0xff]
          %v5293 = vld [vmem:[#allocation2 + $0x240] sm:$0xff]
          %v5294 = vld [vmem:[#allocation2 + $0x248] sm:$0xff]
          %v5295 = vld [vmem:[#allocation2 + $0x250] sm:$0xff]
          %v5296 = vld [vmem:[#allocation2 + $0x258] sm:$0xff]
          %v5297 = vld [vmem:[#allocation2 + $0x260] sm:$0xff]
          %v5298 = vld [vmem:[#allocation2 + $0x268] sm:$0xff]
          %v5299 = vld [vmem:[#allocation2 + $0x270] sm:$0xff]
          %v5300 = vld [vmem:[#allocation2 + $0x278] sm:$0xff]
          %v5301 = vld [vmem:[#allocation2 + $0x280] sm:$0xff]
          %v5302 = vld [vmem:[#allocation2 + $0x288] sm:$0xff]
          %v5303 = vld [vmem:[#allocation2 + $0x290] sm:$0xff]
          %v5304 = vld [vmem:[#allocation2 + $0x298] sm:$0xff]
          %v5305 = vld [vmem:[#allocation2 + $0x2a0] sm:$0xff]
          %v5306 = vld [vmem:[#allocation2 + $0x2a8] sm:$0xff]
          %v5307 = vld [vmem:[#allocation2 + $0x2b0] sm:$0xff]
          %v5308 = vld [vmem:[#allocation2 + $0x2b8] sm:$0xff]
          %v5309 = vld [vmem:[#allocation2 + $0x2c0] sm:$0xff]
          %v5310 = vld [vmem:[#allocation2 + $0x2c8] sm:$0xff]
          %v5311 = vld [vmem:[#allocation2 + $0x2d0] sm:$0xff]
          %v5312 = vld [vmem:[#allocation2 + $0x2d8] sm:$0xff]
          %v5313 = vld [vmem:[#allocation2 + $0x2e0] sm:$0xff]
          %v5314 = vld [vmem:[#allocation2 + $0x2e8] sm:$0xff]
          %v5315 = vld [vmem:[#allocation2 + $0x2f0] sm:$0xff]
          %v5316 = vld [vmem:[#allocation2 + $0x2f8] sm:$0xff]
          %v5317 = vld [vmem:[#allocation2 + $0x300] sm:$0xff]
          %v5318 = vld [vmem:[#allocation2 + $0x308] sm:$0xff]
          %v5319 = vld [vmem:[#allocation2 + $0x310] sm:$0xff]
          %v5320 = vld [vmem:[#allocation2 + $0x318] sm:$0xff]
          %v5321 = vld [vmem:[#allocation2 + $0x320] sm:$0xff]
          %v5322 = vld [vmem:[#allocation2 + $0x328] sm:$0xff]
          %v5323 = vld [vmem:[#allocation2 + $0x330] sm:$0xff]
          %v5324 = vld [vmem:[#allocation2 + $0x338] sm:$0xff]
          %v5325 = vld [vmem:[#allocation2 + $0x340] sm:$0xff]
          %v5326 = vld [vmem:[#allocation2 + $0x348] sm:$0xff]
          %v5327 = vld [vmem:[#allocation2 + $0x350] sm:$0xff]
          %v5328 = vld [vmem:[#allocation2 + $0x358] sm:$0xff]
          %v5329 = vld [vmem:[#allocation2 + $0x360] sm:$0xff]
          %v5330 = vld [vmem:[#allocation2 + $0x368] sm:$0xff]
          %v5331 = vld [vmem:[#allocation2 + $0x370] sm:$0xff]
          %v5332 = vld [vmem:[#allocation2 + $0x378] sm:$0xff]
          %v5333 = vld [vmem:[#allocation2 + $0x380] sm:$0xff]
          %v5334 = vld [vmem:[#allocation2 + $0x388] sm:$0xff]
          %v5335 = vld [vmem:[#allocation2 + $0x390] sm:$0xff]
          %v5336 = vld [vmem:[#allocation2 + $0x398] sm:$0xff]
          %v5337 = vld [vmem:[#allocation2 + $0x3a0] sm:$0xff]
          %v5338 = vld [vmem:[#allocation2 + $0x3a8] sm:$0xff]
          %v5339 = vld [vmem:[#allocation2 + $0x3b0] sm:$0xff]
          %v5340 = vld [vmem:[#allocation2 + $0x3b8] sm:$0xff]
          %v5341 = vld [vmem:[#allocation2 + $0x3c0] sm:$0xff]
          %v5342 = vld [vmem:[#allocation2 + $0x3c8] sm:$0xff]
          %v5343 = vld [vmem:[#allocation2 + $0x3d0] sm:$0xff]
          %v5344 = vld [vmem:[#allocation2 + $0x3d8] sm:$0xff]
          %v5345 = vld [vmem:[#allocation2 + $0x3e0] sm:$0xff]
          %v5346 = vld [vmem:[#allocation2 + $0x3e8] sm:$0xff]
          %v5347 = vld [vmem:[#allocation2 + $0x3f0] sm:$0xff]
          %v5348 = vld [vmem:[#allocation2 + $0x3f8] sm:$0xff]
          %v5349 = vld [vmem:[#allocation2 + $0x400] sm:$0xff]
          %v5350 = vld [vmem:[#allocation2 + $0x408] sm:$0xff]
          %v5351 = vld [vmem:[#allocation2 + $0x410] sm:$0xff]
          %v5352 = vld [vmem:[#allocation2 + $0x418] sm:$0xff]
          %v5353 = vld [vmem:[#allocation2 + $0x420] sm:$0xff]
          %v5354 = vld [vmem:[#allocation2 + $0x428] sm:$0xff]
          %v5355 = vld [vmem:[#allocation2 + $0x430] sm:$0xff]
          %v5356 = vld [vmem:[#allocation2 + $0x438] sm:$0xff]
          %v5357 = vld [vmem:[#allocation2 + $0x440] sm:$0xff]
          %v5358 = vld [vmem:[#allocation2 + $0x448] sm:$0xff]
          %v5359 = vld [vmem:[#allocation2 + $0x450] sm:$0xff]
          %v5360 = vld [vmem:[#allocation2 + $0x458] sm:$0xff]
          %v5361 = vld [vmem:[#allocation2 + $0x460] sm:$0xff]
          %v5362 = vld [vmem:[#allocation2 + $0x468] sm:$0xff]
          %v5363 = vld [vmem:[#allocation2 + $0x470] sm:$0xff]
          %v5364 = vld [vmem:[#allocation2 + $0x478] sm:$0xff]
          %v5365 = vld [vmem:[#allocation2 + $0x480] sm:$0xff]
          %v5366 = vld [vmem:[#allocation2 + $0x488] sm:$0xff]
          %v5367 = vld [vmem:[#allocation2 + $0x490] sm:$0xff]
          %v5368 = vld [vmem:[#allocation2 + $0x498] sm:$0xff]
          %v5369 = vld [vmem:[#allocation2 + $0x4a0] sm:$0xff]
          %v5370 = vld [vmem:[#allocation2 + $0x4a8] sm:$0xff]
          %v5371 = vld [vmem:[#allocation2 + $0x4b0] sm:$0xff]
          %v5372 = vld [vmem:[#allocation2 + $0x4b8] sm:$0xff]
          %v5373 = vld [vmem:[#allocation2 + $0x4c0] sm:$0xff]
          %v5374 = vld [vmem:[#allocation2 + $0x4c8] sm:$0xff]
          %v5375 = vld [vmem:[#allocation2 + $0x4d0] sm:$0xff]
          %v5376 = vld [vmem:[#allocation2 + $0x4d8] sm:$0xff]
          %v5377 = vld [vmem:[#allocation2 + $0x4e0] sm:$0xff]
          %v5378 = vld [vmem:[#allocation2 + $0x4e8] sm:$0xff]
          %v5379 = vld [vmem:[#allocation2 + $0x4f0] sm:$0xff]
          %v5380 = vld [vmem:[#allocation2 + $0x4f8] sm:$0xff]
          %5381 = vadd.xlane.f32.xlu0 %v5221
          %v5382 = vpop.xlane.xlu0 %5381
          %5383 = vadd.xlane.f32.xlu0 %v5222
          %v5384 = vpop.xlane.xlu0 %5383
          %5385 = vadd.xlane.f32.xlu0 %v5223
          %v5386 = vpop.xlane.xlu0 %5385
          %5387 = vadd.xlane.f32.xlu0 %v5224
          %v5388 = vpop.xlane.xlu0 %5387
          %5389 = vadd.xlane.f32.xlu0 %v5225
          %v5390 = vpop.xlane.xlu0 %5389
          %5391 = vadd.xlane.f32.xlu0 %v5226
          %v5392 = vpop.xlane.xlu0 %5391
          %5393 = vadd.xlane.f32.xlu0 %v5227
          %v5394 = vpop.xlane.xlu0 %5393
          %5395 = vadd.xlane.f32.xlu0 %v5228
          %v5396 = vpop.xlane.xlu0 %5395
          %5397 = vadd.xlane.f32.xlu0 %v5229
          %v5398 = vpop.xlane.xlu0 %5397
          %5399 = vadd.xlane.f32.xlu0 %v5230
          %v5400 = vpop.xlane.xlu0 %5399
          %5401 = vadd.xlane.f32.xlu0 %v5231
          %v5402 = vpop.xlane.xlu0 %5401
          %5403 = vadd.xlane.f32.xlu0 %v5232
          %v5404 = vpop.xlane.xlu0 %5403
          %5405 = vadd.xlane.f32.xlu0 %v5233
          %v5406 = vpop.xlane.xlu0 %5405
          %5407 = vadd.xlane.f32.xlu0 %v5234
          %v5408 = vpop.xlane.xlu0 %5407
          %5409 = vadd.xlane.f32.xlu0 %v5235
          %v5410 = vpop.xlane.xlu0 %5409
          %5411 = vadd.xlane.f32.xlu0 %v5236
          %v5412 = vpop.xlane.xlu0 %5411
          %5413 = vadd.xlane.f32.xlu0 %v5237
          %v5414 = vpop.xlane.xlu0 %5413
          %5415 = vadd.xlane.f32.xlu0 %v5238
          %v5416 = vpop.xlane.xlu0 %5415
          %5417 = vadd.xlane.f32.xlu0 %v5239
          %v5418 = vpop.xlane.xlu0 %5417
          %5419 = vadd.xlane.f32.xlu0 %v5240
          %v5420 = vpop.xlane.xlu0 %5419
          %5421 = vadd.xlane.f32.xlu0 %v5241
          %v5422 = vpop.xlane.xlu0 %5421
          %5423 = vadd.xlane.f32.xlu0 %v5242
          %v5424 = vpop.xlane.xlu0 %5423
          %5425 = vadd.xlane.f32.xlu0 %v5243
          %v5426 = vpop.xlane.xlu0 %5425
          %5427 = vadd.xlane.f32.xlu0 %v5244
          %v5428 = vpop.xlane.xlu0 %5427
          %5429 = vadd.xlane.f32.xlu0 %v5245
          %v5430 = vpop.xlane.xlu0 %5429
          %5431 = vadd.xlane.f32.xlu0 %v5246
          %v5432 = vpop.xlane.xlu0 %5431
          %5433 = vadd.xlane.f32.xlu0 %v5247
          %v5434 = vpop.xlane.xlu0 %5433
          %5435 = vadd.xlane.f32.xlu0 %v5248
          %v5436 = vpop.xlane.xlu0 %5435
          %5437 = vadd.xlane.f32.xlu0 %v5249
          %v5438 = vpop.xlane.xlu0 %5437
          %5439 = vadd.xlane.f32.xlu0 %v5250
          %v5440 = vpop.xlane.xlu0 %5439
          %5441 = vadd.xlane.f32.xlu0 %v5251
          %v5442 = vpop.xlane.xlu0 %5441
          %5443 = vadd.xlane.f32.xlu0 %v5252
          %v5444 = vpop.xlane.xlu0 %5443
          %5445 = vadd.xlane.f32.xlu0 %v5253
          %v5446 = vpop.xlane.xlu0 %5445
          %5447 = vadd.xlane.f32.xlu0 %v5254
          %v5448 = vpop.xlane.xlu0 %5447
          %5449 = vadd.xlane.f32.xlu0 %v5255
          %v5450 = vpop.xlane.xlu0 %5449
          %5451 = vadd.xlane.f32.xlu0 %v5256
          %v5452 = vpop.xlane.xlu0 %5451
          %5453 = vadd.xlane.f32.xlu0 %v5257
          %v5454 = vpop.xlane.xlu0 %5453
          %5455 = vadd.xlane.f32.xlu0 %v5258
          %v5456 = vpop.xlane.xlu0 %5455
          %5457 = vadd.xlane.f32.xlu0 %v5259
          %v5458 = vpop.xlane.xlu0 %5457
          %5459 = vadd.xlane.f32.xlu0 %v5260
          %v5460 = vpop.xlane.xlu0 %5459
          %5461 = vadd.xlane.f32.xlu0 %v5261
          %v5462 = vpop.xlane.xlu0 %5461
          %5463 = vadd.xlane.f32.xlu0 %v5262
          %v5464 = vpop.xlane.xlu0 %5463
          %5465 = vadd.xlane.f32.xlu0 %v5263
          %v5466 = vpop.xlane.xlu0 %5465
          %5467 = vadd.xlane.f32.xlu0 %v5264
          %v5468 = vpop.xlane.xlu0 %5467
          %5469 = vadd.xlane.f32.xlu0 %v5265
          %v5470 = vpop.xlane.xlu0 %5469
          %5471 = vadd.xlane.f32.xlu0 %v5266
          %v5472 = vpop.xlane.xlu0 %5471
          %5473 = vadd.xlane.f32.xlu0 %v5267
          %v5474 = vpop.xlane.xlu0 %5473
          %5475 = vadd.xlane.f32.xlu0 %v5268
          %v5476 = vpop.xlane.xlu0 %5475
          %5477 = vadd.xlane.f32.xlu0 %v5269
          %v5478 = vpop.xlane.xlu0 %5477
          %5479 = vadd.xlane.f32.xlu0 %v5270
          %v5480 = vpop.xlane.xlu0 %5479
          %5481 = vadd.xlane.f32.xlu0 %v5271
          %v5482 = vpop.xlane.xlu0 %5481
          %5483 = vadd.xlane.f32.xlu0 %v5272
          %v5484 = vpop.xlane.xlu0 %5483
          %5485 = vadd.xlane.f32.xlu0 %v5273
          %v5486 = vpop.xlane.xlu0 %5485
          %5487 = vadd.xlane.f32.xlu0 %v5274
          %v5488 = vpop.xlane.xlu0 %5487
          %5489 = vadd.xlane.f32.xlu0 %v5275
          %v5490 = vpop.xlane.xlu0 %5489
          %5491 = vadd.xlane.f32.xlu0 %v5276
          %v5492 = vpop.xlane.xlu0 %5491
          %5493 = vadd.xlane.f32.xlu0 %v5277
          %v5494 = vpop.xlane.xlu0 %5493
          %5495 = vadd.xlane.f32.xlu0 %v5278
          %v5496 = vpop.xlane.xlu0 %5495
          %5497 = vadd.xlane.f32.xlu0 %v5279
          %v5498 = vpop.xlane.xlu0 %5497
          %5499 = vadd.xlane.f32.xlu0 %v5280
          %v5500 = vpop.xlane.xlu0 %5499
          %5501 = vadd.xlane.f32.xlu0 %v5281
          %v5502 = vpop.xlane.xlu0 %5501
          %5503 = vadd.xlane.f32.xlu0 %v5282
          %v5504 = vpop.xlane.xlu0 %5503
          %5505 = vadd.xlane.f32.xlu0 %v5283
          %v5506 = vpop.xlane.xlu0 %5505
          %5507 = vadd.xlane.f32.xlu0 %v5284
          %v5508 = vpop.xlane.xlu0 %5507
          %5509 = vadd.xlane.f32.xlu0 %v5285
          %v5510 = vpop.xlane.xlu0 %5509
          %5511 = vadd.xlane.f32.xlu0 %v5286
          %v5512 = vpop.xlane.xlu0 %5511
          %5513 = vadd.xlane.f32.xlu0 %v5287
          %v5514 = vpop.xlane.xlu0 %5513
          %5515 = vadd.xlane.f32.xlu0 %v5288
          %v5516 = vpop.xlane.xlu0 %5515
          %5517 = vadd.xlane.f32.xlu0 %v5289
          %v5518 = vpop.xlane.xlu0 %5517
          %5519 = vadd.xlane.f32.xlu0 %v5290
          %v5520 = vpop.xlane.xlu0 %5519
          %5521 = vadd.xlane.f32.xlu0 %v5291
          %v5522 = vpop.xlane.xlu0 %5521
          %5523 = vadd.xlane.f32.xlu0 %v5292
          %v5524 = vpop.xlane.xlu0 %5523
          %5525 = vadd.xlane.f32.xlu0 %v5293
          %v5526 = vpop.xlane.xlu0 %5525
          %5527 = vadd.xlane.f32.xlu0 %v5294
          %v5528 = vpop.xlane.xlu0 %5527
          %5529 = vadd.xlane.f32.xlu0 %v5295
          %v5530 = vpop.xlane.xlu0 %5529
          %5531 = vadd.xlane.f32.xlu0 %v5296
          %v5532 = vpop.xlane.xlu0 %5531
          %5533 = vadd.xlane.f32.xlu0 %v5297
          %v5534 = vpop.xlane.xlu0 %5533
          %5535 = vadd.xlane.f32.xlu0 %v5298
          %v5536 = vpop.xlane.xlu0 %5535
          %5537 = vadd.xlane.f32.xlu0 %v5299
          %v5538 = vpop.xlane.xlu0 %5537
          %5539 = vadd.xlane.f32.xlu0 %v5300
          %v5540 = vpop.xlane.xlu0 %5539
          %5541 = vadd.xlane.f32.xlu0 %v5301
          %v5542 = vpop.xlane.xlu0 %5541
          %5543 = vadd.xlane.f32.xlu0 %v5302
          %v5544 = vpop.xlane.xlu0 %5543
          %5545 = vadd.xlane.f32.xlu0 %v5303
          %v5546 = vpop.xlane.xlu0 %5545
          %5547 = vadd.xlane.f32.xlu0 %v5304
          %v5548 = vpop.xlane.xlu0 %5547
          %5549 = vadd.xlane.f32.xlu0 %v5305
          %v5550 = vpop.xlane.xlu0 %5549
          %5551 = vadd.xlane.f32.xlu0 %v5306
          %v5552 = vpop.xlane.xlu0 %5551
          %5553 = vadd.xlane.f32.xlu0 %v5307
          %v5554 = vpop.xlane.xlu0 %5553
          %5555 = vadd.xlane.f32.xlu0 %v5308
          %v5556 = vpop.xlane.xlu0 %5555
          %5557 = vadd.xlane.f32.xlu0 %v5309
          %v5558 = vpop.xlane.xlu0 %5557
          %5559 = vadd.xlane.f32.xlu0 %v5310
          %v5560 = vpop.xlane.xlu0 %5559
          %5561 = vadd.xlane.f32.xlu0 %v5311
          %v5562 = vpop.xlane.xlu0 %5561
          %5563 = vadd.xlane.f32.xlu0 %v5312
          %v5564 = vpop.xlane.xlu0 %5563
          %5565 = vadd.xlane.f32.xlu0 %v5313
          %v5566 = vpop.xlane.xlu0 %5565
          %5567 = vadd.xlane.f32.xlu0 %v5314
          %v5568 = vpop.xlane.xlu0 %5567
          %5569 = vadd.xlane.f32.xlu0 %v5315
          %v5570 = vpop.xlane.xlu0 %5569
          %5571 = vadd.xlane.f32.xlu0 %v5316
          %v5572 = vpop.xlane.xlu0 %5571
          %5573 = vadd.xlane.f32.xlu0 %v5317
          %v5574 = vpop.xlane.xlu0 %5573
          %5575 = vadd.xlane.f32.xlu0 %v5318
          %v5576 = vpop.xlane.xlu0 %5575
          %5577 = vadd.xlane.f32.xlu0 %v5319
          %v5578 = vpop.xlane.xlu0 %5577
          %5579 = vadd.xlane.f32.xlu0 %v5320
          %v5580 = vpop.xlane.xlu0 %5579
          %5581 = vadd.xlane.f32.xlu0 %v5321
          %v5582 = vpop.xlane.xlu0 %5581
          %5583 = vadd.xlane.f32.xlu0 %v5322
          %v5584 = vpop.xlane.xlu0 %5583
          %5585 = vadd.xlane.f32.xlu0 %v5323
          %v5586 = vpop.xlane.xlu0 %5585
          %5587 = vadd.xlane.f32.xlu0 %v5324
          %v5588 = vpop.xlane.xlu0 %5587
          %5589 = vadd.xlane.f32.xlu0 %v5325
          %v5590 = vpop.xlane.xlu0 %5589
          %5591 = vadd.xlane.f32.xlu0 %v5326
          %v5592 = vpop.xlane.xlu0 %5591
          %5593 = vadd.xlane.f32.xlu0 %v5327
          %v5594 = vpop.xlane.xlu0 %5593
          %5595 = vadd.xlane.f32.xlu0 %v5328
          %v5596 = vpop.xlane.xlu0 %5595
          %5597 = vadd.xlane.f32.xlu0 %v5329
          %v5598 = vpop.xlane.xlu0 %5597
          %5599 = vadd.xlane.f32.xlu0 %v5330
          %v5600 = vpop.xlane.xlu0 %5599
          %5601 = vadd.xlane.f32.xlu0 %v5331
          %v5602 = vpop.xlane.xlu0 %5601
          %5603 = vadd.xlane.f32.xlu0 %v5332
          %v5604 = vpop.xlane.xlu0 %5603
          %5605 = vadd.xlane.f32.xlu0 %v5333
          %v5606 = vpop.xlane.xlu0 %5605
          %5607 = vadd.xlane.f32.xlu0 %v5334
          %v5608 = vpop.xlane.xlu0 %5607
          %5609 = vadd.xlane.f32.xlu0 %v5335
          %v5610 = vpop.xlane.xlu0 %5609
          %5611 = vadd.xlane.f32.xlu0 %v5336
          %v5612 = vpop.xlane.xlu0 %5611
          %5613 = vadd.xlane.f32.xlu0 %v5337
          %v5614 = vpop.xlane.xlu0 %5613
          %5615 = vadd.xlane.f32.xlu0 %v5338
          %v5616 = vpop.xlane.xlu0 %5615
          %5617 = vadd.xlane.f32.xlu0 %v5339
          %v5618 = vpop.xlane.xlu0 %5617
          %5619 = vadd.xlane.f32.xlu0 %v5340
          %v5620 = vpop.xlane.xlu0 %5619
          %5621 = vadd.xlane.f32.xlu0 %v5341
          %v5622 = vpop.xlane.xlu0 %5621
          %5623 = vadd.xlane.f32.xlu0 %v5342
          %v5624 = vpop.xlane.xlu0 %5623
          %5625 = vadd.xlane.f32.xlu0 %v5343
          %v5626 = vpop.xlane.xlu0 %5625
          %5627 = vadd.xlane.f32.xlu0 %v5344
          %v5628 = vpop.xlane.xlu0 %5627
          %5629 = vadd.xlane.f32.xlu0 %v5345
          %v5630 = vpop.xlane.xlu0 %5629
          %5631 = vadd.xlane.f32.xlu0 %v5346
          %v5632 = vpop.xlane.xlu0 %5631
          %5633 = vadd.xlane.f32.xlu0 %v5347
          %v5634 = vpop.xlane.xlu0 %5633
          %5635 = vadd.xlane.f32.xlu0 %v5348
          %v5636 = vpop.xlane.xlu0 %5635
          %5637 = vadd.xlane.f32.xlu0 %v5349
          %v5638 = vpop.xlane.xlu0 %5637
          %5639 = vadd.xlane.f32.xlu0 %v5350
          %v5640 = vpop.xlane.xlu0 %5639
          %5641 = vadd.xlane.f32.xlu0 %v5351
          %v5642 = vpop.xlane.xlu0 %5641
          %5643 = vadd.xlane.f32.xlu0 %v5352
          %v5644 = vpop.xlane.xlu0 %5643
          %5645 = vadd.xlane.f32.xlu0 %v5353
          %v5646 = vpop.xlane.xlu0 %5645
          %5647 = vadd.xlane.f32.xlu0 %v5354
          %v5648 = vpop.xlane.xlu0 %5647
          %5649 = vadd.xlane.f32.xlu0 %v5355
          %v5650 = vpop.xlane.xlu0 %5649
          %5651 = vadd.xlane.f32.xlu0 %v5356
          %v5652 = vpop.xlane.xlu0 %5651
          %5653 = vadd.xlane.f32.xlu0 %v5357
          %v5654 = vpop.xlane.xlu0 %5653
          %5655 = vadd.xlane.f32.xlu0 %v5358
          %v5656 = vpop.xlane.xlu0 %5655
          %5657 = vadd.xlane.f32.xlu0 %v5359
          %v5658 = vpop.xlane.xlu0 %5657
          %5659 = vadd.xlane.f32.xlu0 %v5360
          %v5660 = vpop.xlane.xlu0 %5659
          %5661 = vadd.xlane.f32.xlu0 %v5361
          %v5662 = vpop.xlane.xlu0 %5661
          %5663 = vadd.xlane.f32.xlu0 %v5362
          %v5664 = vpop.xlane.xlu0 %5663
          %5665 = vadd.xlane.f32.xlu0 %v5363
          %v5666 = vpop.xlane.xlu0 %5665
          %5667 = vadd.xlane.f32.xlu0 %v5364
          %v5668 = vpop.xlane.xlu0 %5667
          %5669 = vadd.xlane.f32.xlu0 %v5365
          %v5670 = vpop.xlane.xlu0 %5669
          %5671 = vadd.xlane.f32.xlu0 %v5366
          %v5672 = vpop.xlane.xlu0 %5671
          %5673 = vadd.xlane.f32.xlu0 %v5367
          %v5674 = vpop.xlane.xlu0 %5673
          %5675 = vadd.xlane.f32.xlu0 %v5368
          %v5676 = vpop.xlane.xlu0 %5675
          %5677 = vadd.xlane.f32.xlu0 %v5369
          %v5678 = vpop.xlane.xlu0 %5677
          %5679 = vadd.xlane.f32.xlu0 %v5370
          %v5680 = vpop.xlane.xlu0 %5679
          %5681 = vadd.xlane.f32.xlu0 %v5371
          %v5682 = vpop.xlane.xlu0 %5681
          %5683 = vadd.xlane.f32.xlu0 %v5372
          %v5684 = vpop.xlane.xlu0 %5683
          %5685 = vadd.xlane.f32.xlu0 %v5373
          %v5686 = vpop.xlane.xlu0 %5685
          %5687 = vadd.xlane.f32.xlu0 %v5374
          %v5688 = vpop.xlane.xlu0 %5687
          %5689 = vadd.xlane.f32.xlu0 %v5375
          %v5690 = vpop.xlane.xlu0 %5689
          %5691 = vadd.xlane.f32.xlu0 %v5376
          %v5692 = vpop.xlane.xlu0 %5691
          %5693 = vadd.xlane.f32.xlu0 %v5377
          %v5694 = vpop.xlane.xlu0 %5693
          %5695 = vadd.xlane.f32.xlu0 %v5378
          %v5696 = vpop.xlane.xlu0 %5695
          %5697 = vadd.xlane.f32.xlu0 %v5379
          %v5698 = vpop.xlane.xlu0 %5697
          %5699 = vadd.xlane.f32.xlu0 %v5380
          %v5700 = vpop.xlane.xlu0 %5699
          %vm5701 = vcmask 7168
          %5702 = vst.msk [vmem:[%s205] sm:$0xff] %vm5701, %v5382
          %5703 = vst.msk [vmem:[%s205 + $0x8] sm:$0xff] %vm5701, %v5384
          %5704 = vst.msk [vmem:[%s205 + $0x10] sm:$0xff] %vm5701, %v5386
          %5705 = vst.msk [vmem:[%s205 + $0x18] sm:$0xff] %vm5701, %v5388
          %5706 = vst.msk [vmem:[%s205 + $0x20] sm:$0xff] %vm5701, %v5390
          %5707 = vst.msk [vmem:[%s205 + $0x28] sm:$0xff] %vm5701, %v5392
          %5708 = vst.msk [vmem:[%s205 + $0x30] sm:$0xff] %vm5701, %v5394
          %5709 = vst.msk [vmem:[%s205 + $0x38] sm:$0xff] %vm5701, %v5396
          %5710 = vst.msk [vmem:[%s205 + $0x40] sm:$0xff] %vm5701, %v5398
          %5711 = vst.msk [vmem:[%s205 + $0x48] sm:$0xff] %vm5701, %v5400
          %5712 = vst.msk [vmem:[%s205 + $0x50] sm:$0xff] %vm5701, %v5402
          %5713 = vst.msk [vmem:[%s205 + $0x58] sm:$0xff] %vm5701, %v5404
          %5714 = vst.msk [vmem:[%s205 + $0x60] sm:$0xff] %vm5701, %v5406
          %5715 = vst.msk [vmem:[%s205 + $0x68] sm:$0xff] %vm5701, %v5408
          %5716 = vst.msk [vmem:[%s205 + $0x70] sm:$0xff] %vm5701, %v5410
          %5717 = vst.msk [vmem:[%s205 + $0x78] sm:$0xff] %vm5701, %v5412
          %5718 = vst.msk [vmem:[%s205 + $0x80] sm:$0xff] %vm5701, %v5414
          %5719 = vst.msk [vmem:[%s205 + $0x88] sm:$0xff] %vm5701, %v5416
          %5720 = vst.msk [vmem:[%s205 + $0x90] sm:$0xff] %vm5701, %v5418
          %5721 = vst.msk [vmem:[%s205 + $0x98] sm:$0xff] %vm5701, %v5420
          %5722 = vst.msk [vmem:[%s205 + $0xa0] sm:$0xff] %vm5701, %v5422
          %5723 = vst.msk [vmem:[%s205 + $0xa8] sm:$0xff] %vm5701, %v5424
          %5724 = vst.msk [vmem:[%s205 + $0xb0] sm:$0xff] %vm5701, %v5426
          %5725 = vst.msk [vmem:[%s205 + $0xb8] sm:$0xff] %vm5701, %v5428
          %5726 = vst.msk [vmem:[%s205 + $0xc0] sm:$0xff] %vm5701, %v5430
          %5727 = vst.msk [vmem:[%s205 + $0xc8] sm:$0xff] %vm5701, %v5432
          %5728 = vst.msk [vmem:[%s205 + $0xd0] sm:$0xff] %vm5701, %v5434
          %5729 = vst.msk [vmem:[%s205 + $0xd8] sm:$0xff] %vm5701, %v5436
          %5730 = vst.msk [vmem:[%s205 + $0xe0] sm:$0xff] %vm5701, %v5438
          %5731 = vst.msk [vmem:[%s205 + $0xe8] sm:$0xff] %vm5701, %v5440
          %5732 = vst.msk [vmem:[%s205 + $0xf0] sm:$0xff] %vm5701, %v5442
          %5733 = vst.msk [vmem:[%s205 + $0xf8] sm:$0xff] %vm5701, %v5444
          %5734 = vst.msk [vmem:[%s205 + $0x100] sm:$0xff] %vm5701, %v5446
          %5735 = vst.msk [vmem:[%s205 + $0x108] sm:$0xff] %vm5701, %v5448
          %5736 = vst.msk [vmem:[%s205 + $0x110] sm:$0xff] %vm5701, %v5450
          %5737 = vst.msk [vmem:[%s205 + $0x118] sm:$0xff] %vm5701, %v5452
          %5738 = vst.msk [vmem:[%s205 + $0x120] sm:$0xff] %vm5701, %v5454
          %5739 = vst.msk [vmem:[%s205 + $0x128] sm:$0xff] %vm5701, %v5456
          %5740 = vst.msk [vmem:[%s205 + $0x130] sm:$0xff] %vm5701, %v5458
          %5741 = vst.msk [vmem:[%s205 + $0x138] sm:$0xff] %vm5701, %v5460
          %5742 = vst.msk [vmem:[%s205 + $0x140] sm:$0xff] %vm5701, %v5462
          %5743 = vst.msk [vmem:[%s205 + $0x148] sm:$0xff] %vm5701, %v5464
          %5744 = vst.msk [vmem:[%s205 + $0x150] sm:$0xff] %vm5701, %v5466
          %5745 = vst.msk [vmem:[%s205 + $0x158] sm:$0xff] %vm5701, %v5468
          %5746 = vst.msk [vmem:[%s205 + $0x160] sm:$0xff] %vm5701, %v5470
          %5747 = vst.msk [vmem:[%s205 + $0x168] sm:$0xff] %vm5701, %v5472
          %5748 = vst.msk [vmem:[%s205 + $0x170] sm:$0xff] %vm5701, %v5474
          %5749 = vst.msk [vmem:[%s205 + $0x178] sm:$0xff] %vm5701, %v5476
          %5750 = vst.msk [vmem:[%s205 + $0x180] sm:$0xff] %vm5701, %v5478
          %5751 = vst.msk [vmem:[%s205 + $0x188] sm:$0xff] %vm5701, %v5480
          %5752 = vst.msk [vmem:[%s205 + $0x190] sm:$0xff] %vm5701, %v5482
          %5753 = vst.msk [vmem:[%s205 + $0x198] sm:$0xff] %vm5701, %v5484
          %5754 = vst.msk [vmem:[%s205 + $0x1a0] sm:$0xff] %vm5701, %v5486
          %5755 = vst.msk [vmem:[%s205 + $0x1a8] sm:$0xff] %vm5701, %v5488
          %5756 = vst.msk [vmem:[%s205 + $0x1b0] sm:$0xff] %vm5701, %v5490
          %5757 = vst.msk [vmem:[%s205 + $0x1b8] sm:$0xff] %vm5701, %v5492
          %5758 = vst.msk [vmem:[%s205 + $0x1c0] sm:$0xff] %vm5701, %v5494
          %5759 = vst.msk [vmem:[%s205 + $0x1c8] sm:$0xff] %vm5701, %v5496
          %5760 = vst.msk [vmem:[%s205 + $0x1d0] sm:$0xff] %vm5701, %v5498
          %5761 = vst.msk [vmem:[%s205 + $0x1d8] sm:$0xff] %vm5701, %v5500
          %5762 = vst.msk [vmem:[%s205 + $0x1e0] sm:$0xff] %vm5701, %v5502
          %5763 = vst.msk [vmem:[%s205 + $0x1e8] sm:$0xff] %vm5701, %v5504
          %5764 = vst.msk [vmem:[%s205 + $0x1f0] sm:$0xff] %vm5701, %v5506
          %5765 = vst.msk [vmem:[%s205 + $0x1f8] sm:$0xff] %vm5701, %v5508
          %5766 = vst.msk [vmem:[%s205 + $0x200] sm:$0xff] %vm5701, %v5510
          %5767 = vst.msk [vmem:[%s205 + $0x208] sm:$0xff] %vm5701, %v5512
          %5768 = vst.msk [vmem:[%s205 + $0x210] sm:$0xff] %vm5701, %v5514
          %5769 = vst.msk [vmem:[%s205 + $0x218] sm:$0xff] %vm5701, %v5516
          %5770 = vst.msk [vmem:[%s205 + $0x220] sm:$0xff] %vm5701, %v5518
          %5771 = vst.msk [vmem:[%s205 + $0x228] sm:$0xff] %vm5701, %v5520
          %5772 = vst.msk [vmem:[%s205 + $0x230] sm:$0xff] %vm5701, %v5522
          %5773 = vst.msk [vmem:[%s205 + $0x238] sm:$0xff] %vm5701, %v5524
          %5774 = vst.msk [vmem:[%s205 + $0x240] sm:$0xff] %vm5701, %v5526
          %5775 = vst.msk [vmem:[%s205 + $0x248] sm:$0xff] %vm5701, %v5528
          %5776 = vst.msk [vmem:[%s205 + $0x250] sm:$0xff] %vm5701, %v5530
          %5777 = vst.msk [vmem:[%s205 + $0x258] sm:$0xff] %vm5701, %v5532
          %5778 = vst.msk [vmem:[%s205 + $0x260] sm:$0xff] %vm5701, %v5534
          %5779 = vst.msk [vmem:[%s205 + $0x268] sm:$0xff] %vm5701, %v5536
          %5780 = vst.msk [vmem:[%s205 + $0x270] sm:$0xff] %vm5701, %v5538
          %5781 = vst.msk [vmem:[%s205 + $0x278] sm:$0xff] %vm5701, %v5540
          %5782 = vst.msk [vmem:[%s205 + $0x280] sm:$0xff] %vm5701, %v5542
          %5783 = vst.msk [vmem:[%s205 + $0x288] sm:$0xff] %vm5701, %v5544
          %5784 = vst.msk [vmem:[%s205 + $0x290] sm:$0xff] %vm5701, %v5546
          %5785 = vst.msk [vmem:[%s205 + $0x298] sm:$0xff] %vm5701, %v5548
          %5786 = vst.msk [vmem:[%s205 + $0x2a0] sm:$0xff] %vm5701, %v5550
          %5787 = vst.msk [vmem:[%s205 + $0x2a8] sm:$0xff] %vm5701, %v5552
          %5788 = vst.msk [vmem:[%s205 + $0x2b0] sm:$0xff] %vm5701, %v5554
          %5789 = vst.msk [vmem:[%s205 + $0x2b8] sm:$0xff] %vm5701, %v5556
          %5790 = vst.msk [vmem:[%s205 + $0x2c0] sm:$0xff] %vm5701, %v5558
          %5791 = vst.msk [vmem:[%s205 + $0x2c8] sm:$0xff] %vm5701, %v5560
          %5792 = vst.msk [vmem:[%s205 + $0x2d0] sm:$0xff] %vm5701, %v5562
          %5793 = vst.msk [vmem:[%s205 + $0x2d8] sm:$0xff] %vm5701, %v5564
          %5794 = vst.msk [vmem:[%s205 + $0x2e0] sm:$0xff] %vm5701, %v5566
          %5795 = vst.msk [vmem:[%s205 + $0x2e8] sm:$0xff] %vm5701, %v5568
          %5796 = vst.msk [vmem:[%s205 + $0x2f0] sm:$0xff] %vm5701, %v5570
          %5797 = vst.msk [vmem:[%s205 + $0x2f8] sm:$0xff] %vm5701, %v5572
          %5798 = vst.msk [vmem:[%s205 + $0x300] sm:$0xff] %vm5701, %v5574
          %5799 = vst.msk [vmem:[%s205 + $0x308] sm:$0xff] %vm5701, %v5576
          %5800 = vst.msk [vmem:[%s205 + $0x310] sm:$0xff] %vm5701, %v5578
          %5801 = vst.msk [vmem:[%s205 + $0x318] sm:$0xff] %vm5701, %v5580
          %5802 = vst.msk [vmem:[%s205 + $0x320] sm:$0xff] %vm5701, %v5582
          %5803 = vst.msk [vmem:[%s205 + $0x328] sm:$0xff] %vm5701, %v5584
          %5804 = vst.msk [vmem:[%s205 + $0x330] sm:$0xff] %vm5701, %v5586
          %5805 = vst.msk [vmem:[%s205 + $0x338] sm:$0xff] %vm5701, %v5588
          %5806 = vst.msk [vmem:[%s205 + $0x340] sm:$0xff] %vm5701, %v5590
          %5807 = vst.msk [vmem:[%s205 + $0x348] sm:$0xff] %vm5701, %v5592
          %5808 = vst.msk [vmem:[%s205 + $0x350] sm:$0xff] %vm5701, %v5594
          %5809 = vst.msk [vmem:[%s205 + $0x358] sm:$0xff] %vm5701, %v5596
          %5810 = vst.msk [vmem:[%s205 + $0x360] sm:$0xff] %vm5701, %v5598
          %5811 = vst.msk [vmem:[%s205 + $0x368] sm:$0xff] %vm5701, %v5600
          %5812 = vst.msk [vmem:[%s205 + $0x370] sm:$0xff] %vm5701, %v5602
          %5813 = vst.msk [vmem:[%s205 + $0x378] sm:$0xff] %vm5701, %v5604
          %5814 = vst.msk [vmem:[%s205 + $0x380] sm:$0xff] %vm5701, %v5606
          %5815 = vst.msk [vmem:[%s205 + $0x388] sm:$0xff] %vm5701, %v5608
          %5816 = vst.msk [vmem:[%s205 + $0x390] sm:$0xff] %vm5701, %v5610
          %5817 = vst.msk [vmem:[%s205 + $0x398] sm:$0xff] %vm5701, %v5612
          %5818 = vst.msk [vmem:[%s205 + $0x3a0] sm:$0xff] %vm5701, %v5614
          %5819 = vst.msk [vmem:[%s205 + $0x3a8] sm:$0xff] %vm5701, %v5616
          %5820 = vst.msk [vmem:[%s205 + $0x3b0] sm:$0xff] %vm5701, %v5618
          %5821 = vst.msk [vmem:[%s205 + $0x3b8] sm:$0xff] %vm5701, %v5620
          %5822 = vst.msk [vmem:[%s205 + $0x3c0] sm:$0xff] %vm5701, %v5622
          %5823 = vst.msk [vmem:[%s205 + $0x3c8] sm:$0xff] %vm5701, %v5624
          %5824 = vst.msk [vmem:[%s205 + $0x3d0] sm:$0xff] %vm5701, %v5626
          %5825 = vst.msk [vmem:[%s205 + $0x3d8] sm:$0xff] %vm5701, %v5628
          %5826 = vst.msk [vmem:[%s205 + $0x3e0] sm:$0xff] %vm5701, %v5630
          %5827 = vst.msk [vmem:[%s205 + $0x3e8] sm:$0xff] %vm5701, %v5632
          %5828 = vst.msk [vmem:[%s205 + $0x3f0] sm:$0xff] %vm5701, %v5634
          %5829 = vst.msk [vmem:[%s205 + $0x3f8] sm:$0xff] %vm5701, %v5636
          %5830 = vst.msk [vmem:[%s205 + $0x400] sm:$0xff] %vm5701, %v5638
          %5831 = vst.msk [vmem:[%s205 + $0x408] sm:$0xff] %vm5701, %v5640
          %5832 = vst.msk [vmem:[%s205 + $0x410] sm:$0xff] %vm5701, %v5642
          %5833 = vst.msk [vmem:[%s205 + $0x418] sm:$0xff] %vm5701, %v5644
          %5834 = vst.msk [vmem:[%s205 + $0x420] sm:$0xff] %vm5701, %v5646
          %5835 = vst.msk [vmem:[%s205 + $0x428] sm:$0xff] %vm5701, %v5648
          %5836 = vst.msk [vmem:[%s205 + $0x430] sm:$0xff] %vm5701, %v5650
          %5837 = vst.msk [vmem:[%s205 + $0x438] sm:$0xff] %vm5701, %v5652
          %5838 = vst.msk [vmem:[%s205 + $0x440] sm:$0xff] %vm5701, %v5654
          %5839 = vst.msk [vmem:[%s205 + $0x448] sm:$0xff] %vm5701, %v5656
          %5840 = vst.msk [vmem:[%s205 + $0x450] sm:$0xff] %vm5701, %v5658
          %5841 = vst.msk [vmem:[%s205 + $0x458] sm:$0xff] %vm5701, %v5660
          %5842 = vst.msk [vmem:[%s205 + $0x460] sm:$0xff] %vm5701, %v5662
          %5843 = vst.msk [vmem:[%s205 + $0x468] sm:$0xff] %vm5701, %v5664
          %5844 = vst.msk [vmem:[%s205 + $0x470] sm:$0xff] %vm5701, %v5666
          %5845 = vst.msk [vmem:[%s205 + $0x478] sm:$0xff] %vm5701, %v5668
          %5846 = vst.msk [vmem:[%s205 + $0x480] sm:$0xff] %vm5701, %v5670
          %5847 = vst.msk [vmem:[%s205 + $0x488] sm:$0xff] %vm5701, %v5672
          %5848 = vst.msk [vmem:[%s205 + $0x490] sm:$0xff] %vm5701, %v5674
          %5849 = vst.msk [vmem:[%s205 + $0x498] sm:$0xff] %vm5701, %v5676
          %5850 = vst.msk [vmem:[%s205 + $0x4a0] sm:$0xff] %vm5701, %v5678
          %5851 = vst.msk [vmem:[%s205 + $0x4a8] sm:$0xff] %vm5701, %v5680
          %5852 = vst.msk [vmem:[%s205 + $0x4b0] sm:$0xff] %vm5701, %v5682
          %5853 = vst.msk [vmem:[%s205 + $0x4b8] sm:$0xff] %vm5701, %v5684
          %5854 = vst.msk [vmem:[%s205 + $0x4c0] sm:$0xff] %vm5701, %v5686
          %5855 = vst.msk [vmem:[%s205 + $0x4c8] sm:$0xff] %vm5701, %v5688
          %5856 = vst.msk [vmem:[%s205 + $0x4d0] sm:$0xff] %vm5701, %v5690
          %5857 = vst.msk [vmem:[%s205 + $0x4d8] sm:$0xff] %vm5701, %v5692
          %5858 = vst.msk [vmem:[%s205 + $0x4e0] sm:$0xff] %vm5701, %v5694
          %5859 = vst.msk [vmem:[%s205 + $0x4e8] sm:$0xff] %vm5701, %v5696
          %5860 = vst.msk [vmem:[%s205 + $0x4f0] sm:$0xff] %vm5701, %v5698
          %5861 = vst.msk [vmem:[%s205 + $0x4f8] sm:$0xff] %vm5701, %v5700
        $region44: #{tpu_custom_call.1} parent=31 // pred_fallthru
          _
        %p5862 = scmp.lt.s32.totalorder %s21, 1
        %s5863 = scalar_select %p5862, %s21, 1
        %s5864 = smul.addr %s5863, 160
        %s5865 = smul.addr %s5864, 8
        %s5866 = scalar_lea.vmem %s3, %s5865
        // Predicated region
        $region45: #{tpu_custom_call.1} parent=31 // pred_check
          %p5867 = pneg %p117
        $region46: #{tpu_custom_call.1} parent=31 // pred_check_branch
          %5869 = sbr.rel (%p5867) target = $region48
        $region47: #{tpu_custom_call.1} parent=31 // pred_region
          _
        $region48: #{tpu_custom_call.1} parent=31 // pred_fallthru
          _
      $region32: #{tpu_custom_call.1} parent=5 // pred_fallthru
        _
      %p5870 = scmp.le.s32.totalorder 2, %s12
      // Predicated region
      $region49: #{tpu_custom_call.1} parent=5 // pred_check
        %p5871 = pneg %p5870
      $region50: #{tpu_custom_call.1} parent=5 // pred_check_branch
        %5873 = sbr.rel (%p5871) target = $region52
      $region51: #{tpu_custom_call.1} parent=5 // pred_region
        %s5874 = ssub.s32 %s12, 2
        // Predicated region
        $region53: #{tpu_custom_call.1} parent=51 // pred_check
          %p5875 = pneg %p123
        $region54: #{tpu_custom_call.1} parent=51 // pred_check_branch
          %5877 = sbr.rel (%p5875) target = $region56
        $region55: #{tpu_custom_call.1} parent=51 // pred_region
          %p5878 = scmp.lt.s32.totalorder %s23, 1
          %s5879 = scalar_select %p5878, %s23, 1
          %s5880 = smul.addr %s5879, 160
          %s5881 = smul.addr %s5880, 8
          %s5882 = scalar_lea.vmem %s3, %s5881
        $region56: #{tpu_custom_call.1} parent=51 // pred_fallthru
          _
      $region52: #{tpu_custom_call.1} parent=5 // pred_fallthru
        _
    $region6: #{tpu_custom_call.1} parent=1 // loop_footer
      %s16 = sadd.s32 1, %s12
    $region7: #{tpu_custom_call.1} parent=1 // loop_footer_branch
      %11 = sbr.rel target = $region3
    $region8: #{tpu_custom_call.1} parent=1 // loop_exit
      _
    %5883 = vsyncpa [#allocation4], 1
    %s5884 = scalar_lea.sflag [#allocation4], 1
    %5885 = vsyncpa %s5884, 1

</llo_original>
